<compile_context>
chip_gen: v5e
topology: v5e:2x2
jax: 0.10.0
libtpu: 0.0.40
codegen_flags: <defaults>
</compile_context>

<pallas_src>
import functools

import jax
import jax.numpy as jnp
import numpy as np
from jax.experimental import pallas as pl
from jax.experimental.pallas import tpu as pltpu


# --------------------------- generation-aware sizing ------------------------


def _tpu_generation():
    try:
        kind = jax.devices()[0].device_kind.lower()
    except Exception:  # pragma: no cover
        return 6
    if "v7" in kind or "tpu7" in kind:
        return 7
    if "v6" in kind or "tpu6" in kind:
        return 6
    if "v5" in kind:
        return 5
    return 6


def _vmem_limit_bytes():
    # v7x has 64 MiB physical VMEM per TC -> stay well under it; v5e/v6e have
    # 128 MiB, so let the compiler use most of it (bigger tiles, fewer steps).
    return (48 << 20) if _tpu_generation() >= 7 else (96 << 20)


def _attn_vmem_bytes(B, S, D, dim_ff, nhead, tq):
    """Rough upper bound of the attention/FFN kernel's VMEM working set."""
    bf, f4 = 2, 4
    resident = 2 * (2 * B * S * D * bf)                  # K, V (double-buffered)
    resident += 2 * bf * (2 * D * D + 2 * D * dim_ff)    # weights (double-buffered)
    stream = 2 * (B * tq * D * (f4 + bf))                # src (f32) + pos (bf16) tiles
    stream += 2 * (B * tq * D * f4)                      # output tile
    temps = 2 * B * S * D * bf                           # head-major K/V copies
    temps += B * nhead * tq * S * (2 * f4 + bf)          # scores + exp (f32), probs (bf16)
    temps += 6 * B * tq * D * f4                         # q / attn / LN temporaries
    temps += 2 * B * tq * dim_ff * f4                    # FFN hidden
    return resident + stream + temps


def _pick_q_tile(B, S, D, dim_ff, nhead, vmem_limit):
    budget = int(0.75 * vmem_limit)
    # Candidates < S (>= 2 tiles keeps both v7x TensorCores busy), 16-aligned
    # because the streamed bf16 blocks need sublane multiples of 16.
    cands = [c for c in (2048, 1024, 512, 256, 128, 64, 32, 16)
             if c < S and S % c == 0]
    for tq in cands:
        if _attn_vmem_bytes(B, S, D, dim_ff, nhead, tq) <= budget:
            return tq
    if not cands:
        return S
    # TODO(synk): for very long sequences add a key-tile grid axis with an
    # online (flash) softmax instead of shrinking the query tile further.
    return cands[-1]


def _resolve_q_tile(B, S, D, dim_ff, nhead, vmem_limit, q_tile):
    if q_tile is not None:
        if S % q_tile == 0 and (q_tile == S or q_tile % 16 == 0):
            return q_tile
        return S
    return _pick_q_tile(B, S, D, dim_ff, nhead, vmem_limit)


# ------------------------------- kernels -----------------------------------


def _layernorm(x, gamma, beta, eps=1e-5):
    mu = jnp.mean(x, axis=-1, keepdims=True)
    xc = x - mu
    var = jnp.mean(xc * xc, axis=-1, keepdims=True)
    return xc * jax.lax.rsqrt(var + eps) * gamma + beta


def _kv_kernel(src_ref, pos_ref, wk_ref, bk_ref, wv_ref, bv_ref, k_ref, v_ref):
    """K projection on (src+pos) and V projection on src for one seq tile."""
    x = src_ref[...]                                     # (B, T, D) f32
    p = pos_ref[...].astype(jnp.float32)                 # (B, T, D) bf16 -> f32
    B, T, D = x.shape

    xf = x.reshape(B * T, D)
    xp = (xf + p.reshape(B * T, D)).astype(jnp.bfloat16)

    k = jnp.dot(xp, wk_ref[...], preferred_element_type=jnp.float32) + bk_ref[...]
    v = jnp.dot(xf.astype(jnp.bfloat16), wv_ref[...],
                preferred_element_type=jnp.float32) + bv_ref[...]

    k_ref[...] = k.reshape(B, T, D).astype(k_ref.dtype)
    v_ref[...] = v.reshape(B, T, D).astype(v_ref.dtype)


def _attn_ffn_kernel(src_ref, pos_ref, k_ref, v_ref, mask_ref,
                     wq_ref, bq_ref, wo_ref, bo_ref,
                     w1_ref, b1_ref, w2_ref, b2_ref,
                     g1_ref, be1_ref, g2_ref, be2_ref,
                     out_ref, *, nhead, scale):
    """Fused Q-proj + attention + out-proj + LN1 + FFN + LN2 for a query tile."""
    x = src_ref[...]                                     # (B, TQ, D) f32 residual
    p = pos_ref[...].astype(jnp.float32)                 # (B, TQ, D)
    kb = k_ref[...]                                      # (B, S, D) bf16 resident
    vb = v_ref[...]                                      # (B, S, D) bf16 resident
    B, TQ, D = x.shape
    S = kb.shape[1]
    hd = D // nhead

    xf = x.reshape(B * TQ, D)
    xp = (xf + p.reshape(B * TQ, D)).astype(jnp.bfloat16)

    # Q projection fused here (no Q HBM round trip); pre-scaled by 1/sqrt(hd).
    q = (jnp.dot(xp, wq_ref[...], preferred_element_type=jnp.float32)
         + bq_ref[...]) * scale                          # (B*TQ, D) f32
    q = q.astype(jnp.bfloat16)

    # Fold heads into a single leading batch dim (h-major, b-minor) so the two
    # attention contractions are batched leading-batch einsums instead of
    # 2*nhead tiny matmuls.
    qn = jnp.concatenate(
        [q[:, h * hd:(h + 1) * hd].reshape(B, TQ, hd) for h in range(nhead)],
        axis=0)                                          # (H*B, TQ, hd) bf16
    kn = jnp.concatenate(
        [kb[:, :, h * hd:(h + 1) * hd] for h in range(nhead)], axis=0)
    vn = jnp.concatenate(
        [vb[:, :, h * hd:(h + 1) * hd] for h in range(nhead)], axis=0)

    s = jnp.einsum('nqd,nkd->nqk', qn, kn,
                   preferred_element_type=jnp.float32)   # (H*B, TQ, S) f32
    # Additive key-padding mask; implicit broadcast (no broadcast_to buffer).
    s = s.reshape(nhead, B, TQ, S) + mask_ref[...]       # mask (B, 1, S)
    s = s - jnp.max(s, axis=-1, keepdims=True)
    e = jnp.exp(s)
    inv = pl.reciprocal(jnp.sum(e, axis=-1, keepdims=True), approx=True)
    prob = (e * inv).astype(jnp.bfloat16).reshape(nhead * B, TQ, S)

    attn = jnp.einsum('nqk,nkd->nqd', prob, vn,
                      preferred_element_type=jnp.float32)  # (H*B, TQ, hd) f32
    attn = jnp.concatenate(
        [attn[h * B:(h + 1) * B].reshape(B * TQ, hd) for h in range(nhead)],
        axis=-1)                                         # (B*TQ, D)

    # Output projection + residual + LayerNorm1.
    o = jnp.dot(attn.astype(jnp.bfloat16), wo_ref[...],
                preferred_element_type=jnp.float32) + bo_ref[...]
    h1 = _layernorm(xf + o, g1_ref[...], be1_ref[...])

    # FFN (Linear1 -> ReLU -> Linear2) + residual + LayerNorm2.
    ff = jnp.dot(h1.astype(jnp.bfloat16), w1_ref[...],
                 preferred_element_type=jnp.float32) + b1_ref[...]
    ff = jnp.maximum(ff, 0.0)
    ff = jnp.dot(ff.astype(jnp.bfloat16), w2_ref[...],
                 preferred_element_type=jnp.float32) + b2_ref[...]
    h2 = _layernorm(h1 + ff, g2_ref[...], be2_ref[...])

    out_ref[...] = h2.reshape(B, TQ, D).astype(out_ref.dtype)


# ----------------------------- pallas wrappers ------------------------------


def _kv_pallas(x, p_bf, lp, tq, vmem_limit):
    B, S, D = x.shape
    grid = (S // tq,)
    tile = pl.BlockSpec((B, tq, D), lambda i: (0, i, 0))
    const2 = lambda a: pl.BlockSpec(a.shape, lambda i: (0, 0))   # resident
    return pl.pallas_call(
        _kv_kernel,
        grid=grid,
        in_specs=[tile, tile,
                  const2(lp['wk']), const2(lp['bk']),
                  const2(lp['wv']), const2(lp['bv'])],
        out_specs=(tile, tile),
        out_shape=(jax.ShapeDtypeStruct((B, S, D), jnp.bfloat16),) * 2,
        compiler_params=pltpu.CompilerParams(
            dimension_semantics=("parallel",),
            vmem_limit_bytes=vmem_limit),
    )(x, p_bf, lp['wk'], lp['bk'], lp['wv'], lp['bv'])


def _attn_ffn_pallas(x, p_bf, k, v, addmask, lp, nhead, tq, scale, vmem_limit):
    B, S, D = x.shape
    grid = (S // tq,)
    tile = pl.BlockSpec((B, tq, D), lambda i: (0, i, 0))
    fullseq = pl.BlockSpec((B, S, D), lambda i: (0, 0, 0))        # resident
    mask_spec = pl.BlockSpec((B, 1, S), lambda i: (0, 0, 0))      # resident
    const2 = lambda a: pl.BlockSpec(a.shape, lambda i: (0, 0))    # resident

    args = (x, p_bf, k, v, addmask,
            lp['wq'], lp['bq'], lp['wo'], lp['bo'],
            lp['w1'], lp['b1'], lp['w2'], lp['b2'],
            lp['g1'], lp['be1'], lp['g2'], lp['be2'])
    in_specs = [tile, tile, fullseq, fullseq, mask_spec] + \
               [const2(a) for a in args[5:]]

    return pl.pallas_call(
        functools.partial(_attn_ffn_kernel, nhead=nhead, scale=scale),
        grid=grid,
        in_specs=in_specs,
        out_specs=tile,
        out_shape=jax.ShapeDtypeStruct((B, S, D), jnp.float32),
        # The streamed residual input and the layer output share tiling/dtype;
        # alias them so no extra (B,S,D) HBM allocation is needed per layer.
        input_output_aliases={0: 0},
        compiler_params=pltpu.CompilerParams(
            dimension_semantics=("parallel",),
            vmem_limit_bytes=vmem_limit),
    )(*args)


# --------------------------- parameter preparation --------------------------


def prepare_encoder_params(layer_params):
    """Host-side, ONCE at load time: pre-transpose to (in, out), cast to bf16."""
    f32 = lambda a: jnp.asarray(a, jnp.float32)
    bf16 = lambda a: jnp.asarray(a, jnp.bfloat16)
    return [dict(
        wq=bf16(p['wq'].T), bq=f32(p['bq']),
        wk=bf16(p['wk'].T), bk=f32(p['bk']),
        wv=bf16(p['wv'].T), bv=f32(p['bv']),
        wo=bf16(p['wo'].T), bo=f32(p['bo']),
        w1=bf16(p['w1'].T), b1=f32(p['b1']),
        w2=bf16(p['w2'].T), b2=f32(p['b2']),
        g1=f32(p['g1']), be1=f32(p['be1']),
        g2=f32(p['g2']), be2=f32(p['be2']),
    ) for p in layer_params]


def transformer_encoder_forward(src, pos, src_key_padding_mask, prepped_params,
                                nhead, q_tile=None):
    """Matches TransformerEncoder.forward (norm=None, mask=None).

    src, pos: (S, B, D) float32   (PyTorch seq-first convention)
    src_key_padding_mask: (B, S) bool, True = padded/ignored key
    prepped_params: output of prepare_encoder_params (one dict per layer)
    """
    x = jnp.transpose(src, (1, 0, 2)).astype(jnp.float32)      # (B, S, D)
    p_bf = jnp.transpose(pos, (1, 0, 2)).astype(jnp.bfloat16)  # (B, S, D) bf16
    B, S, D = x.shape
    assert D % nhead == 0
    scale = 1.0 / float(np.sqrt(D // nhead))
    addmask = jnp.where(src_key_padding_mask, -1e9, 0.0)
    addmask = addmask.astype(jnp.float32)[:, None, :]          # (B, 1, S)

    vmem_limit = _vmem_limit_bytes()
    dim_ff = int(prepped_params[0]['w1'].shape[1]) if prepped_params else D
    tq = _resolve_q_tile(B, S, D, dim_ff, nhead, vmem_limit, q_tile)

    # TODO(synk): hide per-layer weight DMA via cross-call prefetch (P10) or a
    # single fused multi-layer pallas_call.
    for lp in prepped_params:
        k, v = _kv_pallas(x, p_bf, lp, tq, vmem_limit)
        x = _attn_ffn_pallas(x, p_bf, k, v, addmask, lp, nhead, tq, scale,
                             vmem_limit)

    # self.norm is None in the default (post-norm) construction -> no final LN.
    return jnp.transpose(x, (1, 0, 2))                          # (S, B, D)


# ------------------------- deterministic parameters ------------------------


def _init_layer_params(key, d_model, dim_ff):
    ks = jax.random.split(key, 10)

    def lin_w(k, out_f, in_f):
        bound = 1.0 / np.sqrt(in_f)
        return jax.random.uniform(k, (out_f, in_f), jnp.float32, -bound, bound)

    def lin_b(k, out_f, in_f):
        bound = 1.0 / np.sqrt(in_f)
        return jax.random.uniform(k, (1, out_f), jnp.float32, -bound, bound)

    return dict(
        wq=lin_w(ks[0], d_model, d_model), bq=lin_b(ks[1], d_model, d_model),
        wk=lin_w(ks[2], d_model, d_model), bk=lin_b(ks[3], d_model, d_model),
        wv=lin_w(ks[4], d_model, d_model), bv=lin_b(ks[5], d_model, d_model),
        wo=lin_w(ks[6], d_model, d_model), bo=jnp.zeros((1, d_model), jnp.float32),
        w1=lin_w(ks[7], dim_ff, d_model), b1=lin_b(ks[8], dim_ff, d_model),
        w2=lin_w(ks[9], d_model, dim_ff), b2=jnp.zeros((1, d_model), jnp.float32),
        g1=jnp.ones((1, d_model), jnp.float32), be1=jnp.zeros((1, d_model), jnp.float32),
        g2=jnp.ones((1, d_model), jnp.float32), be2=jnp.zeros((1, d_model), jnp.float32),
    )


# --------------------------- pure-JAX reference ----------------------------


def _reference_forward(src, pos, key_pad, layer_params, nhead):
    x = jnp.transpose(src, (1, 0, 2))
    p = jnp.transpose(pos, (1, 0, 2))
    B, S, D = x.shape
    hd = D // nhead
    addmask = jnp.where(key_pad, -1e9, 0.0)[:, None, None, :]
    for lp in layer_params:
        qk = x + p
        q = qk @ lp['wq'].T + lp['bq']
        k = qk @ lp['wk'].T + lp['bk']
        v = x @ lp['wv'].T + lp['bv']
        q = q.reshape(B, S, nhead, hd).transpose(0, 2, 1, 3) / np.sqrt(hd)
        k = k.reshape(B, S, nhead, hd).transpose(0, 2, 1, 3)
        v = v.reshape(B, S, nhead, hd).transpose(0, 2, 1, 3)
        s = jnp.einsum('bhqd,bhkd->bhqk', q, k) + addmask
        a = jax.nn.softmax(s, axis=-1)
        o = jnp.einsum('bhqk,bhkd->bhqd', a, v).transpose(0, 2, 1, 3).reshape(B, S, D)
        o = o @ lp['wo'].T + lp['bo']

        def ln(y, g, b, eps=1e-5):
            mu = jnp.mean(y, -1, keepdims=True)
            var = jnp.mean((y - mu) ** 2, -1, keepdims=True)
            return (y - mu) * jax.lax.rsqrt(var + eps) * g + b

        x = ln(x + o, lp['g1'], lp['be1'])
        ff = jnp.maximum(x @ lp['w1'].T + lp['b1'], 0.0) @ lp['w2'].T + lp['b2']
        x = ln(x + ff, lp['g2'], lp['be2'])
    return jnp.transpose(x, (1, 0, 2))


# --------------------------------- main ------------------------------------


if __name__ == "__main__":
    S, B, D = 32, 2, 32          # seq, batch, d_model
    NHEAD, DIM_FF, NUM_LAYERS = 4, 64, 2

    root = jax.random.PRNGKey(0)
    k_src, k_pos, k_layers = jax.random.split(root, 3)

    src = jax.random.normal(k_src, (S, B, D), jnp.float32)
    pos = jax.random.normal(k_pos, (S, B, D), jnp.float32)
    # key padding mask: True = padded key (last four tokens of batch 1 padded)
    key_pad = jnp.zeros((B, S), jnp.bool_).at[1, -4:].set(True)

    layer_keys = jax.random.split(k_layers, NUM_LAYERS)
    layer_params = [_init_layer_params(k, D, DIM_FF) for k in layer_keys]

    # Weight prep happens once, outside the per-forward path.
    prepped = prepare_encoder_params(layer_params)

    fwd = jax.jit(functools.partial(transformer_encoder_forward, nhead=NHEAD))
    out = jax.block_until_ready(fwd(src, pos, key_pad, prepped))

    ref = _reference_forward(src, pos, key_pad, layer_params, NHEAD)
    # bf16 MXU inputs / bf16 pos with f32 accumulation -> slightly looser tol.
    # Note: a fully-masked key row would give uniform attention here instead of
    # PyTorch's NaN -- benign semantic difference, documented.
    np.testing.assert_allclose(np.asarray(out), np.asarray(ref),
                               rtol=2e-2, atol=3e-2)
    assert out.shape == (S, B, D)
    assert bool(jnp.all(jnp.isfinite(out)))
    print("KERNEL_OK")
</pallas_src>

<mosaic_0001>
module attributes {stable_mosaic.version = 11 : i64} {
  func.func @_kv_kernel(%arg0: i32, %arg1: memref<2x16x32xf32, #tpu.memory_space<vmem>>, %arg2: memref<2x16x32xbf16, #tpu.memory_space<vmem>>, %arg3: memref<32x32xbf16, #tpu.memory_space<vmem>>, %arg4: memref<1x32xf32, #tpu.memory_space<vmem>>, %arg5: memref<32x32xbf16, #tpu.memory_space<vmem>>, %arg6: memref<1x32xf32, #tpu.memory_space<vmem>>, %arg7: memref<2x16x32xbf16, #tpu.memory_space<vmem>>, %arg8: memref<2x16x32xbf16, #tpu.memory_space<vmem>>) attributes {dimension_semantics = [#tpu.dimension_semantics<parallel>], iteration_bounds = array<i64: 2>, scalar_prefetch = 0 : i64, scratch_operands = 0 : i64, tpu.core_type = #tpu.core_type<tc>, window_params = [{transform_indices = @transform_0, window_bounds = array<i64: 2, 16, 32>}, {transform_indices = @transform_1, window_bounds = array<i64: 2, 16, 32>}, {pipeline_mode = #tpu.pipeline_mode<synchronous>, transform_indices = @transform_2, window_bounds = array<i64: 32, 32>}, {pipeline_mode = #tpu.pipeline_mode<synchronous>, transform_indices = @transform_3, window_bounds = array<i64: 1, 32>}, {pipeline_mode = #tpu.pipeline_mode<synchronous>, transform_indices = @transform_4, window_bounds = array<i64: 32, 32>}, {pipeline_mode = #tpu.pipeline_mode<synchronous>, transform_indices = @transform_5, window_bounds = array<i64: 1, 32>}, {transform_indices = @transform_6, window_bounds = array<i64: 2, 16, 32>}, {transform_indices = @transform_7, window_bounds = array<i64: 2, 16, 32>}]} {
    %c0 = arith.constant 0 : index
    %c0_0 = arith.constant 0 : index
    %c0_1 = arith.constant 0 : index
    %0 = vector.load %arg1[%c0, %c0_0, %c0_1] : memref<2x16x32xf32, #tpu.memory_space<vmem>>, vector<2x16x32xf32>
    %c0_2 = arith.constant 0 : index
    %c0_3 = arith.constant 0 : index
    %c0_4 = arith.constant 0 : index
    %1 = vector.load %arg2[%c0_2, %c0_3, %c0_4] : memref<2x16x32xbf16, #tpu.memory_space<vmem>>, vector<2x16x32xbf16>
    %2 = arith.extf %1 : vector<2x16x32xbf16> to vector<2x16x32xf32>
    %3 = vector.shape_cast %0 : vector<2x16x32xf32> to vector<32x32xf32>
    %4 = vector.shape_cast %2 : vector<2x16x32xf32> to vector<32x32xf32>
    %5 = arith.addf %3, %4 : vector<32x32xf32>
    %6 = arith.truncf %5 : vector<32x32xf32> to vector<32x32xbf16>
    %c0_5 = arith.constant 0 : index
    %c0_6 = arith.constant 0 : index
    %7 = vector.load %arg3[%c0_5, %c0_6] : memref<32x32xbf16, #tpu.memory_space<vmem>>, vector<32x32xbf16>
    %cst = arith.constant dense<0.000000e+00> : vector<32x32xf32>
    %8 = tpu.matmul %6, %7, %cst {dimension_numbers = #tpu.dot_dimension_numbers<[1], [0], [0], [1], [0, 0, 1, 1], [], []>} : vector<32x32xbf16>, vector<32x32xbf16>, vector<32x32xf32> -> vector<32x32xf32>
    %c0_7 = arith.constant 0 : index
    %c0_8 = arith.constant 0 : index
    %9 = vector.load %arg4[%c0_7, %c0_8] : memref<1x32xf32, #tpu.memory_space<vmem>>, vector<1x32xf32>
    %10 = vector.broadcast %9 : vector<1x32xf32> to vector<32x32xf32>
    %11 = arith.addf %8, %10 : vector<32x32xf32>
    %12 = arith.truncf %3 : vector<32x32xf32> to vector<32x32xbf16>
    %c0_9 = arith.constant 0 : index
    %c0_10 = arith.constant 0 : index
    %13 = vector.load %arg5[%c0_9, %c0_10] : memref<32x32xbf16, #tpu.memory_space<vmem>>, vector<32x32xbf16>
    %cst_11 = arith.constant dense<0.000000e+00> : vector<32x32xf32>
    %14 = tpu.matmul %12, %13, %cst_11 {dimension_numbers = #tpu.dot_dimension_numbers<[1], [0], [0], [1], [0, 0, 1, 1], [], []>} : vector<32x32xbf16>, vector<32x32xbf16>, vector<32x32xf32> -> vector<32x32xf32>
    %c0_12 = arith.constant 0 : index
    %c0_13 = arith.constant 0 : index
    %15 = vector.load %arg6[%c0_12, %c0_13] : memref<1x32xf32, #tpu.memory_space<vmem>>, vector<1x32xf32>
    %16 = vector.broadcast %15 : vector<1x32xf32> to vector<32x32xf32>
    %17 = arith.addf %14, %16 : vector<32x32xf32>
    %18 = vector.shape_cast %11 : vector<32x32xf32> to vector<2x16x32xf32>
    %19 = arith.truncf %18 : vector<2x16x32xf32> to vector<2x16x32xbf16>
    %c0_14 = arith.constant 0 : index
    %c0_15 = arith.constant 0 : index
    %c0_16 = arith.constant 0 : index
    %20 = vector.load %arg7[%c0_14, %c0_15, %c0_16] : memref<2x16x32xbf16, #tpu.memory_space<vmem>>, vector<2x16x32xbf16>
    tpu.vector_store %arg7[%c0_14, %c0_15, %c0_16], %19 {strides = array<i32>} : memref<2x16x32xbf16, #tpu.memory_space<vmem>>, vector<2x16x32xbf16>,
    %21 = vector.shape_cast %17 : vector<32x32xf32> to vector<2x16x32xf32>
    %22 = arith.truncf %21 : vector<2x16x32xf32> to vector<2x16x32xbf16>
    %c0_17 = arith.constant 0 : index
    %c0_18 = arith.constant 0 : index
    %c0_19 = arith.constant 0 : index
    %23 = vector.load %arg8[%c0_17, %c0_18, %c0_19] : memref<2x16x32xbf16, #tpu.memory_space<vmem>>, vector<2x16x32xbf16>
    tpu.vector_store %arg8[%c0_17, %c0_18, %c0_19], %22 {strides = array<i32>} : memref<2x16x32xbf16, #tpu.memory_space<vmem>>, vector<2x16x32xbf16>,
    return
  }
  func.func @transform_0(%arg0: i32) -> (i32, i32, i32) {
    %c0_i32 = arith.constant 0 : i32
    %c0_i32_0 = arith.constant 0 : i32
    %c0_i32_1 = arith.constant 0 : i32
    return %c0_i32, %arg0, %c0_i32_0 : i32, i32, i32
  }
  func.func @transform_1(%arg0: i32) -> (i32, i32, i32) {
    %c0_i32 = arith.constant 0 : i32
    %c0_i32_0 = arith.constant 0 : i32
    %c0_i32_1 = arith.constant 0 : i32
    return %c0_i32, %arg0, %c0_i32_0 : i32, i32, i32
  }
  func.func @transform_2(%arg0: i32) -> (i32, i32) {
    %c0_i32 = arith.constant 0 : i32
    %c0_i32_0 = arith.constant 0 : i32
    %c0_i32_1 = arith.constant 0 : i32
    return %c0_i32, %c0_i32_0 : i32, i32
  }
  func.func @transform_3(%arg0: i32) -> (i32, i32) {
    %c0_i32 = arith.constant 0 : i32
    %c0_i32_0 = arith.constant 0 : i32
    %c0_i32_1 = arith.constant 0 : i32
    return %c0_i32, %c0_i32_0 : i32, i32
  }
  func.func @transform_4(%arg0: i32) -> (i32, i32) {
    %c0_i32 = arith.constant 0 : i32
    %c0_i32_0 = arith.constant 0 : i32
    %c0_i32_1 = arith.constant 0 : i32
    return %c0_i32, %c0_i32_0 : i32, i32
  }
  func.func @transform_5(%arg0: i32) -> (i32, i32) {
    %c0_i32 = arith.constant 0 : i32
    %c0_i32_0 = arith.constant 0 : i32
    %c0_i32_1 = arith.constant 0 : i32
    return %c0_i32, %c0_i32_0 : i32, i32
  }
  func.func @transform_6(%arg0: i32) -> (i32, i32, i32) {
    %c0_i32 = arith.constant 0 : i32
    %c0_i32_0 = arith.constant 0 : i32
    %c0_i32_1 = arith.constant 0 : i32
    return %c0_i32, %arg0, %c0_i32_0 : i32, i32, i32
  }
  func.func @transform_7(%arg0: i32) -> (i32, i32, i32) {
    %c0_i32 = arith.constant 0 : i32
    %c0_i32_0 = arith.constant 0 : i32
    %c0_i32_1 = arith.constant 0 : i32
    return %c0_i32, %arg0, %c0_i32_0 : i32, i32, i32
  }
}

module attributes {stable_mosaic.version = 11 : i64} {
  func.func @_attn_ffn_kernel(%arg0: i32, %arg1: memref<2x16x32xf32, #tpu.memory_space<vmem>>, %arg2: memref<2x16x32xbf16, #tpu.memory_space<vmem>>, %arg3: memref<2x32x32xbf16, #tpu.memory_space<vmem>>, %arg4: memref<2x32x32xbf16, #tpu.memory_space<vmem>>, %arg5: memref<2x1x32xf32, #tpu.memory_space<vmem>>, %arg6: memref<32x32xbf16, #tpu.memory_space<vmem>>, %arg7: memref<1x32xf32, #tpu.memory_space<vmem>>, %arg8: memref<32x32xbf16, #tpu.memory_space<vmem>>, %arg9: memref<1x32xf32, #tpu.memory_space<vmem>>, %arg10: memref<32x64xbf16, #tpu.memory_space<vmem>>, %arg11: memref<1x64xf32, #tpu.memory_space<vmem>>, %arg12: memref<64x32xbf16, #tpu.memory_space<vmem>>, %arg13: memref<1x32xf32, #tpu.memory_space<vmem>>, %arg14: memref<1x32xf32, #tpu.memory_space<vmem>>, %arg15: memref<1x32xf32, #tpu.memory_space<vmem>>, %arg16: memref<1x32xf32, #tpu.memory_space<vmem>>, %arg17: memref<1x32xf32, #tpu.memory_space<vmem>>, %arg18: memref<2x16x32xf32, #tpu.memory_space<vmem>>) attributes {dimension_semantics = [#tpu.dimension_semantics<parallel>], iteration_bounds = array<i64: 2>, scalar_prefetch = 0 : i64, scratch_operands = 0 : i64, tpu.core_type = #tpu.core_type<tc>, window_params = [{transform_indices = @transform_0, window_bounds = array<i64: 2, 16, 32>}, {transform_indices = @transform_1, window_bounds = array<i64: 2, 16, 32>}, {pipeline_mode = #tpu.pipeline_mode<synchronous>, transform_indices = @transform_2, window_bounds = array<i64: 2, 32, 32>}, {pipeline_mode = #tpu.pipeline_mode<synchronous>, transform_indices = @transform_3, window_bounds = array<i64: 2, 32, 32>}, {pipeline_mode = #tpu.pipeline_mode<synchronous>, transform_indices = @transform_4, window_bounds = array<i64: 2, 1, 32>}, {pipeline_mode = #tpu.pipeline_mode<synchronous>, transform_indices = @transform_5, window_bounds = array<i64: 32, 32>}, {pipeline_mode = #tpu.pipeline_mode<synchronous>, transform_indices = @transform_6, window_bounds = array<i64: 1, 32>}, {pipeline_mode = #tpu.pipeline_mode<synchronous>, transform_indices = @transform_7, window_bounds = array<i64: 32, 32>}, {pipeline_mode = #tpu.pipeline_mode<synchronous>, transform_indices = @transform_8, window_bounds = array<i64: 1, 32>}, {pipeline_mode = #tpu.pipeline_mode<synchronous>, transform_indices = @transform_9, window_bounds = array<i64: 32, 64>}, {pipeline_mode = #tpu.pipeline_mode<synchronous>, transform_indices = @transform_10, window_bounds = array<i64: 1, 64>}, {pipeline_mode = #tpu.pipeline_mode<synchronous>, transform_indices = @transform_11, window_bounds = array<i64: 64, 32>}, {pipeline_mode = #tpu.pipeline_mode<synchronous>, transform_indices = @transform_12, window_bounds = array<i64: 1, 32>}, {pipeline_mode = #tpu.pipeline_mode<synchronous>, transform_indices = @transform_13, window_bounds = array<i64: 1, 32>}, {pipeline_mode = #tpu.pipeline_mode<synchronous>, transform_indices = @transform_14, window_bounds = array<i64: 1, 32>}, {pipeline_mode = #tpu.pipeline_mode<synchronous>, transform_indices = @transform_15, window_bounds = array<i64: 1, 32>}, {pipeline_mode = #tpu.pipeline_mode<synchronous>, transform_indices = @transform_16, window_bounds = array<i64: 1, 32>}, {transform_indices = @transform_17, window_bounds = array<i64: 2, 16, 32>}]} {
    %c0 = arith.constant 0 : index
    %c0_0 = arith.constant 0 : index
    %c0_1 = arith.constant 0 : index
    %0 = vector.load %arg1[%c0, %c0_0, %c0_1] : memref<2x16x32xf32, #tpu.memory_space<vmem>>, vector<2x16x32xf32>
    %c0_2 = arith.constant 0 : index
    %c0_3 = arith.constant 0 : index
    %c0_4 = arith.constant 0 : index
    %1 = vector.load %arg2[%c0_2, %c0_3, %c0_4] : memref<2x16x32xbf16, #tpu.memory_space<vmem>>, vector<2x16x32xbf16>
    %2 = arith.extf %1 : vector<2x16x32xbf16> to vector<2x16x32xf32>
    %c0_5 = arith.constant 0 : index
    %c0_6 = arith.constant 0 : index
    %c0_7 = arith.constant 0 : index
    %3 = vector.load %arg3[%c0_5, %c0_6, %c0_7] : memref<2x32x32xbf16, #tpu.memory_space<vmem>>, vector<2x32x32xbf16>
    %c0_8 = arith.constant 0 : index
    %c0_9 = arith.constant 0 : index
    %c0_10 = arith.constant 0 : index
    %4 = vector.load %arg4[%c0_8, %c0_9, %c0_10] : memref<2x32x32xbf16, #tpu.memory_space<vmem>>, vector<2x32x32xbf16>
    %5 = vector.shape_cast %0 : vector<2x16x32xf32> to vector<32x32xf32>
    %6 = vector.shape_cast %2 : vector<2x16x32xf32> to vector<32x32xf32>
    %7 = arith.addf %5, %6 : vector<32x32xf32>
    %8 = arith.truncf %7 : vector<32x32xf32> to vector<32x32xbf16>
    %c0_11 = arith.constant 0 : index
    %c0_12 = arith.constant 0 : index
    %9 = vector.load %arg6[%c0_11, %c0_12] : memref<32x32xbf16, #tpu.memory_space<vmem>>, vector<32x32xbf16>
    %cst = arith.constant dense<0.000000e+00> : vector<32x32xf32>
    %10 = tpu.matmul %8, %9, %cst {dimension_numbers = #tpu.dot_dimension_numbers<[1], [0], [0], [1], [0, 0, 1, 1], [], []>} : vector<32x32xbf16>, vector<32x32xbf16>, vector<32x32xf32> -> vector<32x32xf32>
    %c0_13 = arith.constant 0 : index
    %c0_14 = arith.constant 0 : index
    %11 = vector.load %arg7[%c0_13, %c0_14] : memref<1x32xf32, #tpu.memory_space<vmem>>, vector<1x32xf32>
    %12 = vector.broadcast %11 : vector<1x32xf32> to vector<32x32xf32>
    %13 = arith.addf %10, %12 : vector<32x32xf32>
    %cst_15 = arith.constant 0.353553385 : f32
    %14 = vector.broadcast %cst_15 : f32 to vector<32x32xf32>
    %15 = arith.mulf %13, %14 : vector<32x32xf32>
    %16 = arith.truncf %15 : vector<32x32xf32> to vector<32x32xbf16>
    %17 = vector.extract_strided_slice %16 {offsets = [0, 0], sizes = [32, 8], strides = [1, 1]} : vector<32x32xbf16> to vector<32x8xbf16>
    %18 = vector.shape_cast %17 : vector<32x8xbf16> to vector<2x16x8xbf16>
    %19 = vector.extract_strided_slice %16 {offsets = [0, 8], sizes = [32, 8], strides = [1, 1]} : vector<32x32xbf16> to vector<32x8xbf16>
    %20 = vector.shape_cast %19 : vector<32x8xbf16> to vector<2x16x8xbf16>
    %21 = vector.extract_strided_slice %16 {offsets = [0, 16], sizes = [32, 8], strides = [1, 1]} : vector<32x32xbf16> to vector<32x8xbf16>
    %22 = vector.shape_cast %21 : vector<32x8xbf16> to vector<2x16x8xbf16>
    %23 = vector.extract_strided_slice %16 {offsets = [0, 24], sizes = [32, 8], strides = [1, 1]} : vector<32x32xbf16> to vector<32x8xbf16>
    %24 = vector.shape_cast %23 : vector<32x8xbf16> to vector<2x16x8xbf16>
    %25 = tpu.concatenate %18, %20, %22, %24 in 0 : vector<2x16x8xbf16>, vector<2x16x8xbf16>, vector<2x16x8xbf16>, vector<2x16x8xbf16> -> vector<8x16x8xbf16>
    %26 = vector.extract_strided_slice %3 {offsets = [0, 0, 0], sizes = [2, 32, 8], strides = [1, 1, 1]} : vector<2x32x32xbf16> to vector<2x32x8xbf16>
    %27 = vector.extract_strided_slice %3 {offsets = [0, 0, 8], sizes = [2, 32, 8], strides = [1, 1, 1]} : vector<2x32x32xbf16> to vector<2x32x8xbf16>
    %28 = vector.extract_strided_slice %3 {offsets = [0, 0, 16], sizes = [2, 32, 8], strides = [1, 1, 1]} : vector<2x32x32xbf16> to vector<2x32x8xbf16>
    %29 = vector.extract_strided_slice %3 {offsets = [0, 0, 24], sizes = [2, 32, 8], strides = [1, 1, 1]} : vector<2x32x32xbf16> to vector<2x32x8xbf16>
    %30 = tpu.concatenate %26, %27, %28, %29 in 0 : vector<2x32x8xbf16>, vector<2x32x8xbf16>, vector<2x32x8xbf16>, vector<2x32x8xbf16> -> vector<8x32x8xbf16>
    %31 = vector.extract_strided_slice %4 {offsets = [0, 0, 0], sizes = [2, 32, 8], strides = [1, 1, 1]} : vector<2x32x32xbf16> to vector<2x32x8xbf16>
    %32 = vector.extract_strided_slice %4 {offsets = [0, 0, 8], sizes = [2, 32, 8], strides = [1, 1, 1]} : vector<2x32x32xbf16> to vector<2x32x8xbf16>
    %33 = vector.extract_strided_slice %4 {offsets = [0, 0, 16], sizes = [2, 32, 8], strides = [1, 1, 1]} : vector<2x32x32xbf16> to vector<2x32x8xbf16>
    %34 = vector.extract_strided_slice %4 {offsets = [0, 0, 24], sizes = [2, 32, 8], strides = [1, 1, 1]} : vector<2x32x32xbf16> to vector<2x32x8xbf16>
    %35 = tpu.concatenate %31, %32, %33, %34 in 0 : vector<2x32x8xbf16>, vector<2x32x8xbf16>, vector<2x32x8xbf16>, vector<2x32x8xbf16> -> vector<8x32x8xbf16>
    "tpu.trace_start"() <{level = 10 : i32, message = "nqd,nkd->nqk"}> : () -> ()
    %cst_16 = arith.constant dense<0.000000e+00> : vector<8x16x32xf32>
    %36 = tpu.matmul %25, %30, %cst_16 {dimension_numbers = #tpu.dot_dimension_numbers<[2], [2], [1], [1], [0, 0, 0, 1, 1, 1], [0], [0]>} : vector<8x16x8xbf16>, vector<8x32x8xbf16>, vector<8x16x32xf32> -> vector<8x16x32xf32>
    "tpu.trace_stop"() : () -> ()
    %37 = vector.shape_cast %36 : vector<8x16x32xf32> to vector<4x2x16x32xf32>
    %c0_17 = arith.constant 0 : index
    %c0_18 = arith.constant 0 : index
    %c0_19 = arith.constant 0 : index
    %38 = vector.load %arg5[%c0_17, %c0_18, %c0_19] : memref<2x1x32xf32, #tpu.memory_space<vmem>>, vector<2x1x32xf32>
    %39 = vector.shape_cast %38 : vector<2x1x32xf32> to vector<1x2x1x32xf32>
    %40 = vector.broadcast %39 : vector<1x2x1x32xf32> to vector<4x2x16x32xf32>
    %41 = arith.addf %37, %40 : vector<4x2x16x32xf32>
    %cst_20 = arith.constant dense<0xFF800000> : vector<4x2x16xf32>
    %42 = vector.multi_reduction <maximumf>, %41, %cst_20 [3] : vector<4x2x16x32xf32> to vector<4x2x16xf32>
    %43 = vector.shape_cast %42 : vector<4x2x16xf32> to vector<4x2x16x1xf32>
    %44 = vector.broadcast %43 : vector<4x2x16x1xf32> to vector<4x2x16x32xf32>
    %45 = arith.subf %41, %44 : vector<4x2x16x32xf32>
    %46 = math.exp %45 : vector<4x2x16x32xf32>
    %cst_21 = arith.constant dense<0.000000e+00> : vector<4x2x16xf32>
    %47 = vector.multi_reduction <add>, %46, %cst_21 [3] : vector<4x2x16x32xf32> to vector<4x2x16xf32>
    %48 = vector.shape_cast %47 : vector<4x2x16xf32> to vector<4x2x16x1xf32>
    %49 = tpu.reciprocal %48 {approx = true} : vector<4x2x16x1xf32> -> vector<4x2x16x1xf32>
    %50 = vector.broadcast %49 : vector<4x2x16x1xf32> to vector<4x2x16x32xf32>
    %51 = arith.mulf %46, %50 : vector<4x2x16x32xf32>
    %52 = arith.truncf %51 : vector<4x2x16x32xf32> to vector<4x2x16x32xbf16>
    %53 = vector.shape_cast %52 : vector<4x2x16x32xbf16> to vector<8x16x32xbf16>
    "tpu.trace_start"() <{level = 10 : i32, message = "nqk,nkd->nqd"}> : () -> ()
    %cst_22 = arith.constant dense<0.000000e+00> : vector<8x16x8xf32>
    %54 = tpu.matmul %53, %35, %cst_22 {dimension_numbers = #tpu.dot_dimension_numbers<[2], [1], [1], [2], [0, 0, 0, 1, 1, 2], [0], [0]>} : vector<8x16x32xbf16>, vector<8x32x8xbf16>, vector<8x16x8xf32> -> vector<8x16x8xf32>
    "tpu.trace_stop"() : () -> ()
    %55 = vector.extract_strided_slice %54 {offsets = [0, 0, 0], sizes = [2, 16, 8], strides = [1, 1, 1]} : vector<8x16x8xf32> to vector<2x16x8xf32>
    %56 = vector.shape_cast %55 : vector<2x16x8xf32> to vector<32x8xf32>
    %57 = vector.extract_strided_slice %54 {offsets = [2, 0, 0], sizes = [2, 16, 8], strides = [1, 1, 1]} : vector<8x16x8xf32> to vector<2x16x8xf32>
    %58 = vector.shape_cast %57 : vector<2x16x8xf32> to vector<32x8xf32>
    %59 = vector.extract_strided_slice %54 {offsets = [4, 0, 0], sizes = [2, 16, 8], strides = [1, 1, 1]} : vector<8x16x8xf32> to vector<2x16x8xf32>
    %60 = vector.shape_cast %59 : vector<2x16x8xf32> to vector<32x8xf32>
    %61 = vector.extract_strided_slice %54 {offsets = [6, 0, 0], sizes = [2, 16, 8], strides = [1, 1, 1]} : vector<8x16x8xf32> to vector<2x16x8xf32>
    %62 = vector.shape_cast %61 : vector<2x16x8xf32> to vector<32x8xf32>
    %63 = tpu.concatenate %56, %58, %60, %62 in 1 : vector<32x8xf32>, vector<32x8xf32>, vector<32x8xf32>, vector<32x8xf32> -> vector<32x32xf32>
    %64 = arith.truncf %63 : vector<32x32xf32> to vector<32x32xbf16>
    %c0_23 = arith.constant 0 : index
    %c0_24 = arith.constant 0 : index
    %65 = vector.load %arg8[%c0_23, %c0_24] : memref<32x32xbf16, #tpu.memory_space<vmem>>, vector<32x32xbf16>
    %cst_25 = arith.constant dense<0.000000e+00> : vector<32x32xf32>
    %66 = tpu.matmul %64, %65, %cst_25 {dimension_numbers = #tpu.dot_dimension_numbers<[1], [0], [0], [1], [0, 0, 1, 1], [], []>} : vector<32x32xbf16>, vector<32x32xbf16>, vector<32x32xf32> -> vector<32x32xf32>
    %c0_26 = arith.constant 0 : index
    %c0_27 = arith.constant 0 : index
    %67 = vector.load %arg9[%c0_26, %c0_27] : memref<1x32xf32, #tpu.memory_space<vmem>>, vector<1x32xf32>
    %68 = vector.broadcast %67 : vector<1x32xf32> to vector<32x32xf32>
    %69 = arith.addf %66, %68 : vector<32x32xf32>
    %70 = arith.addf %5, %69 : vector<32x32xf32>
    %c0_28 = arith.constant 0 : index
    %c0_29 = arith.constant 0 : index
    %71 = vector.load %arg14[%c0_28, %c0_29] : memref<1x32xf32, #tpu.memory_space<vmem>>, vector<1x32xf32>
    %c0_30 = arith.constant 0 : index
    %c0_31 = arith.constant 0 : index
    %72 = vector.load %arg15[%c0_30, %c0_31] : memref<1x32xf32, #tpu.memory_space<vmem>>, vector<1x32xf32>
    %cst_32 = arith.constant dense<0.000000e+00> : vector<32xf32>
    %73 = vector.multi_reduction <add>, %70, %cst_32 [1] : vector<32x32xf32> to vector<32xf32>
    %74 = vector.shape_cast %73 : vector<32xf32> to vector<32x1xf32>
    %cst_33 = arith.constant 3.200000e+01 : f32
    %75 = vector.broadcast %cst_33 : f32 to vector<32x1xf32>
    %76 = arith.divf %74, %75 : vector<32x1xf32>
    %77 = vector.broadcast %76 : vector<32x1xf32> to vector<32x32xf32>
    %78 = arith.subf %70, %77 : vector<32x32xf32>
    %79 = arith.mulf %78, %78 : vector<32x32xf32>
    %cst_34 = arith.constant dense<0.000000e+00> : vector<32xf32>
    %80 = vector.multi_reduction <add>, %79, %cst_34 [1] : vector<32x32xf32> to vector<32xf32>
    %81 = vector.shape_cast %80 : vector<32xf32> to vector<32x1xf32>
    %cst_35 = arith.constant 3.200000e+01 : f32
    %82 = vector.broadcast %cst_35 : f32 to vector<32x1xf32>
    %83 = arith.divf %81, %82 : vector<32x1xf32>
    %cst_36 = arith.constant 9.99999974E-6 : f32
    %84 = vector.broadcast %cst_36 : f32 to vector<32x1xf32>
    %85 = arith.addf %83, %84 : vector<32x1xf32>
    %86 = math.rsqrt %85 : vector<32x1xf32>
    %87 = vector.broadcast %86 : vector<32x1xf32> to vector<32x32xf32>
    %88 = arith.mulf %78, %87 : vector<32x32xf32>
    %89 = vector.broadcast %71 : vector<1x32xf32> to vector<32x32xf32>
    %90 = arith.mulf %88, %89 : vector<32x32xf32>
    %91 = vector.broadcast %72 : vector<1x32xf32> to vector<32x32xf32>
    %92 = arith.addf %90, %91 : vector<32x32xf32>
    %93 = arith.truncf %92 : vector<32x32xf32> to vector<32x32xbf16>
    %c0_37 = arith.constant 0 : index
    %c0_38 = arith.constant 0 : index
    %94 = vector.load %arg10[%c0_37, %c0_38] : memref<32x64xbf16, #tpu.memory_space<vmem>>, vector<32x64xbf16>
    %cst_39 = arith.constant dense<0.000000e+00> : vector<32x64xf32>
    %95 = tpu.matmul %93, %94, %cst_39 {dimension_numbers = #tpu.dot_dimension_numbers<[1], [0], [0], [1], [0, 0, 1, 1], [], []>} : vector<32x32xbf16>, vector<32x64xbf16>, vector<32x64xf32> -> vector<32x64xf32>
    %c0_40 = arith.constant 0 : index
    %c0_41 = arith.constant 0 : index
    %96 = vector.load %arg11[%c0_40, %c0_41] : memref<1x64xf32, #tpu.memory_space<vmem>>, vector<1x64xf32>
    %97 = vector.broadcast %96 : vector<1x64xf32> to vector<32x64xf32>
    %98 = arith.addf %95, %97 : vector<32x64xf32>
    %cst_42 = arith.constant 0.000000e+00 : f32
    %99 = vector.broadcast %cst_42 : f32 to vector<32x64xf32>
    %100 = arith.maximumf %98, %99 : vector<32x64xf32>
    %101 = arith.truncf %100 : vector<32x64xf32> to vector<32x64xbf16>
    %c0_43 = arith.constant 0 : index
    %c0_44 = arith.constant 0 : index
    %102 = vector.load %arg12[%c0_43, %c0_44] : memref<64x32xbf16, #tpu.memory_space<vmem>>, vector<64x32xbf16>
    %cst_45 = arith.constant dense<0.000000e+00> : vector<32x32xf32>
    %103 = tpu.matmul %101, %102, %cst_45 {dimension_numbers = #tpu.dot_dimension_numbers<[1], [0], [0], [1], [0, 0, 1, 1], [], []>} : vector<32x64xbf16>, vector<64x32xbf16>, vector<32x32xf32> -> vector<32x32xf32>
    %c0_46 = arith.constant 0 : index
    %c0_47 = arith.constant 0 : index
    %104 = vector.load %arg13[%c0_46, %c0_47] : memref<1x32xf32, #tpu.memory_space<vmem>>, vector<1x32xf32>
    %105 = vector.broadcast %104 : vector<1x32xf32> to vector<32x32xf32>
    %106 = arith.addf %103, %105 : vector<32x32xf32>
    %107 = arith.addf %92, %106 : vector<32x32xf32>
    %c0_48 = arith.constant 0 : index
    %c0_49 = arith.constant 0 : index
    %108 = vector.load %arg16[%c0_48, %c0_49] : memref<1x32xf32, #tpu.memory_space<vmem>>, vector<1x32xf32>
    %c0_50 = arith.constant 0 : index
    %c0_51 = arith.constant 0 : index
    %109 = vector.load %arg17[%c0_50, %c0_51] : memref<1x32xf32, #tpu.memory_space<vmem>>, vector<1x32xf32>
    %cst_52 = arith.constant dense<0.000000e+00> : vector<32xf32>
    %110 = vector.multi_reduction <add>, %107, %cst_52 [1] : vector<32x32xf32> to vector<32xf32>
    %111 = vector.shape_cast %110 : vector<32xf32> to vector<32x1xf32>
    %cst_53 = arith.constant 3.200000e+01 : f32
    %112 = vector.broadcast %cst_53 : f32 to vector<32x1xf32>
    %113 = arith.divf %111, %112 : vector<32x1xf32>
    %114 = vector.broadcast %113 : vector<32x1xf32> to vector<32x32xf32>
    %115 = arith.subf %107, %114 : vector<32x32xf32>
    %116 = arith.mulf %115, %115 : vector<32x32xf32>
    %cst_54 = arith.constant dense<0.000000e+00> : vector<32xf32>
    %117 = vector.multi_reduction <add>, %116, %cst_54 [1] : vector<32x32xf32> to vector<32xf32>
    %118 = vector.shape_cast %117 : vector<32xf32> to vector<32x1xf32>
    %cst_55 = arith.constant 3.200000e+01 : f32
    %119 = vector.broadcast %cst_55 : f32 to vector<32x1xf32>
    %120 = arith.divf %118, %119 : vector<32x1xf32>
    %cst_56 = arith.constant 9.99999974E-6 : f32
    %121 = vector.broadcast %cst_56 : f32 to vector<32x1xf32>
    %122 = arith.addf %120, %121 : vector<32x1xf32>
    %123 = math.rsqrt %122 : vector<32x1xf32>
    %124 = vector.broadcast %123 : vector<32x1xf32> to vector<32x32xf32>
    %125 = arith.mulf %115, %124 : vector<32x32xf32>
    %126 = vector.broadcast %108 : vector<1x32xf32> to vector<32x32xf32>
    %127 = arith.mulf %125, %126 : vector<32x32xf32>
    %128 = vector.broadcast %109 : vector<1x32xf32> to vector<32x32xf32>
    %129 = arith.addf %127, %128 : vector<32x32xf32>
    %130 = vector.shape_cast %129 : vector<32x32xf32> to vector<2x16x32xf32>
    %c0_57 = arith.constant 0 : index
    %c0_58 = arith.constant 0 : index
    %c0_59 = arith.constant 0 : index
    %131 = vector.load %arg18[%c0_57, %c0_58, %c0_59] : memref<2x16x32xf32, #tpu.memory_space<vmem>>, vector<2x16x32xf32>
    tpu.vector_store %arg18[%c0_57, %c0_58, %c0_59], %130 {strides = array<i32>} : memref<2x16x32xf32, #tpu.memory_space<vmem>>, vector<2x16x32xf32>,
    return
  }
  func.func @transform_0(%arg0: i32) -> (i32, i32, i32) {
    %c0_i32 = arith.constant 0 : i32
    %c0_i32_0 = arith.constant 0 : i32
    %c0_i32_1 = arith.constant 0 : i32
    return %c0_i32, %arg0, %c0_i32_0 : i32, i32, i32
  }
  func.func @transform_1(%arg0: i32) -> (i32, i32, i32) {
    %c0_i32 = arith.constant 0 : i32
    %c0_i32_0 = arith.constant 0 : i32
    %c0_i32_1 = arith.constant 0 : i32
    return %c0_i32, %arg0, %c0_i32_0 : i32, i32, i32
  }
  func.func @transform_2(%arg0: i32) -> (i32, i32, i32) {
    %c0_i32 = arith.constant 0 : i32
    %c0_i32_0 = arith.constant 0 : i32
    %c0_i32_1 = arith.constant 0 : i32
    %c0_i32_2 = arith.constant 0 : i32
    return %c0_i32, %c0_i32_0, %c0_i32_1 : i32, i32, i32
  }
  func.func @transform_3(%arg0: i32) -> (i32, i32, i32) {
    %c0_i32 = arith.constant 0 : i32
    %c0_i32_0 = arith.constant 0 : i32
    %c0_i32_1 = arith.constant 0 : i32
    %c0_i32_2 = arith.constant 0 : i32
    return %c0_i32, %c0_i32_0, %c0_i32_1 : i32, i32, i32
  }
  func.func @transform_4(%arg0: i32) -> (i32, i32, i32) {
    %c0_i32 = arith.constant 0 : i32
    %c0_i32_0 = arith.constant 0 : i32
    %c0_i32_1 = arith.constant 0 : i32
    %c0_i32_2 = arith.constant 0 : i32
    return %c0_i32, %c0_i32_0, %c0_i32_1 : i32, i32, i32
  }
  func.func @transform_5(%arg0: i32) -> (i32, i32) {
    %c0_i32 = arith.constant 0 : i32
    %c0_i32_0 = arith.constant 0 : i32
    %c0_i32_1 = arith.constant 0 : i32
    return %c0_i32, %c0_i32_0 : i32, i32
  }
  func.func @transform_6(%arg0: i32) -> (i32, i32) {
    %c0_i32 = arith.constant 0 : i32
    %c0_i32_0 = arith.constant 0 : i32
    %c0_i32_1 = arith.constant 0 : i32
    return %c0_i32, %c0_i32_0 : i32, i32
  }
  func.func @transform_7(%arg0: i32) -> (i32, i32) {
    %c0_i32 = arith.constant 0 : i32
    %c0_i32_0 = arith.constant 0 : i32
    %c0_i32_1 = arith.constant 0 : i32
    return %c0_i32, %c0_i32_0 : i32, i32
  }
  func.func @transform_8(%arg0: i32) -> (i32, i32) {
    %c0_i32 = arith.constant 0 : i32
    %c0_i32_0 = arith.constant 0 : i32
    %c0_i32_1 = arith.constant 0 : i32
    return %c0_i32, %c0_i32_0 : i32, i32
  }
  func.func @transform_9(%arg0: i32) -> (i32, i32) {
    %c0_i32 = arith.constant 0 : i32
    %c0_i32_0 = arith.constant 0 : i32
    %c0_i32_1 = arith.constant 0 : i32
    return %c0_i32, %c0_i32_0 : i32, i32
  }
  func.func @transform_10(%arg0: i32) -> (i32, i32) {
    %c0_i32 = arith.constant 0 : i32
    %c0_i32_0 = arith.constant 0 : i32
    %c0_i32_1 = arith.constant 0 : i32
    return %c0_i32, %c0_i32_0 : i32, i32
  }
  func.func @transform_11(%arg0: i32) -> (i32, i32) {
    %c0_i32 = arith.constant 0 : i32
    %c0_i32_0 = arith.constant 0 : i32
    %c0_i32_1 = arith.constant 0 : i32
    return %c0_i32, %c0_i32_0 : i32, i32
  }
  func.func @transform_12(%arg0: i32) -> (i32, i32) {
    %c0_i32 = arith.constant 0 : i32
    %c0_i32_0 = arith.constant 0 : i32
    %c0_i32_1 = arith.constant 0 : i32
    return %c0_i32, %c0_i32_0 : i32, i32
  }
  func.func @transform_13(%arg0: i32) -> (i32, i32) {
    %c0_i32 = arith.constant 0 : i32
    %c0_i32_0 = arith.constant 0 : i32
    %c0_i32_1 = arith.constant 0 : i32
    return %c0_i32, %c0_i32_0 : i32, i32
  }
  func.func @transform_14(%arg0: i32) -> (i32, i32) {
    %c0_i32 = arith.constant 0 : i32
    %c0_i32_0 = arith.constant 0 : i32
    %c0_i32_1 = arith.constant 0 : i32
    return %c0_i32, %c0_i32_0 : i32, i32
  }
  func.func @transform_15(%arg0: i32) -> (i32, i32) {
    %c0_i32 = arith.constant 0 : i32
    %c0_i32_0 = arith.constant 0 : i32
    %c0_i32_1 = arith.constant 0 : i32
    return %c0_i32, %c0_i32_0 : i32, i32
  }
  func.func @transform_16(%arg0: i32) -> (i32, i32) {
    %c0_i32 = arith.constant 0 : i32
    %c0_i32_0 = arith.constant 0 : i32
    %c0_i32_1 = arith.constant 0 : i32
    return %c0_i32, %c0_i32_0 : i32, i32
  }
  func.func @transform_17(%arg0: i32) -> (i32, i32, i32) {
    %c0_i32 = arith.constant 0 : i32
    %c0_i32_0 = arith.constant 0 : i32
    %c0_i32_1 = arith.constant 0 : i32
    return %c0_i32, %arg0, %c0_i32_0 : i32, i32, i32
  }
}

</mosaic_0001>

<llo_original>
// kernel: transformer_encoder_forward.4
$region0: #{transformer_encoder_forward.4}
  #allocation0 [shape = 'u32[]', space=smem, size = 0x4, offset = 0x4, fixed_abs, tag = 'smem constant byte address 0x4 - core index']
  #allocation1 [shape = 'u32[72,128]{1,0:T(1,128)}', space=vmem, size = 0x9000, scoped, tag = 'internal scratch']
  %s0 = inlined_call_operand.vmem [shape: f32[2,32,32], index: 0, kind: input, shape index: {}]
  %s1 = inlined_call_operand.vmem [shape: bf16[2,32,32], index: 1, kind: input, shape index: {}]
  %s2 = inlined_call_operand.vmem [shape: bf16[32,32], index: 2, kind: input, shape index: {}]
  %s3 = inlined_call_operand.vmem [shape: f32[1,32], index: 3, kind: input, shape index: {}]
  %s4 = inlined_call_operand.vmem [shape: bf16[32,32], index: 4, kind: input, shape index: {}]
  %s5 = inlined_call_operand.vmem [shape: f32[1,32], index: 5, kind: input, shape index: {}]
  %s6 = inlined_call_operand.vmem [shape: bf16[2,32,32], index: 6, kind: output, shape index: {0}]
  %s7 = inlined_call_operand.vmem [shape: bf16[2,32,32], index: 7, kind: output, shape index: {1}]
  %8 = xla_tuple %s6, %s7
  %s9 = sld [smem:[#allocation0]]
  $region218: #{transformer_encoder_forward.4} parent=0
    _
  %s11 = ssub.s32 1, %s9
  %s12 = scalar_select 0, %s11, %s9
  $region1: #{transformer_encoder_forward.4} parent=0
    #allocation2 [shape = 'u8[32768]{0}', space=vmem, size = 0x8000, scoped, tag = 'input window, operand 0']
    #allocation3 [shape = 'u8[16384]{0}', space=vmem, size = 0x4000, scoped, tag = 'input window, operand 1']
    #allocation4 [shape = 'u8[16384]{0}', space=vmem, size = 0x4000, scoped, tag = 'output window, operand 0']
    #allocation5 [shape = 'u8[16384]{0}', space=vmem, size = 0x4000, scoped, tag = 'output window, operand 1']
    loop: start=0, step=1, limit=4
    $region2: #{transformer_encoder_forward.4} parent=1 // loop_pre_header
      _
    $region3: #{transformer_encoder_forward.4} parent=1 // loop_header
      %s14 = sphi 0, %s18
      %p15 = scmp.ge.s32.totalorder %s14, 4
      %s24 = sphi 0, %s26
      %s27 = sphi 0, %s24
      %s28 = sphi 0, %s27
      %s44 = sphi 0, %s28
      %s50 = sphi 0, %s52
      %s53 = sphi 0, %s50
      %s54 = sphi 0, %s53
      %s70 = sphi 0, %s54
      %s74 = sphi 0, %s74
      %s76 = sphi 0, %s74
      %s77 = sphi 0, %s76
      %s91 = sphi 0, %s77
      %s95 = sphi 0, %s95
      %s97 = sphi 0, %s95
      %s98 = sphi 0, %s97
      %s112 = sphi 0, %s98
      %s116 = sphi 0, %s116
      %s118 = sphi 0, %s116
      %s119 = sphi 0, %s118
      %s133 = sphi 0, %s119
      %s137 = sphi 0, %s137
      %s139 = sphi 0, %s137
      %s140 = sphi 0, %s139
      %s154 = sphi 0, %s140
      %s160 = sphi 0, %s162
      %s163 = sphi 0, %s160
      %s164 = sphi 0, %s163
      %s180 = sphi 0, %s164
      %s186 = sphi 0, %s188
      %s189 = sphi 0, %s186
      %s190 = sphi 0, %s189
      %s206 = sphi 0, %s190
    $region4: #{transformer_encoder_forward.4} parent=1 // loop_header_branch
      %17 = sbr.rel (%p15) target = $region8
    $region5: #{transformer_encoder_forward.4} parent=1 // loop_body
      %s19 = ssub.s32 %s14, 1
      %s20 = ssub.s32 %s14, 2
      %s21 = sadd.s32 %s14, 1
      %s22 = ssub.s32 %s14, %s21
      %p23 = scmp.eq.s32.totalorder %s22, 0
      %s25 = sadd.s32 %s24, 1
      %s26 = scalar_select %p23, %s24, %s25
      %p29 = pneg %p23
      %p30 = scmp.eq.s32.totalorder %s14, 1
      %p31 = por %p29, %p30
      %p32 = scmp.ne.s32.totalorder %s24, %s27
      %p33 = scmp.eq.s32.totalorder %s14, 0
      %p34 = por %p32, %p33
      %p35 = scmp.ne.s32.totalorder %s24, %s27
      %p36 = scmp.eq.s32.totalorder %s19, 1
      %p37 = por %p35, %p36
      %p38 = scmp.ne.s32.totalorder %s27, %s28
      %p39 = scmp.eq.s32.totalorder %s19, 0
      %p40 = por %p38, %p39
      %p41 = scmp.ne.s32.totalorder %s27, %s28
      %p42 = scmp.eq.s32.totalorder %s20, 1
      %p43 = por %p41, %p42
      %p45 = scmp.ne.s32.totalorder %s28, %s44
      %p46 = scmp.eq.s32.totalorder %s20, 0
      %p47 = por %p45, %p46
      %s48 = ssub.s32 %s14, %s21
      %p49 = scmp.eq.s32.totalorder %s48, 0
      %s51 = sadd.s32 %s50, 1
      %s52 = scalar_select %p49, %s50, %s51
      %p55 = pneg %p49
      %p56 = scmp.eq.s32.totalorder %s14, 1
      %p57 = por %p55, %p56
      %p58 = scmp.ne.s32.totalorder %s50, %s53
      %p59 = scmp.eq.s32.totalorder %s14, 0
      %p60 = por %p58, %p59
      %p61 = scmp.ne.s32.totalorder %s50, %s53
      %p62 = scmp.eq.s32.totalorder %s19, 1
      %p63 = por %p61, %p62
      %p64 = scmp.ne.s32.totalorder %s53, %s54
      %p65 = scmp.eq.s32.totalorder %s19, 0
      %p66 = por %p64, %p65
      %p67 = scmp.ne.s32.totalorder %s53, %s54
      %p68 = scmp.eq.s32.totalorder %s20, 1
      %p69 = por %p67, %p68
      %p71 = scmp.ne.s32.totalorder %s54, %s70
      %p72 = scmp.eq.s32.totalorder %s20, 0
      %p73 = por %p71, %p72
      %s75 = sadd.s32 %s74, 1
      %p78 = scmp.eq.s32.totalorder %s14, 1
      %p79 = scmp.ne.s32.totalorder %s74, %s76
      %p80 = scmp.eq.s32.totalorder %s14, 0
      %p81 = por %p79, %p80
      %p82 = scmp.ne.s32.totalorder %s74, %s76
      %p83 = scmp.eq.s32.totalorder %s19, 1
      %p84 = por %p82, %p83
      %p85 = scmp.ne.s32.totalorder %s76, %s77
      %p86 = scmp.eq.s32.totalorder %s19, 0
      %p87 = por %p85, %p86
      %p88 = scmp.ne.s32.totalorder %s76, %s77
      %p89 = scmp.eq.s32.totalorder %s20, 1
      %p90 = por %p88, %p89
      %p92 = scmp.ne.s32.totalorder %s77, %s91
      %p93 = scmp.eq.s32.totalorder %s20, 0
      %p94 = por %p92, %p93
      %s96 = sadd.s32 %s95, 1
      %p99 = scmp.eq.s32.totalorder %s14, 1
      %p100 = scmp.ne.s32.totalorder %s95, %s97
      %p101 = scmp.eq.s32.totalorder %s14, 0
      %p102 = por %p100, %p101
      %p103 = scmp.ne.s32.totalorder %s95, %s97
      %p104 = scmp.eq.s32.totalorder %s19, 1
      %p105 = por %p103, %p104
      %p106 = scmp.ne.s32.totalorder %s97, %s98
      %p107 = scmp.eq.s32.totalorder %s19, 0
      %p108 = por %p106, %p107
      %p109 = scmp.ne.s32.totalorder %s97, %s98
      %p110 = scmp.eq.s32.totalorder %s20, 1
      %p111 = por %p109, %p110
      %p113 = scmp.ne.s32.totalorder %s98, %s112
      %p114 = scmp.eq.s32.totalorder %s20, 0
      %p115 = por %p113, %p114
      %s117 = sadd.s32 %s116, 1
      %p120 = scmp.eq.s32.totalorder %s14, 1
      %p121 = scmp.ne.s32.totalorder %s116, %s118
      %p122 = scmp.eq.s32.totalorder %s14, 0
      %p123 = por %p121, %p122
      %p124 = scmp.ne.s32.totalorder %s116, %s118
      %p125 = scmp.eq.s32.totalorder %s19, 1
      %p126 = por %p124, %p125
      %p127 = scmp.ne.s32.totalorder %s118, %s119
      %p128 = scmp.eq.s32.totalorder %s19, 0
      %p129 = por %p127, %p128
      %p130 = scmp.ne.s32.totalorder %s118, %s119
      %p131 = scmp.eq.s32.totalorder %s20, 1
      %p132 = por %p130, %p131
      %p134 = scmp.ne.s32.totalorder %s119, %s133
      %p135 = scmp.eq.s32.totalorder %s20, 0
      %p136 = por %p134, %p135
      %s138 = sadd.s32 %s137, 1
      %p141 = scmp.eq.s32.totalorder %s14, 1
      %p142 = scmp.ne.s32.totalorder %s137, %s139
      %p143 = scmp.eq.s32.totalorder %s14, 0
      %p144 = por %p142, %p143
      %p145 = scmp.ne.s32.totalorder %s137, %s139
      %p146 = scmp.eq.s32.totalorder %s19, 1
      %p147 = por %p145, %p146
      %p148 = scmp.ne.s32.totalorder %s139, %s140
      %p149 = scmp.eq.s32.totalorder %s19, 0
      %p150 = por %p148, %p149
      %p151 = scmp.ne.s32.totalorder %s139, %s140
      %p152 = scmp.eq.s32.totalorder %s20, 1
      %p153 = por %p151, %p152
      %p155 = scmp.ne.s32.totalorder %s140, %s154
      %p156 = scmp.eq.s32.totalorder %s20, 0
      %p157 = por %p155, %p156
      %s158 = ssub.s32 %s14, %s21
      %p159 = scmp.eq.s32.totalorder %s158, 0
      %s161 = sadd.s32 %s160, 1
      %s162 = scalar_select %p159, %s160, %s161
      %p165 = pneg %p159
      %p166 = scmp.eq.s32.totalorder %s14, 1
      %p167 = por %p165, %p166
      %p168 = scmp.ne.s32.totalorder %s160, %s163
      %p169 = scmp.eq.s32.totalorder %s14, 0
      %p170 = por %p168, %p169
      %p171 = scmp.ne.s32.totalorder %s160, %s163
      %p172 = scmp.eq.s32.totalorder %s19, 1
      %p173 = por %p171, %p172
      %p174 = scmp.ne.s32.totalorder %s163, %s164
      %p175 = scmp.eq.s32.totalorder %s19, 0
      %p176 = por %p174, %p175
      %p177 = scmp.ne.s32.totalorder %s163, %s164
      %p178 = scmp.eq.s32.totalorder %s20, 1
      %p179 = por %p177, %p178
      %p181 = scmp.ne.s32.totalorder %s164, %s180
      %p182 = scmp.eq.s32.totalorder %s20, 0
      %p183 = por %p181, %p182
      %s184 = ssub.s32 %s14, %s21
      %p185 = scmp.eq.s32.totalorder %s184, 0
      %s187 = sadd.s32 %s186, 1
      %s188 = scalar_select %p185, %s186, %s187
      %p191 = pneg %p185
      %p192 = scmp.eq.s32.totalorder %s14, 1
      %p193 = por %p191, %p192
      %p194 = scmp.ne.s32.totalorder %s186, %s189
      %p195 = scmp.eq.s32.totalorder %s14, 0
      %p196 = por %p194, %p195
      %p197 = scmp.ne.s32.totalorder %s186, %s189
      %p198 = scmp.eq.s32.totalorder %s19, 1
      %p199 = por %p197, %p198
      %p200 = scmp.ne.s32.totalorder %s189, %s190
      %p201 = scmp.eq.s32.totalorder %s19, 0
      %p202 = por %p200, %p201
      %p203 = scmp.ne.s32.totalorder %s189, %s190
      %p204 = scmp.eq.s32.totalorder %s20, 1
      %p205 = por %p203, %p204
      %p207 = scmp.ne.s32.totalorder %s190, %s206
      %p208 = scmp.eq.s32.totalorder %s20, 0
      %p209 = por %p207, %p208
      %p210 = scmp.le.s32.totalorder 1, %s14
      %p211 = scmp.lt.s32.totalorder %s14, 3
      %p212 = pnand %p210, %p211
      %p213 = pneg %p212
      // Predicated region
      $region9: #{transformer_encoder_forward.4} parent=5 // pred_check
        _
      $region10: #{transformer_encoder_forward.4} parent=5 // pred_check_branch
        %215 = sbr.rel (%p212) target = $region12
      $region11: #{transformer_encoder_forward.4} parent=5 // pred_region
        %s216 = ssub.s32 %s14, 1
        // Predicated region
        $region13: #{transformer_encoder_forward.4} parent=11 // pred_check
          %p217 = pneg %p87
        $region14: #{transformer_encoder_forward.4} parent=11 // pred_check_branch
          %219 = sbr.rel (%p217) target = $region16
        $region15: #{transformer_encoder_forward.4} parent=11 // pred_region
          _
        $region16: #{transformer_encoder_forward.4} parent=11 // pred_fallthru
          _
        // Predicated region
        $region17: #{transformer_encoder_forward.4} parent=11 // pred_check
          %p220 = pneg %p108
        $region18: #{transformer_encoder_forward.4} parent=11 // pred_check_branch
          %222 = sbr.rel (%p220) target = $region20
        $region19: #{transformer_encoder_forward.4} parent=11 // pred_region
          _
        $region20: #{transformer_encoder_forward.4} parent=11 // pred_fallthru
          _
        // Predicated region
        $region21: #{transformer_encoder_forward.4} parent=11 // pred_check
          %p223 = pneg %p129
        $region22: #{transformer_encoder_forward.4} parent=11 // pred_check_branch
          %225 = sbr.rel (%p223) target = $region24
        $region23: #{transformer_encoder_forward.4} parent=11 // pred_region
          _
        $region24: #{transformer_encoder_forward.4} parent=11 // pred_fallthru
          _
        // Predicated region
        $region25: #{transformer_encoder_forward.4} parent=11 // pred_check
          %p226 = pneg %p150
        $region26: #{transformer_encoder_forward.4} parent=11 // pred_check_branch
          %228 = sbr.rel (%p226) target = $region28
        $region27: #{transformer_encoder_forward.4} parent=11 // pred_region
          _
        $region28: #{transformer_encoder_forward.4} parent=11 // pred_fallthru
          _
      $region12: #{transformer_encoder_forward.4} parent=5 // pred_fallthru
        _
      %p229 = scmp.lt.s32.totalorder %s14, 2
      // Predicated region
      $region29: #{transformer_encoder_forward.4} parent=5 // pred_check
        %p230 = pneg %p229
      $region30: #{transformer_encoder_forward.4} parent=5 // pred_check_branch
        %232 = sbr.rel (%p230) target = $region32
      $region31: #{transformer_encoder_forward.4} parent=5 // pred_region
        // Predicated region
        $region33: #{transformer_encoder_forward.4} parent=31 // pred_check
          %p233 = pneg %p34
        $region34: #{transformer_encoder_forward.4} parent=31 // pred_check_branch
          %235 = sbr.rel (%p233) target = $region36
        $region35: #{transformer_encoder_forward.4} parent=31 // pred_region
          %s236 = sand.u32 %s24, 1
          %s237 = sand.u32 %s24, 1
          %s238 = smul.addr %s237, 32
          %s239 = scalar_lea.vmem [#allocation2], %s238
          %s240 = smul.u32 2, %s14
          %s241 = smul.addr %s240, 8
          %s242 = scalar_lea.vmem %s0, %s241
          // Predicated region
          $region37: #{transformer_encoder_forward.4} parent=35 // pred_check
            _
          $region38: #{transformer_encoder_forward.4} parent=35 // pred_check_branch
            %244 = sbr.rel (0) target = $region40
          $region39: #{transformer_encoder_forward.4} parent=35 // pred_region
            // Predicated region
            $region41: #{transformer_encoder_forward.4} parent=39 // pred_check
              _
            $region42: #{transformer_encoder_forward.4} parent=39 // pred_check_branch
              %246 = sbr.rel (0) target = $region44
            $region43: #{transformer_encoder_forward.4} parent=39 // pred_region
              // Predicated region
              $region56: #{transformer_encoder_forward.4} parent=43 // pred_check
                _
              $region57: #{transformer_encoder_forward.4} parent=43 // pred_check_branch
                %268 = sbr.rel (0) target = $region59
              $region58: #{transformer_encoder_forward.4} parent=43 // pred_region
                loop: start=0, step=1, limit=1
                $region60: #{transformer_encoder_forward.4} parent=58 // loop_pre_header
                  _
                $region61: #{transformer_encoder_forward.4} parent=58 // loop_header
                  %s270 = sphi 0, %s274
                  %p271 = scmp.ge.s32.totalorder %s270, 1
                  %s275 = sphi %s242, %s242
                  %s276 = sphi %s239, %s239
                $region62: #{transformer_encoder_forward.4} parent=58 // loop_header_branch
                  %273 = sbr.rel (%p271) target = $region66
                $region63: #{transformer_encoder_forward.4} parent=58 // loop_body
                  %v277 = vld [vmem:[%s275] sm:$0xff]
                  %278 = vst [vmem:[%s276] sm:$0xff] %v277
                  %v279 = vld [vmem:[%s275 + $0x8] sm:$0xff]
                  %280 = vst [vmem:[%s276 + $0x8] sm:$0xff] %v279
                  %v281 = vld [vmem:[%s275 + $0x20] sm:$0xff]
                  %282 = vst [vmem:[%s276 + $0x10] sm:$0xff] %v281
                  %v283 = vld [vmem:[%s275 + $0x28] sm:$0xff]
                  %284 = vst [vmem:[%s276 + $0x18] sm:$0xff] %v283
                $region64: #{transformer_encoder_forward.4} parent=58 // loop_footer
                  %s274 = sadd.s32 1, %s270
                $region65: #{transformer_encoder_forward.4} parent=58 // loop_footer_branch
                  %269 = sbr.rel target = $region61
                $region66: #{transformer_encoder_forward.4} parent=58 // loop_exit
                  _
              $region59: #{transformer_encoder_forward.4} parent=43 // pred_fallthru
                _
              // Predicated region
              $region67: #{transformer_encoder_forward.4} parent=43 // pred_check
                _
              $region68: #{transformer_encoder_forward.4} parent=43 // pred_check_branch
                %286 = sbr.rel target = $region70
              $region69: #{transformer_encoder_forward.4} parent=43 // pred_region
                _
              $region70: #{transformer_encoder_forward.4} parent=43 // pred_fallthru
                _
            $region44: #{transformer_encoder_forward.4} parent=39 // pred_fallthru
              _
            // Predicated region
            $region45: #{transformer_encoder_forward.4} parent=39 // pred_check
              _
            $region46: #{transformer_encoder_forward.4} parent=39 // pred_check_branch
              %248 = sbr.rel target = $region48
            $region47: #{transformer_encoder_forward.4} parent=39 // pred_region
              %s250 = ssub.s32 256, 1
              loop: start=0, step=1, limit=1
              $region49: #{transformer_encoder_forward.4} parent=47 // loop_pre_header
                _
              $region50: #{transformer_encoder_forward.4} parent=47 // loop_header
                %s252 = sphi 0, %s256
                %p253 = scmp.ge.s32.totalorder %s252, 1
                %s257 = sphi %s242, %s242
                %s258 = sphi %s239, %s239
              $region51: #{transformer_encoder_forward.4} parent=47 // loop_header_branch
                %255 = sbr.rel (%p253) target = $region55
              $region52: #{transformer_encoder_forward.4} parent=47 // loop_body
                %v259 = vld [vmem:[%s257] sm:%s250]
                %260 = vst [vmem:[%s258] sm:%s250] %v259
                %v261 = vld [vmem:[%s257 + $0x8] sm:%s250]
                %262 = vst [vmem:[%s258 + $0x8] sm:%s250] %v261
                %v263 = vld [vmem:[%s257 + $0x20] sm:%s250]
                %264 = vst [vmem:[%s258 + $0x10] sm:%s250] %v263
                %v265 = vld [vmem:[%s257 + $0x28] sm:%s250]
                %266 = vst [vmem:[%s258 + $0x18] sm:%s250] %v265
              $region53: #{transformer_encoder_forward.4} parent=47 // loop_footer
                %s256 = sadd.s32 1, %s252
              $region54: #{transformer_encoder_forward.4} parent=47 // loop_footer_branch
                %251 = sbr.rel target = $region50
              $region55: #{transformer_encoder_forward.4} parent=47 // loop_exit
                _
            $region48: #{transformer_encoder_forward.4} parent=39 // pred_fallthru
              _
          $region40: #{transformer_encoder_forward.4} parent=35 // pred_fallthru
            _
          %287 = vnop
        $region36: #{transformer_encoder_forward.4} parent=31 // pred_fallthru
          _
        // Predicated region
        $region71: #{transformer_encoder_forward.4} parent=31 // pred_check
          %p288 = pneg %p60
        $region72: #{transformer_encoder_forward.4} parent=31 // pred_check_branch
          %290 = sbr.rel (%p288) target = $region74
        $region73: #{transformer_encoder_forward.4} parent=31 // pred_region
          %s291 = sand.u32 %s50, 1
          %s292 = sand.u32 %s50, 1
          %s293 = smul.addr %s292, 16
          %s294 = scalar_lea.vmem [#allocation3], %s293
          %s295 = smul.u32 2, %s14
          %s296 = smul.addr %s295, 4
          %s297 = scalar_lea.vmem %s1, %s296
          // Predicated region
          $region75: #{transformer_encoder_forward.4} parent=73 // pred_check
            _
          $region76: #{transformer_encoder_forward.4} parent=73 // pred_check_branch
            %299 = sbr.rel (0) target = $region78
          $region77: #{transformer_encoder_forward.4} parent=73 // pred_region
            // Predicated region
            $region79: #{transformer_encoder_forward.4} parent=77 // pred_check
              _
            $region80: #{transformer_encoder_forward.4} parent=77 // pred_check_branch
              %301 = sbr.rel target = $region82
            $region81: #{transformer_encoder_forward.4} parent=77 // pred_region
              // Predicated region
              $region94: #{transformer_encoder_forward.4} parent=81 // pred_check
                _
              $region95: #{transformer_encoder_forward.4} parent=81 // pred_check_branch
                %323 = sbr.rel (0) target = $region97
              $region96: #{transformer_encoder_forward.4} parent=81 // pred_region
                loop: start=0, step=1, limit=1
                $region98: #{transformer_encoder_forward.4} parent=96 // loop_pre_header
                  _
                $region99: #{transformer_encoder_forward.4} parent=96 // loop_header
                  %s325 = sphi 0, %s329
                  %p326 = scmp.ge.s32.totalorder %s325, 1
                  %s330 = sphi %s297, %s297
                  %s331 = sphi %s294, %s294
                $region100: #{transformer_encoder_forward.4} parent=96 // loop_header_branch
                  %328 = sbr.rel (%p326) target = $region104
                $region101: #{transformer_encoder_forward.4} parent=96 // loop_body
                  _
                $region102: #{transformer_encoder_forward.4} parent=96 // loop_footer
                  %s329 = sadd.s32 1, %s325
                $region103: #{transformer_encoder_forward.4} parent=96 // loop_footer_branch
                  %324 = sbr.rel target = $region99
                $region104: #{transformer_encoder_forward.4} parent=96 // loop_exit
                  _
                %s333 = ssub.s32 16, 1
                loop: start=0, step=1, limit=1
                $region105: #{transformer_encoder_forward.4} parent=96 // loop_pre_header
                  _
                $region106: #{transformer_encoder_forward.4} parent=96 // loop_header
                  %s335 = sphi 0, %s339
                  %p336 = scmp.ge.s32.totalorder %s335, 1
                  %s340 = sphi %s297, %s297
                  %s341 = sphi %s294, %s294
                $region107: #{transformer_encoder_forward.4} parent=96 // loop_header_branch
                  %338 = sbr.rel (%p336) target = $region111
                $region108: #{transformer_encoder_forward.4} parent=96 // loop_body
                  %v342 = vld [vmem:[%s340] sm:%s333]
                  %343 = vst [vmem:[%s341] sm:%s333] %v342
                  %v344 = vld [vmem:[%s340 + $0x4] sm:%s333]
                  %345 = vst [vmem:[%s341 + $0x4] sm:%s333] %v344
                  %v346 = vld [vmem:[%s340 + $0x10] sm:%s333]
                  %347 = vst [vmem:[%s341 + $0x8] sm:%s333] %v346
                  %v348 = vld [vmem:[%s340 + $0x14] sm:%s333]
                  %349 = vst [vmem:[%s341 + $0xc] sm:%s333] %v348
                $region109: #{transformer_encoder_forward.4} parent=96 // loop_footer
                  %s339 = sadd.s32 1, %s335
                $region110: #{transformer_encoder_forward.4} parent=96 // loop_footer_branch
                  %334 = sbr.rel target = $region106
                $region111: #{transformer_encoder_forward.4} parent=96 // loop_exit
                  _
              $region97: #{transformer_encoder_forward.4} parent=81 // pred_fallthru
                _
            $region82: #{transformer_encoder_forward.4} parent=77 // pred_fallthru
              _
            // Predicated region
            $region83: #{transformer_encoder_forward.4} parent=77 // pred_check
              _
            $region84: #{transformer_encoder_forward.4} parent=77 // pred_check_branch
              %303 = sbr.rel (0) target = $region86
            $region85: #{transformer_encoder_forward.4} parent=77 // pred_region
              %s305 = ssub.s32 16, 1
              loop: start=0, step=1, limit=1
              $region87: #{transformer_encoder_forward.4} parent=85 // loop_pre_header
                _
              $region88: #{transformer_encoder_forward.4} parent=85 // loop_header
                %s307 = sphi 0, %s311
                %p308 = scmp.ge.s32.totalorder %s307, 1
                %s312 = sphi %s297, %s297
                %s313 = sphi %s294, %s294
              $region89: #{transformer_encoder_forward.4} parent=85 // loop_header_branch
                %310 = sbr.rel (%p308) target = $region93
              $region90: #{transformer_encoder_forward.4} parent=85 // loop_body
                %v314 = vld [vmem:[%s312] sm:%s305]
                %315 = vst [vmem:[%s313] sm:%s305] %v314
                %v316 = vld [vmem:[%s312 + $0x4] sm:%s305]
                %317 = vst [vmem:[%s313 + $0x4] sm:%s305] %v316
                %v318 = vld [vmem:[%s312 + $0x10] sm:%s305]
                %319 = vst [vmem:[%s313 + $0x8] sm:%s305] %v318
                %v320 = vld [vmem:[%s312 + $0x14] sm:%s305]
                %321 = vst [vmem:[%s313 + $0xc] sm:%s305] %v320
              $region91: #{transformer_encoder_forward.4} parent=85 // loop_footer
                %s311 = sadd.s32 1, %s307
              $region92: #{transformer_encoder_forward.4} parent=85 // loop_footer_branch
                %306 = sbr.rel target = $region88
              $region93: #{transformer_encoder_forward.4} parent=85 // loop_exit
                _
            $region86: #{transformer_encoder_forward.4} parent=77 // pred_fallthru
              _
          $region78: #{transformer_encoder_forward.4} parent=73 // pred_fallthru
            _
          %350 = vnop
        $region74: #{transformer_encoder_forward.4} parent=31 // pred_fallthru
          _
      $region32: #{transformer_encoder_forward.4} parent=5 // pred_fallthru
        _
      %p351 = scmp.le.s32.totalorder 1, %s14
      %p352 = scmp.lt.s32.totalorder %s14, 3
      %p353 = pnand %p351, %p352
      %p354 = pneg %p353
      // Predicated region
      $region112: #{transformer_encoder_forward.4} parent=5 // pred_check
        _
      $region113: #{transformer_encoder_forward.4} parent=5 // pred_check_branch
        %356 = sbr.rel (%p353) target = $region115
      $region114: #{transformer_encoder_forward.4} parent=5 // pred_region
        %s357 = ssub.s32 %s14, 1
        %s358 = sand.u32 %s27, 1
        %s359 = sand.u32 %s27, 1
        %s360 = smul.addr %s359, 32
        %s361 = scalar_lea.vmem [#allocation2], %s360
        // Predicated region
        $region116: #{transformer_encoder_forward.4} parent=114 // pred_check
          %p362 = pneg %p40
        $region117: #{transformer_encoder_forward.4} parent=114 // pred_check_branch
          %364 = sbr.rel (%p362) target = $region119
        $region118: #{transformer_encoder_forward.4} parent=114 // pred_region
          _
        $region119: #{transformer_encoder_forward.4} parent=114 // pred_fallthru
          _
        %s365 = sand.u32 %s53, 1
        %s366 = sand.u32 %s53, 1
        %s367 = smul.addr %s366, 16
        %s368 = scalar_lea.vmem [#allocation3], %s367
        // Predicated region
        $region120: #{transformer_encoder_forward.4} parent=114 // pred_check
          %p369 = pneg %p66
        $region121: #{transformer_encoder_forward.4} parent=114 // pred_check_branch
          %371 = sbr.rel (%p369) target = $region123
        $region122: #{transformer_encoder_forward.4} parent=114 // pred_region
          _
        $region123: #{transformer_encoder_forward.4} parent=114 // pred_fallthru
          _
        %s372 = sand.u32 %s27, 1
        %s373 = sand.u32 %s27, 1
        %s374 = smul.addr %s373, 32
        %s375 = scalar_lea.vmem [#allocation2], %s374
        %p376 = pneg %p40
        %p377 = pneg %p37
        %s378 = sand.u32 %s53, 1
        %s379 = sand.u32 %s53, 1
        %s380 = smul.addr %s379, 16
        %s381 = scalar_lea.vmem [#allocation3], %s380
        %p382 = pneg %p66
        %p383 = pneg %p63
        %p384 = pneg %p87
        %p385 = pneg %p84
        %p386 = pneg %p108
        %p387 = pneg %p105
        %p388 = pneg %p129
        %p389 = pneg %p126
        %p390 = pneg %p150
        %p391 = pneg %p147
        %p392 = pneg %p176
        %p393 = pneg %p173
        %s394 = sand.u32 %s163, 1
        %s395 = sand.u32 %s163, 1
        %s396 = smul.addr %s395, 16
        %s397 = scalar_lea.vmem [#allocation4], %s396
        %p398 = pneg %p202
        %p399 = pneg %p199
        %s400 = sand.u32 %s189, 1
        %s401 = sand.u32 %s189, 1
        %s402 = smul.addr %s401, 16
        %s403 = scalar_lea.vmem [#allocation5], %s402
        %s404 = smul.u32 2, %s19
        %s405 = smul.u32 2, %s19
        %s406 = smul.u32 2, %s19
        %s407 = smul.u32 2, %s19
        %v409 = vld [vmem:[%s361] sm:$0xff]
        %v410 = vld [vmem:[%s361 + $0x8] sm:$0xff]
        %v411 = vld [vmem:[%s361 + $0x10] sm:$0xff]
        %v412 = vld [vmem:[%s361 + $0x18] sm:$0xff]
        %v413 = vld [vmem:[%s368] sm:$0xf]
        %v414 = vld [vmem:[%s368 + $0x4] sm:$0xf]
        %v415 = vld [vmem:[%s368 + $0x8] sm:$0xf]
        %v416 = vld [vmem:[%s368 + $0xc] sm:$0xf]
        %v417 = vunpack.c.l.bf16 %v413
        %v418 = vunpack.c.l.bf16 %v414
        %v419 = vunpack.c.l.bf16 %v415
        %v420 = vunpack.c.l.bf16 %v416
        %v421 = vadd.f32 %v409, %v417
        %v422 = vadd.f32 %v410, %v418
        %v423 = vadd.f32 %v411, %v419
        %v424 = vadd.f32 %v412, %v420
        %v425 = vpack.c.bf16 %v422, %v421
        %v426 = vpack.c.bf16 %v424, %v423
        %v427 = vld [vmem:[%s2] sm:$0xf]
        %v428 = vld [vmem:[%s2 + $0x4] sm:$0xf]
        %v429 = vld [vmem:[%s2 + $0x8] sm:$0xf]
        %v430 = vld [vmem:[%s2 + $0xc] sm:$0xf]
        %v431 = vld [vmem:[%s3] sm:$0x1]
        %v433 = vperm.slane %v431, 0
        %v439 = vunpack.c.l.b16 %v427
        %v440 = vunpack.c.l.b16 %v428
        %v441 = vunpack.c.l.b16 %v429
        %v442 = vunpack.c.l.b16 %v430
        %v443 = vpack.c.b16 %v440, %v439
        %v444 = vpack.c.b16 %v442, %v441
        %vm447 = vcmask 261120
        %v449 = vsel %vm447, %v425, 0
        %v452 = vsel %vm447, %v426, 0
        %454 = vmatpush.bf16.msra.mxu0 0
        %455 = vmatpush.bf16.msra.mxu0 0
        %456 = vmatpush.bf16.msra.mxu0 0
        %457 = vmatpush.bf16.msra.mxu0 0
        %458 = vmatpush.bf16.msra.mxu0 0
        %459 = vmatpush.bf16.msra.mxu0 0
        %460 = vmatpush.bf16.msra.mxu0 %v444
        %461 = vmatpush.bf16.msra.mxu0 %v443
        %462 = vmatmul.bf16.gmra.mxu0 %v449
        %v463 = vpop.f32.mrf.mxu0
        %v464 = vadd.f32 %v433, %v463
        %v465 = vpop.f32.mrf.mxu0
        %v466 = vadd.f32 %v433, %v465
        %467 = vmatmul.bf16.gmra.mxu0 %v452
        %v468 = vpop.f32.mrf.mxu0
        %v469 = vadd.f32 %v433, %v468
        %v470 = vpop.f32.mrf.mxu0
        %v471 = vadd.f32 %v433, %v470
        %472 = vdwg.mxu0
        %v473 = vpack.c.bf16 %v410, %v409
        %v474 = vpack.c.bf16 %v412, %v411
        %v475 = vld [vmem:[%s4] sm:$0xf]
        %v476 = vld [vmem:[%s4 + $0x4] sm:$0xf]
        %v477 = vld [vmem:[%s4 + $0x8] sm:$0xf]
        %v478 = vld [vmem:[%s4 + $0xc] sm:$0xf]
        %v479 = vld [vmem:[%s5] sm:$0x1]
        %v481 = vperm.slane %v479, 0
        %v487 = vunpack.c.l.b16 %v475
        %v488 = vunpack.c.l.b16 %v476
        %v489 = vunpack.c.l.b16 %v477
        %v490 = vunpack.c.l.b16 %v478
        %v491 = vpack.c.b16 %v488, %v487
        %v492 = vpack.c.b16 %v490, %v489
        %v496 = vsel %vm447, %v473, 0
        %v499 = vsel %vm447, %v474, 0
        %501 = vmatpush.bf16.msra.mxu0 0
        %502 = vmatpush.bf16.msra.mxu0 0
        %503 = vmatpush.bf16.msra.mxu0 0
        %504 = vmatpush.bf16.msra.mxu0 0
        %505 = vmatpush.bf16.msra.mxu0 0
        %506 = vmatpush.bf16.msra.mxu0 0
        %507 = vmatpush.bf16.msra.mxu0 %v492
        %508 = vmatpush.bf16.msra.mxu0 %v491
        %509 = vmatmul.bf16.gmra.mxu0 %v496
        %v510 = vpop.f32.mrf.mxu0
        %v511 = vadd.f32 %v481, %v510
        %v512 = vpop.f32.mrf.mxu0
        %v513 = vadd.f32 %v481, %v512
        %514 = vmatmul.bf16.gmra.mxu0 %v499
        %v515 = vpop.f32.mrf.mxu0
        %v516 = vadd.f32 %v481, %v515
        %v517 = vpop.f32.mrf.mxu0
        %v518 = vadd.f32 %v481, %v517
        %519 = vdwg.mxu0
        %v520 = vpack.c.bf16 %v464, %v464
        %v521 = vpack.c.bf16 %v466, %v466
        %v522 = vpack.c.bf16 %v469, %v469
        %v523 = vpack.c.bf16 %v471, %v471
        %vm524 = vcmask 257024
        %525 = vst.msk [vmem:[%s397] sm:$0xf] %vm524, %v520
        %526 = vst.msk [vmem:[%s397 + $0x4] sm:$0xf] %vm524, %v521
        %527 = vst.msk [vmem:[%s397 + $0x8] sm:$0xf] %vm524, %v522
        %528 = vst.msk [vmem:[%s397 + $0xc] sm:$0xf] %vm524, %v523
        %v529 = vpack.c.bf16 %v511, %v511
        %v530 = vpack.c.bf16 %v513, %v513
        %v531 = vpack.c.bf16 %v516, %v516
        %v532 = vpack.c.bf16 %v518, %v518
        %533 = vst.msk [vmem:[%s403] sm:$0xf] %vm524, %v529
        %534 = vst.msk [vmem:[%s403 + $0x4] sm:$0xf] %vm524, %v530
        %535 = vst.msk [vmem:[%s403 + $0x8] sm:$0xf] %vm524, %v531
        %536 = vst.msk [vmem:[%s403 + $0xc] sm:$0xf] %vm524, %v532
        %s537 = sand.u32 %s163, 1
        %s538 = sand.u32 %s163, 1
        %s539 = smul.addr %s538, 16
        %s540 = scalar_lea.vmem [#allocation4], %s539
        %s541 = sand.u32 %s189, 1
        %s542 = sand.u32 %s189, 1
        %s543 = smul.addr %s542, 16
        %s544 = scalar_lea.vmem [#allocation5], %s543
        // Predicated region
        $region124: #{transformer_encoder_forward.4} parent=114 // pred_check
          %p545 = pneg %p173
        $region125: #{transformer_encoder_forward.4} parent=114 // pred_check_branch
          %547 = sbr.rel (%p545) target = $region127
        $region126: #{transformer_encoder_forward.4} parent=114 // pred_region
          %s548 = smul.u32 2, %s19
          %s549 = smul.addr %s548, 4
          %s550 = scalar_lea.vmem %s6, %s549
          // Predicated region
          $region128: #{transformer_encoder_forward.4} parent=126 // pred_check
            _
          $region129: #{transformer_encoder_forward.4} parent=126 // pred_check_branch
            %552 = sbr.rel (0) target = $region131
          $region130: #{transformer_encoder_forward.4} parent=126 // pred_region
            // Predicated region
            $region132: #{transformer_encoder_forward.4} parent=130 // pred_check
              _
            $region133: #{transformer_encoder_forward.4} parent=130 // pred_check_branch
              %554 = sbr.rel target = $region135
            $region134: #{transformer_encoder_forward.4} parent=130 // pred_region
              // Predicated region
              $region147: #{transformer_encoder_forward.4} parent=134 // pred_check
                _
              $region148: #{transformer_encoder_forward.4} parent=134 // pred_check_branch
                %576 = sbr.rel (0) target = $region150
              $region149: #{transformer_encoder_forward.4} parent=134 // pred_region
                loop: start=0, step=1, limit=1
                $region151: #{transformer_encoder_forward.4} parent=149 // loop_pre_header
                  _
                $region152: #{transformer_encoder_forward.4} parent=149 // loop_header
                  %s578 = sphi 0, %s582
                  %p579 = scmp.ge.s32.totalorder %s578, 1
                  %s583 = sphi %s540, %s540
                  %s584 = sphi %s550, %s550
                $region153: #{transformer_encoder_forward.4} parent=149 // loop_header_branch
                  %581 = sbr.rel (%p579) target = $region157
                $region154: #{transformer_encoder_forward.4} parent=149 // loop_body
                  _
                $region155: #{transformer_encoder_forward.4} parent=149 // loop_footer
                  %s582 = sadd.s32 1, %s578
                $region156: #{transformer_encoder_forward.4} parent=149 // loop_footer_branch
                  %577 = sbr.rel target = $region152
                $region157: #{transformer_encoder_forward.4} parent=149 // loop_exit
                  _
                %s586 = ssub.s32 16, 1
                loop: start=0, step=1, limit=1
                $region158: #{transformer_encoder_forward.4} parent=149 // loop_pre_header
                  _
                $region159: #{transformer_encoder_forward.4} parent=149 // loop_header
                  %s588 = sphi 0, %s592
                  %p589 = scmp.ge.s32.totalorder %s588, 1
                  %s593 = sphi %s540, %s540
                  %s594 = sphi %s550, %s550
                $region160: #{transformer_encoder_forward.4} parent=149 // loop_header_branch
                  %591 = sbr.rel (%p589) target = $region164
                $region161: #{transformer_encoder_forward.4} parent=149 // loop_body
                  %v595 = vld [vmem:[%s593] sm:%s586]
                  %596 = vst [vmem:[%s594] sm:%s586] %v595
                  %v597 = vld [vmem:[%s593 + $0x4] sm:%s586]
                  %598 = vst [vmem:[%s594 + $0x4] sm:%s586] %v597
                  %v599 = vld [vmem:[%s593 + $0x8] sm:%s586]
                  %600 = vst [vmem:[%s594 + $0x10] sm:%s586] %v599
                  %v601 = vld [vmem:[%s593 + $0xc] sm:%s586]
                  %602 = vst [vmem:[%s594 + $0x14] sm:%s586] %v601
                $region162: #{transformer_encoder_forward.4} parent=149 // loop_footer
                  %s592 = sadd.s32 1, %s588
                $region163: #{transformer_encoder_forward.4} parent=149 // loop_footer_branch
                  %587 = sbr.rel target = $region159
                $region164: #{transformer_encoder_forward.4} parent=149 // loop_exit
                  _
              $region150: #{transformer_encoder_forward.4} parent=134 // pred_fallthru
                _
            $region135: #{transformer_encoder_forward.4} parent=130 // pred_fallthru
              _
            // Predicated region
            $region136: #{transformer_encoder_forward.4} parent=130 // pred_check
              _
            $region137: #{transformer_encoder_forward.4} parent=130 // pred_check_branch
              %556 = sbr.rel (0) target = $region139
            $region138: #{transformer_encoder_forward.4} parent=130 // pred_region
              %s558 = ssub.s32 16, 1
              loop: start=0, step=1, limit=1
              $region140: #{transformer_encoder_forward.4} parent=138 // loop_pre_header
                _
              $region141: #{transformer_encoder_forward.4} parent=138 // loop_header
                %s560 = sphi 0, %s564
                %p561 = scmp.ge.s32.totalorder %s560, 1
                %s565 = sphi %s540, %s540
                %s566 = sphi %s550, %s550
              $region142: #{transformer_encoder_forward.4} parent=138 // loop_header_branch
                %563 = sbr.rel (%p561) target = $region146
              $region143: #{transformer_encoder_forward.4} parent=138 // loop_body
                %v567 = vld [vmem:[%s565] sm:%s558]
                %568 = vst [vmem:[%s566] sm:%s558] %v567
                %v569 = vld [vmem:[%s565 + $0x4] sm:%s558]
                %570 = vst [vmem:[%s566 + $0x4] sm:%s558] %v569
                %v571 = vld [vmem:[%s565 + $0x8] sm:%s558]
                %572 = vst [vmem:[%s566 + $0x10] sm:%s558] %v571
                %v573 = vld [vmem:[%s565 + $0xc] sm:%s558]
                %574 = vst [vmem:[%s566 + $0x14] sm:%s558] %v573
              $region144: #{transformer_encoder_forward.4} parent=138 // loop_footer
                %s564 = sadd.s32 1, %s560
              $region145: #{transformer_encoder_forward.4} parent=138 // loop_footer_branch
                %559 = sbr.rel target = $region141
              $region146: #{transformer_encoder_forward.4} parent=138 // loop_exit
                _
            $region139: #{transformer_encoder_forward.4} parent=130 // pred_fallthru
              _
          $region131: #{transformer_encoder_forward.4} parent=126 // pred_fallthru
            _
          %603 = vnop
        $region127: #{transformer_encoder_forward.4} parent=114 // pred_fallthru
          _
        // Predicated region
        $region165: #{transformer_encoder_forward.4} parent=114 // pred_check
          %p604 = pneg %p199
        $region166: #{transformer_encoder_forward.4} parent=114 // pred_check_branch
          %606 = sbr.rel (%p604) target = $region168
        $region167: #{transformer_encoder_forward.4} parent=114 // pred_region
          %s607 = smul.u32 2, %s19
          %s608 = smul.addr %s607, 4
          %s609 = scalar_lea.vmem %s7, %s608
          // Predicated region
          $region169: #{transformer_encoder_forward.4} parent=167 // pred_check
            _
          $region170: #{transformer_encoder_forward.4} parent=167 // pred_check_branch
            %611 = sbr.rel (0) target = $region172
          $region171: #{transformer_encoder_forward.4} parent=167 // pred_region
            // Predicated region
            $region173: #{transformer_encoder_forward.4} parent=171 // pred_check
              _
            $region174: #{transformer_encoder_forward.4} parent=171 // pred_check_branch
              %613 = sbr.rel target = $region176
            $region175: #{transformer_encoder_forward.4} parent=171 // pred_region
              // Predicated region
              $region188: #{transformer_encoder_forward.4} parent=175 // pred_check
                _
              $region189: #{transformer_encoder_forward.4} parent=175 // pred_check_branch
                %635 = sbr.rel (0) target = $region191
              $region190: #{transformer_encoder_forward.4} parent=175 // pred_region
                loop: start=0, step=1, limit=1
                $region192: #{transformer_encoder_forward.4} parent=190 // loop_pre_header
                  _
                $region193: #{transformer_encoder_forward.4} parent=190 // loop_header
                  %s637 = sphi 0, %s641
                  %p638 = scmp.ge.s32.totalorder %s637, 1
                  %s642 = sphi %s544, %s544
                  %s643 = sphi %s609, %s609
                $region194: #{transformer_encoder_forward.4} parent=190 // loop_header_branch
                  %640 = sbr.rel (%p638) target = $region198
                $region195: #{transformer_encoder_forward.4} parent=190 // loop_body
                  _
                $region196: #{transformer_encoder_forward.4} parent=190 // loop_footer
                  %s641 = sadd.s32 1, %s637
                $region197: #{transformer_encoder_forward.4} parent=190 // loop_footer_branch
                  %636 = sbr.rel target = $region193
                $region198: #{transformer_encoder_forward.4} parent=190 // loop_exit
                  _
                %s645 = ssub.s32 16, 1
                loop: start=0, step=1, limit=1
                $region199: #{transformer_encoder_forward.4} parent=190 // loop_pre_header
                  _
                $region200: #{transformer_encoder_forward.4} parent=190 // loop_header
                  %s647 = sphi 0, %s651
                  %p648 = scmp.ge.s32.totalorder %s647, 1
                  %s652 = sphi %s544, %s544
                  %s653 = sphi %s609, %s609
                $region201: #{transformer_encoder_forward.4} parent=190 // loop_header_branch
                  %650 = sbr.rel (%p648) target = $region205
                $region202: #{transformer_encoder_forward.4} parent=190 // loop_body
                  %v654 = vld [vmem:[%s652] sm:%s645]
                  %655 = vst [vmem:[%s653] sm:%s645] %v654
                  %v656 = vld [vmem:[%s652 + $0x4] sm:%s645]
                  %657 = vst [vmem:[%s653 + $0x4] sm:%s645] %v656
                  %v658 = vld [vmem:[%s652 + $0x8] sm:%s645]
                  %659 = vst [vmem:[%s653 + $0x10] sm:%s645] %v658
                  %v660 = vld [vmem:[%s652 + $0xc] sm:%s645]
                  %661 = vst [vmem:[%s653 + $0x14] sm:%s645] %v660
                $region203: #{transformer_encoder_forward.4} parent=190 // loop_footer
                  %s651 = sadd.s32 1, %s647
                $region204: #{transformer_encoder_forward.4} parent=190 // loop_footer_branch
                  %646 = sbr.rel target = $region200
                $region205: #{transformer_encoder_forward.4} parent=190 // loop_exit
                  _
              $region191: #{transformer_encoder_forward.4} parent=175 // pred_fallthru
                _
            $region176: #{transformer_encoder_forward.4} parent=171 // pred_fallthru
              _
            // Predicated region
            $region177: #{transformer_encoder_forward.4} parent=171 // pred_check
              _
            $region178: #{transformer_encoder_forward.4} parent=171 // pred_check_branch
              %615 = sbr.rel (0) target = $region180
            $region179: #{transformer_encoder_forward.4} parent=171 // pred_region
              %s617 = ssub.s32 16, 1
              loop: start=0, step=1, limit=1
              $region181: #{transformer_encoder_forward.4} parent=179 // loop_pre_header
                _
              $region182: #{transformer_encoder_forward.4} parent=179 // loop_header
                %s619 = sphi 0, %s623
                %p620 = scmp.ge.s32.totalorder %s619, 1
                %s624 = sphi %s544, %s544
                %s625 = sphi %s609, %s609
              $region183: #{transformer_encoder_forward.4} parent=179 // loop_header_branch
                %622 = sbr.rel (%p620) target = $region187
              $region184: #{transformer_encoder_forward.4} parent=179 // loop_body
                %v626 = vld [vmem:[%s624] sm:%s617]
                %627 = vst [vmem:[%s625] sm:%s617] %v626
                %v628 = vld [vmem:[%s624 + $0x4] sm:%s617]
                %629 = vst [vmem:[%s625 + $0x4] sm:%s617] %v628
                %v630 = vld [vmem:[%s624 + $0x8] sm:%s617]
                %631 = vst [vmem:[%s625 + $0x10] sm:%s617] %v630
                %v632 = vld [vmem:[%s624 + $0xc] sm:%s617]
                %633 = vst [vmem:[%s625 + $0x14] sm:%s617] %v632
              $region185: #{transformer_encoder_forward.4} parent=179 // loop_footer
                %s623 = sadd.s32 1, %s619
              $region186: #{transformer_encoder_forward.4} parent=179 // loop_footer_branch
                %618 = sbr.rel target = $region182
              $region187: #{transformer_encoder_forward.4} parent=179 // loop_exit
                _
            $region180: #{transformer_encoder_forward.4} parent=171 // pred_fallthru
              _
          $region172: #{transformer_encoder_forward.4} parent=167 // pred_fallthru
            _
          %662 = vnop
        $region168: #{transformer_encoder_forward.4} parent=114 // pred_fallthru
          _
      $region115: #{transformer_encoder_forward.4} parent=5 // pred_fallthru
        _
      %p663 = scmp.le.s32.totalorder 2, %s14
      // Predicated region
      $region206: #{transformer_encoder_forward.4} parent=5 // pred_check
        %p664 = pneg %p663
      $region207: #{transformer_encoder_forward.4} parent=5 // pred_check_branch
        %666 = sbr.rel (%p664) target = $region209
      $region208: #{transformer_encoder_forward.4} parent=5 // pred_region
        %s667 = ssub.s32 %s14, 2
        // Predicated region
        $region210: #{transformer_encoder_forward.4} parent=208 // pred_check
          %p668 = pneg %p179
        $region211: #{transformer_encoder_forward.4} parent=208 // pred_check_branch
          %670 = sbr.rel (%p668) target = $region213
        $region212: #{transformer_encoder_forward.4} parent=208 // pred_region
          %s671 = sand.u32 %s164, 1
          %s672 = sand.u32 %s164, 1
          %s673 = smul.addr %s672, 16
          %s674 = scalar_lea.vmem [#allocation4], %s673
        $region213: #{transformer_encoder_forward.4} parent=208 // pred_fallthru
          _
        // Predicated region
        $region214: #{transformer_encoder_forward.4} parent=208 // pred_check
          %p675 = pneg %p205
        $region215: #{transformer_encoder_forward.4} parent=208 // pred_check_branch
          %677 = sbr.rel (%p675) target = $region217
        $region216: #{transformer_encoder_forward.4} parent=208 // pred_region
          %s678 = sand.u32 %s190, 1
          %s679 = sand.u32 %s190, 1
          %s680 = smul.addr %s679, 16
          %s681 = scalar_lea.vmem [#allocation5], %s680
        $region217: #{transformer_encoder_forward.4} parent=208 // pred_fallthru
          _
      $region209: #{transformer_encoder_forward.4} parent=5 // pred_fallthru
        _
    $region6: #{transformer_encoder_forward.4} parent=1 // loop_footer
      %s18 = sadd.s32 1, %s14
    $region7: #{transformer_encoder_forward.4} parent=1 // loop_footer_branch
      %13 = sbr.rel target = $region3
    $region8: #{transformer_encoder_forward.4} parent=1 // loop_exit
      _

// kernel: transformer_encoder_forward.5
$region0: #{transformer_encoder_forward.5}
  #allocation0 [shape = 'u32[]', space=smem, size = 0x4, offset = 0x4, fixed_abs, tag = 'smem constant byte address 0x4 - core index']
  #allocation1 [shape = 'u32[72,128]{1,0:T(1,128)}', space=vmem, size = 0x9000, scoped, tag = 'internal scratch']
  %s0 = inlined_call_operand.vmem [shape: f32[2,32,32], index: 0, kind: input, shape index: {}, may-alias: {0,17}]
  %s1 = inlined_call_operand.vmem [shape: bf16[2,32,32], index: 1, kind: input, shape index: {}]
  %s2 = inlined_call_operand.vmem [shape: bf16[2,32,32], index: 2, kind: input, shape index: {}]
  %s3 = inlined_call_operand.vmem [shape: bf16[2,32,32], index: 3, kind: input, shape index: {}]
  %s4 = inlined_call_operand.vmem [shape: f32[2,1,32], index: 4, kind: input, shape index: {}]
  %s5 = inlined_call_operand.vmem [shape: bf16[32,32], index: 5, kind: input, shape index: {}]
  %s6 = inlined_call_operand.vmem [shape: f32[1,32], index: 6, kind: input, shape index: {}]
  %s7 = inlined_call_operand.vmem [shape: bf16[32,32], index: 7, kind: input, shape index: {}]
  %s8 = inlined_call_operand.vmem [shape: f32[1,32], index: 8, kind: input, shape index: {}]
  %s9 = inlined_call_operand.vmem [shape: bf16[32,64], index: 9, kind: input, shape index: {}]
  %s10 = inlined_call_operand.vmem [shape: f32[1,64], index: 10, kind: input, shape index: {}]
  %s11 = inlined_call_operand.vmem [shape: bf16[64,32], index: 11, kind: input, shape index: {}]
  %s12 = inlined_call_operand.vmem [shape: f32[1,32], index: 12, kind: input, shape index: {}]
  %s13 = inlined_call_operand.vmem [shape: f32[1,32], index: 13, kind: input, shape index: {}]
  %s14 = inlined_call_operand.vmem [shape: f32[1,32], index: 14, kind: input, shape index: {}]
  %s15 = inlined_call_operand.vmem [shape: f32[1,32], index: 15, kind: input, shape index: {}]
  %s16 = inlined_call_operand.vmem [shape: f32[1,32], index: 16, kind: input, shape index: {}]
  %s17 = inlined_call_operand.vmem [shape: f32[2,32,32], index: 17, kind: output, shape index: {}, may-alias: {0,17}]
  %s18 = sld [smem:[#allocation0]]
  $region214: #{transformer_encoder_forward.5} parent=0
    _
  %s20 = ssub.s32 1, %s18
  %s21 = scalar_select 0, %s20, %s18
  $region1: #{transformer_encoder_forward.5} parent=0
    #allocation2 [shape = 'u8[32768]{0}', space=vmem, size = 0x8000, scoped, tag = 'input window, operand 0']
    #allocation3 [shape = 'u8[16384]{0}', space=vmem, size = 0x4000, scoped, tag = 'input window, operand 1']
    #allocation4 [shape = 'u8[32768]{0}', space=vmem, size = 0x8000, scoped, tag = 'output window, operand 0']
    loop: start=0, step=1, limit=4
    $region2: #{transformer_encoder_forward.5} parent=1 // loop_pre_header
      _
    $region3: #{transformer_encoder_forward.5} parent=1 // loop_header
      %s23 = sphi 0, %s27
      %p24 = scmp.ge.s32.totalorder %s23, 4
      %s33 = sphi 0, %s35
      %s36 = sphi 0, %s33
      %s37 = sphi 0, %s36
      %s53 = sphi 0, %s37
      %s59 = sphi 0, %s61
      %s62 = sphi 0, %s59
      %s63 = sphi 0, %s62
      %s79 = sphi 0, %s63
      %s83 = sphi 0, %s83
      %s85 = sphi 0, %s83
      %s86 = sphi 0, %s85
      %s100 = sphi 0, %s86
      %s104 = sphi 0, %s104
      %s106 = sphi 0, %s104
      %s107 = sphi 0, %s106
      %s121 = sphi 0, %s107
      %s125 = sphi 0, %s125
      %s127 = sphi 0, %s125
      %s128 = sphi 0, %s127
      %s142 = sphi 0, %s128
      %s146 = sphi 0, %s146
      %s148 = sphi 0, %s146
      %s149 = sphi 0, %s148
      %s163 = sphi 0, %s149
      %s167 = sphi 0, %s167
      %s169 = sphi 0, %s167
      %s170 = sphi 0, %s169
      %s184 = sphi 0, %s170
      %s188 = sphi 0, %s188
      %s190 = sphi 0, %s188
      %s191 = sphi 0, %s190
      %s205 = sphi 0, %s191
      %s209 = sphi 0, %s209
      %s211 = sphi 0, %s209
      %s212 = sphi 0, %s211
      %s226 = sphi 0, %s212
      %s230 = sphi 0, %s230
      %s232 = sphi 0, %s230
      %s233 = sphi 0, %s232
      %s247 = sphi 0, %s233
      %s251 = sphi 0, %s251
      %s253 = sphi 0, %s251
      %s254 = sphi 0, %s253
      %s268 = sphi 0, %s254
      %s272 = sphi 0, %s272
      %s274 = sphi 0, %s272
      %s275 = sphi 0, %s274
      %s289 = sphi 0, %s275
      %s293 = sphi 0, %s293
      %s295 = sphi 0, %s293
      %s296 = sphi 0, %s295
      %s310 = sphi 0, %s296
      %s314 = sphi 0, %s314
      %s316 = sphi 0, %s314
      %s317 = sphi 0, %s316
      %s331 = sphi 0, %s317
      %s335 = sphi 0, %s335
      %s337 = sphi 0, %s335
      %s338 = sphi 0, %s337
      %s352 = sphi 0, %s338
      %s356 = sphi 0, %s356
      %s358 = sphi 0, %s356
      %s359 = sphi 0, %s358
      %s373 = sphi 0, %s359
      %s377 = sphi 0, %s377
      %s379 = sphi 0, %s377
      %s380 = sphi 0, %s379
      %s394 = sphi 0, %s380
      %s400 = sphi 0, %s402
      %s403 = sphi 0, %s400
      %s404 = sphi 0, %s403
      %s420 = sphi 0, %s404
    $region4: #{transformer_encoder_forward.5} parent=1 // loop_header_branch
      %26 = sbr.rel (%p24) target = $region8
    $region5: #{transformer_encoder_forward.5} parent=1 // loop_body
      %s28 = ssub.s32 %s23, 1
      %s29 = ssub.s32 %s23, 2
      %s30 = sadd.s32 %s23, 1
      %s31 = ssub.s32 %s23, %s30
      %p32 = scmp.eq.s32.totalorder %s31, 0
      %s34 = sadd.s32 %s33, 1
      %s35 = scalar_select %p32, %s33, %s34
      %p38 = pneg %p32
      %p39 = scmp.eq.s32.totalorder %s23, 1
      %p40 = por %p38, %p39
      %p41 = scmp.ne.s32.totalorder %s33, %s36
      %p42 = scmp.eq.s32.totalorder %s23, 0
      %p43 = por %p41, %p42
      %p44 = scmp.ne.s32.totalorder %s33, %s36
      %p45 = scmp.eq.s32.totalorder %s28, 1
      %p46 = por %p44, %p45
      %p47 = scmp.ne.s32.totalorder %s36, %s37
      %p48 = scmp.eq.s32.totalorder %s28, 0
      %p49 = por %p47, %p48
      %p50 = scmp.ne.s32.totalorder %s36, %s37
      %p51 = scmp.eq.s32.totalorder %s29, 1
      %p52 = por %p50, %p51
      %p54 = scmp.ne.s32.totalorder %s37, %s53
      %p55 = scmp.eq.s32.totalorder %s29, 0
      %p56 = por %p54, %p55
      %s57 = ssub.s32 %s23, %s30
      %p58 = scmp.eq.s32.totalorder %s57, 0
      %s60 = sadd.s32 %s59, 1
      %s61 = scalar_select %p58, %s59, %s60
      %p64 = pneg %p58
      %p65 = scmp.eq.s32.totalorder %s23, 1
      %p66 = por %p64, %p65
      %p67 = scmp.ne.s32.totalorder %s59, %s62
      %p68 = scmp.eq.s32.totalorder %s23, 0
      %p69 = por %p67, %p68
      %p70 = scmp.ne.s32.totalorder %s59, %s62
      %p71 = scmp.eq.s32.totalorder %s28, 1
      %p72 = por %p70, %p71
      %p73 = scmp.ne.s32.totalorder %s62, %s63
      %p74 = scmp.eq.s32.totalorder %s28, 0
      %p75 = por %p73, %p74
      %p76 = scmp.ne.s32.totalorder %s62, %s63
      %p77 = scmp.eq.s32.totalorder %s29, 1
      %p78 = por %p76, %p77
      %p80 = scmp.ne.s32.totalorder %s63, %s79
      %p81 = scmp.eq.s32.totalorder %s29, 0
      %p82 = por %p80, %p81
      %s84 = sadd.s32 %s83, 1
      %p87 = scmp.eq.s32.totalorder %s23, 1
      %p88 = scmp.ne.s32.totalorder %s83, %s85
      %p89 = scmp.eq.s32.totalorder %s23, 0
      %p90 = por %p88, %p89
      %p91 = scmp.ne.s32.totalorder %s83, %s85
      %p92 = scmp.eq.s32.totalorder %s28, 1
      %p93 = por %p91, %p92
      %p94 = scmp.ne.s32.totalorder %s85, %s86
      %p95 = scmp.eq.s32.totalorder %s28, 0
      %p96 = por %p94, %p95
      %p97 = scmp.ne.s32.totalorder %s85, %s86
      %p98 = scmp.eq.s32.totalorder %s29, 1
      %p99 = por %p97, %p98
      %p101 = scmp.ne.s32.totalorder %s86, %s100
      %p102 = scmp.eq.s32.totalorder %s29, 0
      %p103 = por %p101, %p102
      %s105 = sadd.s32 %s104, 1
      %p108 = scmp.eq.s32.totalorder %s23, 1
      %p109 = scmp.ne.s32.totalorder %s104, %s106
      %p110 = scmp.eq.s32.totalorder %s23, 0
      %p111 = por %p109, %p110
      %p112 = scmp.ne.s32.totalorder %s104, %s106
      %p113 = scmp.eq.s32.totalorder %s28, 1
      %p114 = por %p112, %p113
      %p115 = scmp.ne.s32.totalorder %s106, %s107
      %p116 = scmp.eq.s32.totalorder %s28, 0
      %p117 = por %p115, %p116
      %p118 = scmp.ne.s32.totalorder %s106, %s107
      %p119 = scmp.eq.s32.totalorder %s29, 1
      %p120 = por %p118, %p119
      %p122 = scmp.ne.s32.totalorder %s107, %s121
      %p123 = scmp.eq.s32.totalorder %s29, 0
      %p124 = por %p122, %p123
      %s126 = sadd.s32 %s125, 1
      %p129 = scmp.eq.s32.totalorder %s23, 1
      %p130 = scmp.ne.s32.totalorder %s125, %s127
      %p131 = scmp.eq.s32.totalorder %s23, 0
      %p132 = por %p130, %p131
      %p133 = scmp.ne.s32.totalorder %s125, %s127
      %p134 = scmp.eq.s32.totalorder %s28, 1
      %p135 = por %p133, %p134
      %p136 = scmp.ne.s32.totalorder %s127, %s128
      %p137 = scmp.eq.s32.totalorder %s28, 0
      %p138 = por %p136, %p137
      %p139 = scmp.ne.s32.totalorder %s127, %s128
      %p140 = scmp.eq.s32.totalorder %s29, 1
      %p141 = por %p139, %p140
      %p143 = scmp.ne.s32.totalorder %s128, %s142
      %p144 = scmp.eq.s32.totalorder %s29, 0
      %p145 = por %p143, %p144
      %s147 = sadd.s32 %s146, 1
      %p150 = scmp.eq.s32.totalorder %s23, 1
      %p151 = scmp.ne.s32.totalorder %s146, %s148
      %p152 = scmp.eq.s32.totalorder %s23, 0
      %p153 = por %p151, %p152
      %p154 = scmp.ne.s32.totalorder %s146, %s148
      %p155 = scmp.eq.s32.totalorder %s28, 1
      %p156 = por %p154, %p155
      %p157 = scmp.ne.s32.totalorder %s148, %s149
      %p158 = scmp.eq.s32.totalorder %s28, 0
      %p159 = por %p157, %p158
      %p160 = scmp.ne.s32.totalorder %s148, %s149
      %p161 = scmp.eq.s32.totalorder %s29, 1
      %p162 = por %p160, %p161
      %p164 = scmp.ne.s32.totalorder %s149, %s163
      %p165 = scmp.eq.s32.totalorder %s29, 0
      %p166 = por %p164, %p165
      %s168 = sadd.s32 %s167, 1
      %p171 = scmp.eq.s32.totalorder %s23, 1
      %p172 = scmp.ne.s32.totalorder %s167, %s169
      %p173 = scmp.eq.s32.totalorder %s23, 0
      %p174 = por %p172, %p173
      %p175 = scmp.ne.s32.totalorder %s167, %s169
      %p176 = scmp.eq.s32.totalorder %s28, 1
      %p177 = por %p175, %p176
      %p178 = scmp.ne.s32.totalorder %s169, %s170
      %p179 = scmp.eq.s32.totalorder %s28, 0
      %p180 = por %p178, %p179
      %p181 = scmp.ne.s32.totalorder %s169, %s170
      %p182 = scmp.eq.s32.totalorder %s29, 1
      %p183 = por %p181, %p182
      %p185 = scmp.ne.s32.totalorder %s170, %s184
      %p186 = scmp.eq.s32.totalorder %s29, 0
      %p187 = por %p185, %p186
      %s189 = sadd.s32 %s188, 1
      %p192 = scmp.eq.s32.totalorder %s23, 1
      %p193 = scmp.ne.s32.totalorder %s188, %s190
      %p194 = scmp.eq.s32.totalorder %s23, 0
      %p195 = por %p193, %p194
      %p196 = scmp.ne.s32.totalorder %s188, %s190
      %p197 = scmp.eq.s32.totalorder %s28, 1
      %p198 = por %p196, %p197
      %p199 = scmp.ne.s32.totalorder %s190, %s191
      %p200 = scmp.eq.s32.totalorder %s28, 0
      %p201 = por %p199, %p200
      %p202 = scmp.ne.s32.totalorder %s190, %s191
      %p203 = scmp.eq.s32.totalorder %s29, 1
      %p204 = por %p202, %p203
      %p206 = scmp.ne.s32.totalorder %s191, %s205
      %p207 = scmp.eq.s32.totalorder %s29, 0
      %p208 = por %p206, %p207
      %s210 = sadd.s32 %s209, 1
      %p213 = scmp.eq.s32.totalorder %s23, 1
      %p214 = scmp.ne.s32.totalorder %s209, %s211
      %p215 = scmp.eq.s32.totalorder %s23, 0
      %p216 = por %p214, %p215
      %p217 = scmp.ne.s32.totalorder %s209, %s211
      %p218 = scmp.eq.s32.totalorder %s28, 1
      %p219 = por %p217, %p218
      %p220 = scmp.ne.s32.totalorder %s211, %s212
      %p221 = scmp.eq.s32.totalorder %s28, 0
      %p222 = por %p220, %p221
      %p223 = scmp.ne.s32.totalorder %s211, %s212
      %p224 = scmp.eq.s32.totalorder %s29, 1
      %p225 = por %p223, %p224
      %p227 = scmp.ne.s32.totalorder %s212, %s226
      %p228 = scmp.eq.s32.totalorder %s29, 0
      %p229 = por %p227, %p228
      %s231 = sadd.s32 %s230, 1
      %p234 = scmp.eq.s32.totalorder %s23, 1
      %p235 = scmp.ne.s32.totalorder %s230, %s232
      %p236 = scmp.eq.s32.totalorder %s23, 0
      %p237 = por %p235, %p236
      %p238 = scmp.ne.s32.totalorder %s230, %s232
      %p239 = scmp.eq.s32.totalorder %s28, 1
      %p240 = por %p238, %p239
      %p241 = scmp.ne.s32.totalorder %s232, %s233
      %p242 = scmp.eq.s32.totalorder %s28, 0
      %p243 = por %p241, %p242
      %p244 = scmp.ne.s32.totalorder %s232, %s233
      %p245 = scmp.eq.s32.totalorder %s29, 1
      %p246 = por %p244, %p245
      %p248 = scmp.ne.s32.totalorder %s233, %s247
      %p249 = scmp.eq.s32.totalorder %s29, 0
      %p250 = por %p248, %p249
      %s252 = sadd.s32 %s251, 1
      %p255 = scmp.eq.s32.totalorder %s23, 1
      %p256 = scmp.ne.s32.totalorder %s251, %s253
      %p257 = scmp.eq.s32.totalorder %s23, 0
      %p258 = por %p256, %p257
      %p259 = scmp.ne.s32.totalorder %s251, %s253
      %p260 = scmp.eq.s32.totalorder %s28, 1
      %p261 = por %p259, %p260
      %p262 = scmp.ne.s32.totalorder %s253, %s254
      %p263 = scmp.eq.s32.totalorder %s28, 0
      %p264 = por %p262, %p263
      %p265 = scmp.ne.s32.totalorder %s253, %s254
      %p266 = scmp.eq.s32.totalorder %s29, 1
      %p267 = por %p265, %p266
      %p269 = scmp.ne.s32.totalorder %s254, %s268
      %p270 = scmp.eq.s32.totalorder %s29, 0
      %p271 = por %p269, %p270
      %s273 = sadd.s32 %s272, 1
      %p276 = scmp.eq.s32.totalorder %s23, 1
      %p277 = scmp.ne.s32.totalorder %s272, %s274
      %p278 = scmp.eq.s32.totalorder %s23, 0
      %p279 = por %p277, %p278
      %p280 = scmp.ne.s32.totalorder %s272, %s274
      %p281 = scmp.eq.s32.totalorder %s28, 1
      %p282 = por %p280, %p281
      %p283 = scmp.ne.s32.totalorder %s274, %s275
      %p284 = scmp.eq.s32.totalorder %s28, 0
      %p285 = por %p283, %p284
      %p286 = scmp.ne.s32.totalorder %s274, %s275
      %p287 = scmp.eq.s32.totalorder %s29, 1
      %p288 = por %p286, %p287
      %p290 = scmp.ne.s32.totalorder %s275, %s289
      %p291 = scmp.eq.s32.totalorder %s29, 0
      %p292 = por %p290, %p291
      %s294 = sadd.s32 %s293, 1
      %p297 = scmp.eq.s32.totalorder %s23, 1
      %p298 = scmp.ne.s32.totalorder %s293, %s295
      %p299 = scmp.eq.s32.totalorder %s23, 0
      %p300 = por %p298, %p299
      %p301 = scmp.ne.s32.totalorder %s293, %s295
      %p302 = scmp.eq.s32.totalorder %s28, 1
      %p303 = por %p301, %p302
      %p304 = scmp.ne.s32.totalorder %s295, %s296
      %p305 = scmp.eq.s32.totalorder %s28, 0
      %p306 = por %p304, %p305
      %p307 = scmp.ne.s32.totalorder %s295, %s296
      %p308 = scmp.eq.s32.totalorder %s29, 1
      %p309 = por %p307, %p308
      %p311 = scmp.ne.s32.totalorder %s296, %s310
      %p312 = scmp.eq.s32.totalorder %s29, 0
      %p313 = por %p311, %p312
      %s315 = sadd.s32 %s314, 1
      %p318 = scmp.eq.s32.totalorder %s23, 1
      %p319 = scmp.ne.s32.totalorder %s314, %s316
      %p320 = scmp.eq.s32.totalorder %s23, 0
      %p321 = por %p319, %p320
      %p322 = scmp.ne.s32.totalorder %s314, %s316
      %p323 = scmp.eq.s32.totalorder %s28, 1
      %p324 = por %p322, %p323
      %p325 = scmp.ne.s32.totalorder %s316, %s317
      %p326 = scmp.eq.s32.totalorder %s28, 0
      %p327 = por %p325, %p326
      %p328 = scmp.ne.s32.totalorder %s316, %s317
      %p329 = scmp.eq.s32.totalorder %s29, 1
      %p330 = por %p328, %p329
      %p332 = scmp.ne.s32.totalorder %s317, %s331
      %p333 = scmp.eq.s32.totalorder %s29, 0
      %p334 = por %p332, %p333
      %s336 = sadd.s32 %s335, 1
      %p339 = scmp.eq.s32.totalorder %s23, 1
      %p340 = scmp.ne.s32.totalorder %s335, %s337
      %p341 = scmp.eq.s32.totalorder %s23, 0
      %p342 = por %p340, %p341
      %p343 = scmp.ne.s32.totalorder %s335, %s337
      %p344 = scmp.eq.s32.totalorder %s28, 1
      %p345 = por %p343, %p344
      %p346 = scmp.ne.s32.totalorder %s337, %s338
      %p347 = scmp.eq.s32.totalorder %s28, 0
      %p348 = por %p346, %p347
      %p349 = scmp.ne.s32.totalorder %s337, %s338
      %p350 = scmp.eq.s32.totalorder %s29, 1
      %p351 = por %p349, %p350
      %p353 = scmp.ne.s32.totalorder %s338, %s352
      %p354 = scmp.eq.s32.totalorder %s29, 0
      %p355 = por %p353, %p354
      %s357 = sadd.s32 %s356, 1
      %p360 = scmp.eq.s32.totalorder %s23, 1
      %p361 = scmp.ne.s32.totalorder %s356, %s358
      %p362 = scmp.eq.s32.totalorder %s23, 0
      %p363 = por %p361, %p362
      %p364 = scmp.ne.s32.totalorder %s356, %s358
      %p365 = scmp.eq.s32.totalorder %s28, 1
      %p366 = por %p364, %p365
      %p367 = scmp.ne.s32.totalorder %s358, %s359
      %p368 = scmp.eq.s32.totalorder %s28, 0
      %p369 = por %p367, %p368
      %p370 = scmp.ne.s32.totalorder %s358, %s359
      %p371 = scmp.eq.s32.totalorder %s29, 1
      %p372 = por %p370, %p371
      %p374 = scmp.ne.s32.totalorder %s359, %s373
      %p375 = scmp.eq.s32.totalorder %s29, 0
      %p376 = por %p374, %p375
      %s378 = sadd.s32 %s377, 1
      %p381 = scmp.eq.s32.totalorder %s23, 1
      %p382 = scmp.ne.s32.totalorder %s377, %s379
      %p383 = scmp.eq.s32.totalorder %s23, 0
      %p384 = por %p382, %p383
      %p385 = scmp.ne.s32.totalorder %s377, %s379
      %p386 = scmp.eq.s32.totalorder %s28, 1
      %p387 = por %p385, %p386
      %p388 = scmp.ne.s32.totalorder %s379, %s380
      %p389 = scmp.eq.s32.totalorder %s28, 0
      %p390 = por %p388, %p389
      %p391 = scmp.ne.s32.totalorder %s379, %s380
      %p392 = scmp.eq.s32.totalorder %s29, 1
      %p393 = por %p391, %p392
      %p395 = scmp.ne.s32.totalorder %s380, %s394
      %p396 = scmp.eq.s32.totalorder %s29, 0
      %p397 = por %p395, %p396
      %s398 = ssub.s32 %s23, %s30
      %p399 = scmp.eq.s32.totalorder %s398, 0
      %s401 = sadd.s32 %s400, 1
      %s402 = scalar_select %p399, %s400, %s401
      %p405 = pneg %p399
      %p406 = scmp.eq.s32.totalorder %s23, 1
      %p407 = por %p405, %p406
      %p408 = scmp.ne.s32.totalorder %s400, %s403
      %p409 = scmp.eq.s32.totalorder %s23, 0
      %p410 = por %p408, %p409
      %p411 = scmp.ne.s32.totalorder %s400, %s403
      %p412 = scmp.eq.s32.totalorder %s28, 1
      %p413 = por %p411, %p412
      %p414 = scmp.ne.s32.totalorder %s403, %s404
      %p415 = scmp.eq.s32.totalorder %s28, 0
      %p416 = por %p414, %p415
      %p417 = scmp.ne.s32.totalorder %s403, %s404
      %p418 = scmp.eq.s32.totalorder %s29, 1
      %p419 = por %p417, %p418
      %p421 = scmp.ne.s32.totalorder %s404, %s420
      %p422 = scmp.eq.s32.totalorder %s29, 0
      %p423 = por %p421, %p422
      %p424 = scmp.le.s32.totalorder 1, %s23
      %p425 = scmp.lt.s32.totalorder %s23, 3
      %p426 = pnand %p424, %p425
      %p427 = pneg %p426
      // Predicated region
      $region9: #{transformer_encoder_forward.5} parent=5 // pred_check
        _
      $region10: #{transformer_encoder_forward.5} parent=5 // pred_check_branch
        %429 = sbr.rel (%p426) target = $region12
      $region11: #{transformer_encoder_forward.5} parent=5 // pred_region
        %s430 = ssub.s32 %s23, 1
        // Predicated region
        $region13: #{transformer_encoder_forward.5} parent=11 // pred_check
          %p431 = pneg %p96
        $region14: #{transformer_encoder_forward.5} parent=11 // pred_check_branch
          %433 = sbr.rel (%p431) target = $region16
        $region15: #{transformer_encoder_forward.5} parent=11 // pred_region
          _
        $region16: #{transformer_encoder_forward.5} parent=11 // pred_fallthru
          _
        // Predicated region
        $region17: #{transformer_encoder_forward.5} parent=11 // pred_check
          %p434 = pneg %p117
        $region18: #{transformer_encoder_forward.5} parent=11 // pred_check_branch
          %436 = sbr.rel (%p434) target = $region20
        $region19: #{transformer_encoder_forward.5} parent=11 // pred_region
          _
        $region20: #{transformer_encoder_forward.5} parent=11 // pred_fallthru
          _
        // Predicated region
        $region21: #{transformer_encoder_forward.5} parent=11 // pred_check
          %p437 = pneg %p138
        $region22: #{transformer_encoder_forward.5} parent=11 // pred_check_branch
          %439 = sbr.rel (%p437) target = $region24
        $region23: #{transformer_encoder_forward.5} parent=11 // pred_region
          _
        $region24: #{transformer_encoder_forward.5} parent=11 // pred_fallthru
          _
        // Predicated region
        $region25: #{transformer_encoder_forward.5} parent=11 // pred_check
          %p440 = pneg %p159
        $region26: #{transformer_encoder_forward.5} parent=11 // pred_check_branch
          %442 = sbr.rel (%p440) target = $region28
        $region27: #{transformer_encoder_forward.5} parent=11 // pred_region
          _
        $region28: #{transformer_encoder_forward.5} parent=11 // pred_fallthru
          _
        // Predicated region
        $region29: #{transformer_encoder_forward.5} parent=11 // pred_check
          %p443 = pneg %p180
        $region30: #{transformer_encoder_forward.5} parent=11 // pred_check_branch
          %445 = sbr.rel (%p443) target = $region32
        $region31: #{transformer_encoder_forward.5} parent=11 // pred_region
          _
        $region32: #{transformer_encoder_forward.5} parent=11 // pred_fallthru
          _
        // Predicated region
        $region33: #{transformer_encoder_forward.5} parent=11 // pred_check
          %p446 = pneg %p201
        $region34: #{transformer_encoder_forward.5} parent=11 // pred_check_branch
          %448 = sbr.rel (%p446) target = $region36
        $region35: #{transformer_encoder_forward.5} parent=11 // pred_region
          _
        $region36: #{transformer_encoder_forward.5} parent=11 // pred_fallthru
          _
        // Predicated region
        $region37: #{transformer_encoder_forward.5} parent=11 // pred_check
          %p449 = pneg %p222
        $region38: #{transformer_encoder_forward.5} parent=11 // pred_check_branch
          %451 = sbr.rel (%p449) target = $region40
        $region39: #{transformer_encoder_forward.5} parent=11 // pred_region
          _
        $region40: #{transformer_encoder_forward.5} parent=11 // pred_fallthru
          _
        // Predicated region
        $region41: #{transformer_encoder_forward.5} parent=11 // pred_check
          %p452 = pneg %p243
        $region42: #{transformer_encoder_forward.5} parent=11 // pred_check_branch
          %454 = sbr.rel (%p452) target = $region44
        $region43: #{transformer_encoder_forward.5} parent=11 // pred_region
          _
        $region44: #{transformer_encoder_forward.5} parent=11 // pred_fallthru
          _
        // Predicated region
        $region45: #{transformer_encoder_forward.5} parent=11 // pred_check
          %p455 = pneg %p264
        $region46: #{transformer_encoder_forward.5} parent=11 // pred_check_branch
          %457 = sbr.rel (%p455) target = $region48
        $region47: #{transformer_encoder_forward.5} parent=11 // pred_region
          _
        $region48: #{transformer_encoder_forward.5} parent=11 // pred_fallthru
          _
        // Predicated region
        $region49: #{transformer_encoder_forward.5} parent=11 // pred_check
          %p458 = pneg %p285
        $region50: #{transformer_encoder_forward.5} parent=11 // pred_check_branch
          %460 = sbr.rel (%p458) target = $region52
        $region51: #{transformer_encoder_forward.5} parent=11 // pred_region
          _
        $region52: #{transformer_encoder_forward.5} parent=11 // pred_fallthru
          _
        // Predicated region
        $region53: #{transformer_encoder_forward.5} parent=11 // pred_check
          %p461 = pneg %p306
        $region54: #{transformer_encoder_forward.5} parent=11 // pred_check_branch
          %463 = sbr.rel (%p461) target = $region56
        $region55: #{transformer_encoder_forward.5} parent=11 // pred_region
          _
        $region56: #{transformer_encoder_forward.5} parent=11 // pred_fallthru
          _
        // Predicated region
        $region57: #{transformer_encoder_forward.5} parent=11 // pred_check
          %p464 = pneg %p327
        $region58: #{transformer_encoder_forward.5} parent=11 // pred_check_branch
          %466 = sbr.rel (%p464) target = $region60
        $region59: #{transformer_encoder_forward.5} parent=11 // pred_region
          _
        $region60: #{transformer_encoder_forward.5} parent=11 // pred_fallthru
          _
        // Predicated region
        $region61: #{transformer_encoder_forward.5} parent=11 // pred_check
          %p467 = pneg %p348
        $region62: #{transformer_encoder_forward.5} parent=11 // pred_check_branch
          %469 = sbr.rel (%p467) target = $region64
        $region63: #{transformer_encoder_forward.5} parent=11 // pred_region
          _
        $region64: #{transformer_encoder_forward.5} parent=11 // pred_fallthru
          _
        // Predicated region
        $region65: #{transformer_encoder_forward.5} parent=11 // pred_check
          %p470 = pneg %p369
        $region66: #{transformer_encoder_forward.5} parent=11 // pred_check_branch
          %472 = sbr.rel (%p470) target = $region68
        $region67: #{transformer_encoder_forward.5} parent=11 // pred_region
          _
        $region68: #{transformer_encoder_forward.5} parent=11 // pred_fallthru
          _
        // Predicated region
        $region69: #{transformer_encoder_forward.5} parent=11 // pred_check
          %p473 = pneg %p390
        $region70: #{transformer_encoder_forward.5} parent=11 // pred_check_branch
          %475 = sbr.rel (%p473) target = $region72
        $region71: #{transformer_encoder_forward.5} parent=11 // pred_region
          _
        $region72: #{transformer_encoder_forward.5} parent=11 // pred_fallthru
          _
      $region12: #{transformer_encoder_forward.5} parent=5 // pred_fallthru
        _
      %p476 = scmp.lt.s32.totalorder %s23, 2
      // Predicated region
      $region73: #{transformer_encoder_forward.5} parent=5 // pred_check
        %p477 = pneg %p476
      $region74: #{transformer_encoder_forward.5} parent=5 // pred_check_branch
        %479 = sbr.rel (%p477) target = $region76
      $region75: #{transformer_encoder_forward.5} parent=5 // pred_region
        // Predicated region
        $region77: #{transformer_encoder_forward.5} parent=75 // pred_check
          %p480 = pneg %p43
        $region78: #{transformer_encoder_forward.5} parent=75 // pred_check_branch
          %482 = sbr.rel (%p480) target = $region80
        $region79: #{transformer_encoder_forward.5} parent=75 // pred_region
          %s483 = sand.u32 %s33, 1
          %s484 = sand.u32 %s33, 1
          %s485 = smul.addr %s484, 32
          %s486 = scalar_lea.vmem [#allocation2], %s485
          %s487 = smul.u32 2, %s23
          %s488 = smul.addr %s487, 8
          %s489 = scalar_lea.vmem %s0, %s488
          // Predicated region
          $region81: #{transformer_encoder_forward.5} parent=79 // pred_check
            _
          $region82: #{transformer_encoder_forward.5} parent=79 // pred_check_branch
            %491 = sbr.rel (0) target = $region84
          $region83: #{transformer_encoder_forward.5} parent=79 // pred_region
            // Predicated region
            $region85: #{transformer_encoder_forward.5} parent=83 // pred_check
              _
            $region86: #{transformer_encoder_forward.5} parent=83 // pred_check_branch
              %493 = sbr.rel (0) target = $region88
            $region87: #{transformer_encoder_forward.5} parent=83 // pred_region
              // Predicated region
              $region100: #{transformer_encoder_forward.5} parent=87 // pred_check
                _
              $region101: #{transformer_encoder_forward.5} parent=87 // pred_check_branch
                %515 = sbr.rel (0) target = $region103
              $region102: #{transformer_encoder_forward.5} parent=87 // pred_region
                loop: start=0, step=1, limit=1
                $region104: #{transformer_encoder_forward.5} parent=102 // loop_pre_header
                  _
                $region105: #{transformer_encoder_forward.5} parent=102 // loop_header
                  %s517 = sphi 0, %s521
                  %p518 = scmp.ge.s32.totalorder %s517, 1
                  %s522 = sphi %s489, %s489
                  %s523 = sphi %s486, %s486
                $region106: #{transformer_encoder_forward.5} parent=102 // loop_header_branch
                  %520 = sbr.rel (%p518) target = $region110
                $region107: #{transformer_encoder_forward.5} parent=102 // loop_body
                  %v524 = vld [vmem:[%s522] sm:$0xff]
                  %525 = vst [vmem:[%s523] sm:$0xff] %v524
                  %v526 = vld [vmem:[%s522 + $0x8] sm:$0xff]
                  %527 = vst [vmem:[%s523 + $0x8] sm:$0xff] %v526
                  %v528 = vld [vmem:[%s522 + $0x20] sm:$0xff]
                  %529 = vst [vmem:[%s523 + $0x10] sm:$0xff] %v528
                  %v530 = vld [vmem:[%s522 + $0x28] sm:$0xff]
                  %531 = vst [vmem:[%s523 + $0x18] sm:$0xff] %v530
                $region108: #{transformer_encoder_forward.5} parent=102 // loop_footer
                  %s521 = sadd.s32 1, %s517
                $region109: #{transformer_encoder_forward.5} parent=102 // loop_footer_branch
                  %516 = sbr.rel target = $region105
                $region110: #{transformer_encoder_forward.5} parent=102 // loop_exit
                  _
              $region103: #{transformer_encoder_forward.5} parent=87 // pred_fallthru
                _
              // Predicated region
              $region111: #{transformer_encoder_forward.5} parent=87 // pred_check
                _
              $region112: #{transformer_encoder_forward.5} parent=87 // pred_check_branch
                %533 = sbr.rel target = $region114
              $region113: #{transformer_encoder_forward.5} parent=87 // pred_region
                _
              $region114: #{transformer_encoder_forward.5} parent=87 // pred_fallthru
                _
            $region88: #{transformer_encoder_forward.5} parent=83 // pred_fallthru
              _
            // Predicated region
            $region89: #{transformer_encoder_forward.5} parent=83 // pred_check
              _
            $region90: #{transformer_encoder_forward.5} parent=83 // pred_check_branch
              %495 = sbr.rel target = $region92
            $region91: #{transformer_encoder_forward.5} parent=83 // pred_region
              %s497 = ssub.s32 256, 1
              loop: start=0, step=1, limit=1
              $region93: #{transformer_encoder_forward.5} parent=91 // loop_pre_header
                _
              $region94: #{transformer_encoder_forward.5} parent=91 // loop_header
                %s499 = sphi 0, %s503
                %p500 = scmp.ge.s32.totalorder %s499, 1
                %s504 = sphi %s489, %s489
                %s505 = sphi %s486, %s486
              $region95: #{transformer_encoder_forward.5} parent=91 // loop_header_branch
                %502 = sbr.rel (%p500) target = $region99
              $region96: #{transformer_encoder_forward.5} parent=91 // loop_body
                %v506 = vld [vmem:[%s504] sm:%s497]
                %507 = vst [vmem:[%s505] sm:%s497] %v506
                %v508 = vld [vmem:[%s504 + $0x8] sm:%s497]
                %509 = vst [vmem:[%s505 + $0x8] sm:%s497] %v508
                %v510 = vld [vmem:[%s504 + $0x20] sm:%s497]
                %511 = vst [vmem:[%s505 + $0x10] sm:%s497] %v510
                %v512 = vld [vmem:[%s504 + $0x28] sm:%s497]
                %513 = vst [vmem:[%s505 + $0x18] sm:%s497] %v512
              $region97: #{transformer_encoder_forward.5} parent=91 // loop_footer
                %s503 = sadd.s32 1, %s499
              $region98: #{transformer_encoder_forward.5} parent=91 // loop_footer_branch
                %498 = sbr.rel target = $region94
              $region99: #{transformer_encoder_forward.5} parent=91 // loop_exit
                _
            $region92: #{transformer_encoder_forward.5} parent=83 // pred_fallthru
              _
          $region84: #{transformer_encoder_forward.5} parent=79 // pred_fallthru
            _
          %534 = vnop
        $region80: #{transformer_encoder_forward.5} parent=75 // pred_fallthru
          _
        // Predicated region
        $region115: #{transformer_encoder_forward.5} parent=75 // pred_check
          %p535 = pneg %p69
        $region116: #{transformer_encoder_forward.5} parent=75 // pred_check_branch
          %537 = sbr.rel (%p535) target = $region118
        $region117: #{transformer_encoder_forward.5} parent=75 // pred_region
          %s538 = sand.u32 %s59, 1
          %s539 = sand.u32 %s59, 1
          %s540 = smul.addr %s539, 16
          %s541 = scalar_lea.vmem [#allocation3], %s540
          %s542 = smul.u32 2, %s23
          %s543 = smul.addr %s542, 4
          %s544 = scalar_lea.vmem %s1, %s543
          // Predicated region
          $region119: #{transformer_encoder_forward.5} parent=117 // pred_check
            _
          $region120: #{transformer_encoder_forward.5} parent=117 // pred_check_branch
            %546 = sbr.rel (0) target = $region122
          $region121: #{transformer_encoder_forward.5} parent=117 // pred_region
            // Predicated region
            $region123: #{transformer_encoder_forward.5} parent=121 // pred_check
              _
            $region124: #{transformer_encoder_forward.5} parent=121 // pred_check_branch
              %548 = sbr.rel target = $region126
            $region125: #{transformer_encoder_forward.5} parent=121 // pred_region
              // Predicated region
              $region138: #{transformer_encoder_forward.5} parent=125 // pred_check
                _
              $region139: #{transformer_encoder_forward.5} parent=125 // pred_check_branch
                %570 = sbr.rel (0) target = $region141
              $region140: #{transformer_encoder_forward.5} parent=125 // pred_region
                loop: start=0, step=1, limit=1
                $region142: #{transformer_encoder_forward.5} parent=140 // loop_pre_header
                  _
                $region143: #{transformer_encoder_forward.5} parent=140 // loop_header
                  %s572 = sphi 0, %s576
                  %p573 = scmp.ge.s32.totalorder %s572, 1
                  %s577 = sphi %s544, %s544
                  %s578 = sphi %s541, %s541
                $region144: #{transformer_encoder_forward.5} parent=140 // loop_header_branch
                  %575 = sbr.rel (%p573) target = $region148
                $region145: #{transformer_encoder_forward.5} parent=140 // loop_body
                  _
                $region146: #{transformer_encoder_forward.5} parent=140 // loop_footer
                  %s576 = sadd.s32 1, %s572
                $region147: #{transformer_encoder_forward.5} parent=140 // loop_footer_branch
                  %571 = sbr.rel target = $region143
                $region148: #{transformer_encoder_forward.5} parent=140 // loop_exit
                  _
                %s580 = ssub.s32 16, 1
                loop: start=0, step=1, limit=1
                $region149: #{transformer_encoder_forward.5} parent=140 // loop_pre_header
                  _
                $region150: #{transformer_encoder_forward.5} parent=140 // loop_header
                  %s582 = sphi 0, %s586
                  %p583 = scmp.ge.s32.totalorder %s582, 1
                  %s587 = sphi %s544, %s544
                  %s588 = sphi %s541, %s541
                $region151: #{transformer_encoder_forward.5} parent=140 // loop_header_branch
                  %585 = sbr.rel (%p583) target = $region155
                $region152: #{transformer_encoder_forward.5} parent=140 // loop_body
                  %v589 = vld [vmem:[%s587] sm:%s580]
                  %590 = vst [vmem:[%s588] sm:%s580] %v589
                  %v591 = vld [vmem:[%s587 + $0x4] sm:%s580]
                  %592 = vst [vmem:[%s588 + $0x4] sm:%s580] %v591
                  %v593 = vld [vmem:[%s587 + $0x10] sm:%s580]
                  %594 = vst [vmem:[%s588 + $0x8] sm:%s580] %v593
                  %v595 = vld [vmem:[%s587 + $0x14] sm:%s580]
                  %596 = vst [vmem:[%s588 + $0xc] sm:%s580] %v595
                $region153: #{transformer_encoder_forward.5} parent=140 // loop_footer
                  %s586 = sadd.s32 1, %s582
                $region154: #{transformer_encoder_forward.5} parent=140 // loop_footer_branch
                  %581 = sbr.rel target = $region150
                $region155: #{transformer_encoder_forward.5} parent=140 // loop_exit
                  _
              $region141: #{transformer_encoder_forward.5} parent=125 // pred_fallthru
                _
            $region126: #{transformer_encoder_forward.5} parent=121 // pred_fallthru
              _
            // Predicated region
            $region127: #{transformer_encoder_forward.5} parent=121 // pred_check
              _
            $region128: #{transformer_encoder_forward.5} parent=121 // pred_check_branch
              %550 = sbr.rel (0) target = $region130
            $region129: #{transformer_encoder_forward.5} parent=121 // pred_region
              %s552 = ssub.s32 16, 1
              loop: start=0, step=1, limit=1
              $region131: #{transformer_encoder_forward.5} parent=129 // loop_pre_header
                _
              $region132: #{transformer_encoder_forward.5} parent=129 // loop_header
                %s554 = sphi 0, %s558
                %p555 = scmp.ge.s32.totalorder %s554, 1
                %s559 = sphi %s544, %s544
                %s560 = sphi %s541, %s541
              $region133: #{transformer_encoder_forward.5} parent=129 // loop_header_branch
                %557 = sbr.rel (%p555) target = $region137
              $region134: #{transformer_encoder_forward.5} parent=129 // loop_body
                %v561 = vld [vmem:[%s559] sm:%s552]
                %562 = vst [vmem:[%s560] sm:%s552] %v561
                %v563 = vld [vmem:[%s559 + $0x4] sm:%s552]
                %564 = vst [vmem:[%s560 + $0x4] sm:%s552] %v563
                %v565 = vld [vmem:[%s559 + $0x10] sm:%s552]
                %566 = vst [vmem:[%s560 + $0x8] sm:%s552] %v565
                %v567 = vld [vmem:[%s559 + $0x14] sm:%s552]
                %568 = vst [vmem:[%s560 + $0xc] sm:%s552] %v567
              $region135: #{transformer_encoder_forward.5} parent=129 // loop_footer
                %s558 = sadd.s32 1, %s554
              $region136: #{transformer_encoder_forward.5} parent=129 // loop_footer_branch
                %553 = sbr.rel target = $region132
              $region137: #{transformer_encoder_forward.5} parent=129 // loop_exit
                _
            $region130: #{transformer_encoder_forward.5} parent=121 // pred_fallthru
              _
          $region122: #{transformer_encoder_forward.5} parent=117 // pred_fallthru
            _
          %597 = vnop
        $region118: #{transformer_encoder_forward.5} parent=75 // pred_fallthru
          _
      $region76: #{transformer_encoder_forward.5} parent=5 // pred_fallthru
        _
      %p598 = scmp.le.s32.totalorder 1, %s23
      %p599 = scmp.lt.s32.totalorder %s23, 3
      %p600 = pnand %p598, %p599
      %p601 = pneg %p600
      // Predicated region
      $region156: #{transformer_encoder_forward.5} parent=5 // pred_check
        _
      $region157: #{transformer_encoder_forward.5} parent=5 // pred_check_branch
        %603 = sbr.rel (%p600) target = $region159
      $region158: #{transformer_encoder_forward.5} parent=5 // pred_region
        %s604 = ssub.s32 %s23, 1
        %s605 = sand.u32 %s36, 1
        %s606 = sand.u32 %s36, 1
        %s607 = smul.addr %s606, 32
        %s608 = scalar_lea.vmem [#allocation2], %s607
        // Predicated region
        $region160: #{transformer_encoder_forward.5} parent=158 // pred_check
          %p609 = pneg %p49
        $region161: #{transformer_encoder_forward.5} parent=158 // pred_check_branch
          %611 = sbr.rel (%p609) target = $region163
        $region162: #{transformer_encoder_forward.5} parent=158 // pred_region
          _
        $region163: #{transformer_encoder_forward.5} parent=158 // pred_fallthru
          _
        %s612 = sand.u32 %s62, 1
        %s613 = sand.u32 %s62, 1
        %s614 = smul.addr %s613, 16
        %s615 = scalar_lea.vmem [#allocation3], %s614
        // Predicated region
        $region164: #{transformer_encoder_forward.5} parent=158 // pred_check
          %p616 = pneg %p75
        $region165: #{transformer_encoder_forward.5} parent=158 // pred_check_branch
          %618 = sbr.rel (%p616) target = $region167
        $region166: #{transformer_encoder_forward.5} parent=158 // pred_region
          _
        $region167: #{transformer_encoder_forward.5} parent=158 // pred_fallthru
          _
        %s619 = sand.u32 %s36, 1
        %s620 = sand.u32 %s36, 1
        %s621 = smul.addr %s620, 32
        %s622 = scalar_lea.vmem [#allocation2], %s621
        %p623 = pneg %p49
        %p624 = pneg %p46
        %s625 = sand.u32 %s62, 1
        %s626 = sand.u32 %s62, 1
        %s627 = smul.addr %s626, 16
        %s628 = scalar_lea.vmem [#allocation3], %s627
        %p629 = pneg %p75
        %p630 = pneg %p72
        %p631 = pneg %p96
        %p632 = pneg %p93
        %p633 = pneg %p117
        %p634 = pneg %p114
        %p635 = pneg %p138
        %p636 = pneg %p135
        %p637 = pneg %p159
        %p638 = pneg %p156
        %p639 = pneg %p180
        %p640 = pneg %p177
        %p641 = pneg %p201
        %p642 = pneg %p198
        %p643 = pneg %p222
        %p644 = pneg %p219
        %p645 = pneg %p243
        %p646 = pneg %p240
        %p647 = pneg %p264
        %p648 = pneg %p261
        %p649 = pneg %p285
        %p650 = pneg %p282
        %p651 = pneg %p306
        %p652 = pneg %p303
        %p653 = pneg %p327
        %p654 = pneg %p324
        %p655 = pneg %p348
        %p656 = pneg %p345
        %p657 = pneg %p369
        %p658 = pneg %p366
        %p659 = pneg %p390
        %p660 = pneg %p387
        %p661 = pneg %p416
        %p662 = pneg %p413
        %s663 = sand.u32 %s403, 1
        %s664 = sand.u32 %s403, 1
        %s665 = smul.addr %s664, 32
        %s666 = scalar_lea.vmem [#allocation4], %s665
        %s667 = smul.u32 2, %s28
        %s668 = smul.u32 2, %s28
        %s669 = smul.u32 2, %s28
        %v671 = vld [vmem:[%s608] sm:$0xff]
        %v672 = vld [vmem:[%s608 + $0x8] sm:$0xff]
        %v673 = vld [vmem:[%s608 + $0x10] sm:$0xff]
        %v674 = vld [vmem:[%s608 + $0x18] sm:$0xff]
        %v675 = vld [vmem:[%s615] sm:$0xf]
        %v676 = vld [vmem:[%s615 + $0x4] sm:$0xf]
        %v677 = vld [vmem:[%s615 + $0x8] sm:$0xf]
        %v678 = vld [vmem:[%s615 + $0xc] sm:$0xf]
        %v679 = vunpack.c.l.bf16 %v675
        %v680 = vunpack.c.l.bf16 %v676
        %v681 = vunpack.c.l.bf16 %v677
        %v682 = vunpack.c.l.bf16 %v678
        %v683 = vld [vmem:[%s2] sm:$0xf]
        %v684 = vld [vmem:[%s2 + $0x4] sm:$0xf]
        %v685 = vld [vmem:[%s2 + $0x8] sm:$0xf]
        %v686 = vld [vmem:[%s2 + $0xc] sm:$0xf]
        %v687 = vld [vmem:[%s2 + $0x10] sm:$0xf]
        %v688 = vld [vmem:[%s2 + $0x14] sm:$0xf]
        %v689 = vld [vmem:[%s2 + $0x18] sm:$0xf]
        %v690 = vld [vmem:[%s2 + $0x1c] sm:$0xf]
        %v691 = vld [vmem:[%s3] sm:$0xf]
        %v692 = vld [vmem:[%s3 + $0x4] sm:$0xf]
        %v693 = vld [vmem:[%s3 + $0x8] sm:$0xf]
        %v694 = vld [vmem:[%s3 + $0xc] sm:$0xf]
        %v695 = vld [vmem:[%s3 + $0x10] sm:$0xf]
        %v696 = vld [vmem:[%s3 + $0x14] sm:$0xf]
        %v697 = vld [vmem:[%s3 + $0x18] sm:$0xf]
        %v698 = vld [vmem:[%s3 + $0x1c] sm:$0xf]
        %v699 = vadd.f32 %v671, %v679
        %v700 = vadd.f32 %v672, %v680
        %v701 = vadd.f32 %v673, %v681
        %v702 = vadd.f32 %v674, %v682
        %v703 = vpack.c.bf16 %v700, %v699
        %v704 = vpack.c.bf16 %v702, %v701
        %v705 = vld [vmem:[%s5] sm:$0xf]
        %v706 = vld [vmem:[%s5 + $0x4] sm:$0xf]
        %v707 = vld [vmem:[%s5 + $0x8] sm:$0xf]
        %v708 = vld [vmem:[%s5 + $0xc] sm:$0xf]
        %v709 = vld [vmem:[%s6] sm:$0x1]
        %v711 = vperm.slane %v709, 0
        %v717 = vunpack.c.l.b16 %v705
        %v718 = vunpack.c.l.b16 %v706
        %v719 = vunpack.c.l.b16 %v707
        %v720 = vunpack.c.l.b16 %v708
        %v721 = vpack.c.b16 %v718, %v717
        %v722 = vpack.c.b16 %v720, %v719
        %vm725 = vcmask 261120
        %v727 = vsel %vm725, %v703, 0
        %v730 = vsel %vm725, %v704, 0
        %732 = vmatpush.bf16.msra.mxu0 0
        %733 = vmatpush.bf16.msra.mxu0 0
        %734 = vmatpush.bf16.msra.mxu0 0
        %735 = vmatpush.bf16.msra.mxu0 0
        %736 = vmatpush.bf16.msra.mxu0 0
        %737 = vmatpush.bf16.msra.mxu0 0
        %738 = vmatpush.bf16.msra.mxu0 %v722
        %739 = vmatpush.bf16.msra.mxu0 %v721
        %740 = vmatmul.bf16.gmra.mxu0 %v727
        %v741 = vpop.f32.mrf.mxu0
        %v742 = vadd.f32 %v711, %v741
        %v743 = vpop.f32.mrf.mxu0
        %v744 = vadd.f32 %v711, %v743
        %745 = vmatmul.bf16.gmra.mxu0 %v730
        %v746 = vpop.f32.mrf.mxu0
        %v747 = vadd.f32 %v711, %v746
        %v748 = vpop.f32.mrf.mxu0
        %v749 = vadd.f32 %v711, %v748
        %750 = vdwg.mxu0
        %v751 = vmul.f32 %v742, 0.35355338
        %v752 = vmul.f32 %v744, 0.35355338
        %v753 = vmul.f32 %v747, 0.35355338
        %v754 = vmul.f32 %v749, 0.35355338
        %v755 = vpack.c.bf16 %v751, %v751
        %v756 = vpack.c.bf16 %v752, %v752
        %v757 = vpack.c.bf16 %v753, %v753
        %v758 = vpack.c.bf16 %v754, %v754
        %763 = vrot.lane.b32.xlu0 %v755, 120
        %v764 = vpop.permute.xlu0 %763
        %765 = vrot.lane.b32.xlu0 %v756, 120
        %v766 = vpop.permute.xlu0 %765
        %767 = vrot.lane.b32.xlu0 %v757, 120
        %v768 = vpop.permute.xlu0 %767
        %769 = vrot.lane.b32.xlu0 %v758, 120
        %v770 = vpop.permute.xlu0 %769
        %771 = vrot.lane.b32.xlu0 %v755, 112
        %v772 = vpop.permute.xlu0 %771
        %773 = vrot.lane.b32.xlu0 %v756, 112
        %v774 = vpop.permute.xlu0 %773
        %775 = vrot.lane.b32.xlu0 %v757, 112
        %v776 = vpop.permute.xlu0 %775
        %777 = vrot.lane.b32.xlu0 %v758, 112
        %v778 = vpop.permute.xlu0 %777
        %779 = vrot.lane.b32.xlu0 %v755, 104
        %v780 = vpop.permute.xlu0 %779
        %781 = vrot.lane.b32.xlu0 %v756, 104
        %v782 = vpop.permute.xlu0 %781
        %783 = vrot.lane.b32.xlu0 %v757, 104
        %v784 = vpop.permute.xlu0 %783
        %785 = vrot.lane.b32.xlu0 %v758, 104
        %v786 = vpop.permute.xlu0 %785
        %795 = vrot.lane.b32.xlu0 %v683, 120
        %v796 = vpop.permute.xlu0 %795
        %797 = vrot.lane.b32.xlu0 %v684, 120
        %v798 = vpop.permute.xlu0 %797
        %799 = vrot.lane.b32.xlu0 %v685, 120
        %v800 = vpop.permute.xlu0 %799
        %801 = vrot.lane.b32.xlu0 %v686, 120
        %v802 = vpop.permute.xlu0 %801
        %803 = vrot.lane.b32.xlu0 %v687, 120
        %v804 = vpop.permute.xlu0 %803
        %805 = vrot.lane.b32.xlu0 %v688, 120
        %v806 = vpop.permute.xlu0 %805
        %807 = vrot.lane.b32.xlu0 %v689, 120
        %v808 = vpop.permute.xlu0 %807
        %809 = vrot.lane.b32.xlu0 %v690, 120
        %v810 = vpop.permute.xlu0 %809
        %811 = vrot.lane.b32.xlu0 %v683, 112
        %v812 = vpop.permute.xlu0 %811
        %813 = vrot.lane.b32.xlu0 %v684, 112
        %v814 = vpop.permute.xlu0 %813
        %815 = vrot.lane.b32.xlu0 %v685, 112
        %v816 = vpop.permute.xlu0 %815
        %817 = vrot.lane.b32.xlu0 %v686, 112
        %v818 = vpop.permute.xlu0 %817
        %819 = vrot.lane.b32.xlu0 %v687, 112
        %v820 = vpop.permute.xlu0 %819
        %821 = vrot.lane.b32.xlu0 %v688, 112
        %v822 = vpop.permute.xlu0 %821
        %823 = vrot.lane.b32.xlu0 %v689, 112
        %v824 = vpop.permute.xlu0 %823
        %825 = vrot.lane.b32.xlu0 %v690, 112
        %v826 = vpop.permute.xlu0 %825
        %827 = vrot.lane.b32.xlu0 %v683, 104
        %v828 = vpop.permute.xlu0 %827
        %829 = vrot.lane.b32.xlu0 %v684, 104
        %v830 = vpop.permute.xlu0 %829
        %831 = vrot.lane.b32.xlu0 %v685, 104
        %v832 = vpop.permute.xlu0 %831
        %833 = vrot.lane.b32.xlu0 %v686, 104
        %v834 = vpop.permute.xlu0 %833
        %835 = vrot.lane.b32.xlu0 %v687, 104
        %v836 = vpop.permute.xlu0 %835
        %837 = vrot.lane.b32.xlu0 %v688, 104
        %v838 = vpop.permute.xlu0 %837
        %839 = vrot.lane.b32.xlu0 %v689, 104
        %v840 = vpop.permute.xlu0 %839
        %841 = vrot.lane.b32.xlu0 %v690, 104
        %v842 = vpop.permute.xlu0 %841
        %851 = vrot.lane.b32.xlu0 %v691, 120
        %v852 = vpop.permute.xlu0 %851
        %853 = vrot.lane.b32.xlu0 %v692, 120
        %v854 = vpop.permute.xlu0 %853
        %855 = vrot.lane.b32.xlu0 %v693, 120
        %v856 = vpop.permute.xlu0 %855
        %857 = vrot.lane.b32.xlu0 %v694, 120
        %v858 = vpop.permute.xlu0 %857
        %859 = vrot.lane.b32.xlu0 %v695, 120
        %v860 = vpop.permute.xlu0 %859
        %861 = vrot.lane.b32.xlu0 %v696, 120
        %v862 = vpop.permute.xlu0 %861
        %863 = vrot.lane.b32.xlu0 %v697, 120
        %v864 = vpop.permute.xlu0 %863
        %865 = vrot.lane.b32.xlu0 %v698, 120
        %v866 = vpop.permute.xlu0 %865
        %867 = vrot.lane.b32.xlu0 %v691, 112
        %v868 = vpop.permute.xlu0 %867
        %869 = vrot.lane.b32.xlu0 %v692, 112
        %v870 = vpop.permute.xlu0 %869
        %871 = vrot.lane.b32.xlu0 %v693, 112
        %v872 = vpop.permute.xlu0 %871
        %873 = vrot.lane.b32.xlu0 %v694, 112
        %v874 = vpop.permute.xlu0 %873
        %875 = vrot.lane.b32.xlu0 %v695, 112
        %v876 = vpop.permute.xlu0 %875
        %877 = vrot.lane.b32.xlu0 %v696, 112
        %v878 = vpop.permute.xlu0 %877
        %879 = vrot.lane.b32.xlu0 %v697, 112
        %v880 = vpop.permute.xlu0 %879
        %881 = vrot.lane.b32.xlu0 %v698, 112
        %v882 = vpop.permute.xlu0 %881
        %883 = vrot.lane.b32.xlu0 %v691, 104
        %v884 = vpop.permute.xlu0 %883
        %885 = vrot.lane.b32.xlu0 %v692, 104
        %v886 = vpop.permute.xlu0 %885
        %887 = vrot.lane.b32.xlu0 %v693, 104
        %v888 = vpop.permute.xlu0 %887
        %889 = vrot.lane.b32.xlu0 %v694, 104
        %v890 = vpop.permute.xlu0 %889
        %891 = vrot.lane.b32.xlu0 %v695, 104
        %v892 = vpop.permute.xlu0 %891
        %893 = vrot.lane.b32.xlu0 %v696, 104
        %v894 = vpop.permute.xlu0 %893
        %895 = vrot.lane.b32.xlu0 %v697, 104
        %v896 = vpop.permute.xlu0 %895
        %897 = vrot.lane.b32.xlu0 %v698, 104
        %v898 = vpop.permute.xlu0 %897
        %v899 = vunpack.c.l.b16 %v755
        %v900 = vunpack.c.l.b16 %v756
        %v901 = vpack.c.b16 %v900, %v899
        %v902 = vunpack.c.l.b16 %v683
        %v903 = vunpack.c.l.b16 %v684
        %v904 = vunpack.c.l.b16 %v685
        %v905 = vunpack.c.l.b16 %v686
        %v906 = vpack.c.b16 %v903, %v902
        %v907 = vpack.c.b16 %v905, %v904
        %vm908 = vcmask 64512
        %v910 = vsel %vm908, %v901, 0
        %v913 = vsel %vm908, %v906, 0
        %v916 = vsel %vm908, %v907, 0
        %918 = vmatpush.bf16.xpose.msra.mxu0 0
        %919 = vmatpush.bf16.xpose.msra.mxu0 0
        %920 = vmatpush.bf16.xpose.msra.mxu0 0
        %921 = vmatpush.bf16.xpose.msra.mxu0 0
        %922 = vmatpush.bf16.xpose.msra.mxu0 0
        %923 = vmatpush.bf16.xpose.msra.mxu0 0
        %924 = vmatpush.bf16.xpose.msra.mxu0 %v916
        %925 = vmatpush.bf16.xpose.msra.mxu0 %v913
        %926 = vmatmul.bf16.gmra.mxu0 %v910
        %v927 = vpop.f32.mrf.mxu0
        %v928 = vadd.f32 0.0, %v927
        %v929 = vpop.f32.mrf.mxu0
        %v930 = vadd.f32 0.0, %v929
        %931 = vdwg.mxu0
        %v932 = vunpack.c.l.b16 %v757
        %v933 = vunpack.c.l.b16 %v758
        %v934 = vpack.c.b16 %v933, %v932
        %v935 = vunpack.c.l.b16 %v687
        %v936 = vunpack.c.l.b16 %v688
        %v937 = vunpack.c.l.b16 %v689
        %v938 = vunpack.c.l.b16 %v690
        %v939 = vpack.c.b16 %v936, %v935
        %v940 = vpack.c.b16 %v938, %v937
        %v942 = vsel %vm908, %v934, 0
        %v945 = vsel %vm908, %v939, 0
        %v948 = vsel %vm908, %v940, 0
        %950 = vmatpush.bf16.xpose.msra.mxu0 0
        %951 = vmatpush.bf16.xpose.msra.mxu0 0
        %952 = vmatpush.bf16.xpose.msra.mxu0 0
        %953 = vmatpush.bf16.xpose.msra.mxu0 0
        %954 = vmatpush.bf16.xpose.msra.mxu0 0
        %955 = vmatpush.bf16.xpose.msra.mxu0 0
        %956 = vmatpush.bf16.xpose.msra.mxu0 %v948
        %957 = vmatpush.bf16.xpose.msra.mxu0 %v945
        %958 = vmatmul.bf16.gmra.mxu0 %v942
        %v959 = vpop.f32.mrf.mxu0
        %v960 = vadd.f32 0.0, %v959
        %v961 = vpop.f32.mrf.mxu0
        %v962 = vadd.f32 0.0, %v961
        %963 = vdwg.mxu0
        %v964 = vunpack.c.l.b16 %v764
        %v965 = vunpack.c.l.b16 %v766
        %v966 = vpack.c.b16 %v965, %v964
        %v967 = vunpack.c.l.b16 %v796
        %v968 = vunpack.c.l.b16 %v798
        %v969 = vunpack.c.l.b16 %v800
        %v970 = vunpack.c.l.b16 %v802
        %v971 = vpack.c.b16 %v968, %v967
        %v972 = vpack.c.b16 %v970, %v969
        %v974 = vsel %vm908, %v966, 0
        %v977 = vsel %vm908, %v971, 0
        %v980 = vsel %vm908, %v972, 0
        %982 = vmatpush.bf16.xpose.msra.mxu0 0
        %983 = vmatpush.bf16.xpose.msra.mxu0 0
        %984 = vmatpush.bf16.xpose.msra.mxu0 0
        %985 = vmatpush.bf16.xpose.msra.mxu0 0
        %986 = vmatpush.bf16.xpose.msra.mxu0 0
        %987 = vmatpush.bf16.xpose.msra.mxu0 0
        %988 = vmatpush.bf16.xpose.msra.mxu0 %v980
        %989 = vmatpush.bf16.xpose.msra.mxu0 %v977
        %990 = vmatmul.bf16.gmra.mxu0 %v974
        %v991 = vpop.f32.mrf.mxu0
        %v992 = vadd.f32 0.0, %v991
        %v993 = vpop.f32.mrf.mxu0
        %v994 = vadd.f32 0.0, %v993
        %995 = vdwg.mxu0
        %v996 = vunpack.c.l.b16 %v768
        %v997 = vunpack.c.l.b16 %v770
        %v998 = vpack.c.b16 %v997, %v996
        %v999 = vunpack.c.l.b16 %v804
        %v1000 = vunpack.c.l.b16 %v806
        %v1001 = vunpack.c.l.b16 %v808
        %v1002 = vunpack.c.l.b16 %v810
        %v1003 = vpack.c.b16 %v1000, %v999
        %v1004 = vpack.c.b16 %v1002, %v1001
        %v1006 = vsel %vm908, %v998, 0
        %v1009 = vsel %vm908, %v1003, 0
        %v1012 = vsel %vm908, %v1004, 0
        %1014 = vmatpush.bf16.xpose.msra.mxu0 0
        %1015 = vmatpush.bf16.xpose.msra.mxu0 0
        %1016 = vmatpush.bf16.xpose.msra.mxu0 0
        %1017 = vmatpush.bf16.xpose.msra.mxu0 0
        %1018 = vmatpush.bf16.xpose.msra.mxu0 0
        %1019 = vmatpush.bf16.xpose.msra.mxu0 0
        %1020 = vmatpush.bf16.xpose.msra.mxu0 %v1012
        %1021 = vmatpush.bf16.xpose.msra.mxu0 %v1009
        %1022 = vmatmul.bf16.gmra.mxu0 %v1006
        %v1023 = vpop.f32.mrf.mxu0
        %v1024 = vadd.f32 0.0, %v1023
        %v1025 = vpop.f32.mrf.mxu0
        %v1026 = vadd.f32 0.0, %v1025
        %1027 = vdwg.mxu0
        %v1028 = vunpack.c.l.b16 %v772
        %v1029 = vunpack.c.l.b16 %v774
        %v1030 = vpack.c.b16 %v1029, %v1028
        %v1031 = vunpack.c.l.b16 %v812
        %v1032 = vunpack.c.l.b16 %v814
        %v1033 = vunpack.c.l.b16 %v816
        %v1034 = vunpack.c.l.b16 %v818
        %v1035 = vpack.c.b16 %v1032, %v1031
        %v1036 = vpack.c.b16 %v1034, %v1033
        %v1038 = vsel %vm908, %v1030, 0
        %v1041 = vsel %vm908, %v1035, 0
        %v1044 = vsel %vm908, %v1036, 0
        %1046 = vmatpush.bf16.xpose.msra.mxu0 0
        %1047 = vmatpush.bf16.xpose.msra.mxu0 0
        %1048 = vmatpush.bf16.xpose.msra.mxu0 0
        %1049 = vmatpush.bf16.xpose.msra.mxu0 0
        %1050 = vmatpush.bf16.xpose.msra.mxu0 0
        %1051 = vmatpush.bf16.xpose.msra.mxu0 0
        %1052 = vmatpush.bf16.xpose.msra.mxu0 %v1044
        %1053 = vmatpush.bf16.xpose.msra.mxu0 %v1041
        %1054 = vmatmul.bf16.gmra.mxu0 %v1038
        %v1055 = vpop.f32.mrf.mxu0
        %v1056 = vadd.f32 0.0, %v1055
        %v1057 = vpop.f32.mrf.mxu0
        %v1058 = vadd.f32 0.0, %v1057
        %1059 = vdwg.mxu0
        %v1060 = vunpack.c.l.b16 %v776
        %v1061 = vunpack.c.l.b16 %v778
        %v1062 = vpack.c.b16 %v1061, %v1060
        %v1063 = vunpack.c.l.b16 %v820
        %v1064 = vunpack.c.l.b16 %v822
        %v1065 = vunpack.c.l.b16 %v824
        %v1066 = vunpack.c.l.b16 %v826
        %v1067 = vpack.c.b16 %v1064, %v1063
        %v1068 = vpack.c.b16 %v1066, %v1065
        %v1070 = vsel %vm908, %v1062, 0
        %v1073 = vsel %vm908, %v1067, 0
        %v1076 = vsel %vm908, %v1068, 0
        %1078 = vmatpush.bf16.xpose.msra.mxu0 0
        %1079 = vmatpush.bf16.xpose.msra.mxu0 0
        %1080 = vmatpush.bf16.xpose.msra.mxu0 0
        %1081 = vmatpush.bf16.xpose.msra.mxu0 0
        %1082 = vmatpush.bf16.xpose.msra.mxu0 0
        %1083 = vmatpush.bf16.xpose.msra.mxu0 0
        %1084 = vmatpush.bf16.xpose.msra.mxu0 %v1076
        %1085 = vmatpush.bf16.xpose.msra.mxu0 %v1073
        %1086 = vmatmul.bf16.gmra.mxu0 %v1070
        %v1087 = vpop.f32.mrf.mxu0
        %v1088 = vadd.f32 0.0, %v1087
        %v1089 = vpop.f32.mrf.mxu0
        %v1090 = vadd.f32 0.0, %v1089
        %1091 = vdwg.mxu0
        %v1092 = vunpack.c.l.b16 %v780
        %v1093 = vunpack.c.l.b16 %v782
        %v1094 = vpack.c.b16 %v1093, %v1092
        %v1095 = vunpack.c.l.b16 %v828
        %v1096 = vunpack.c.l.b16 %v830
        %v1097 = vunpack.c.l.b16 %v832
        %v1098 = vunpack.c.l.b16 %v834
        %v1099 = vpack.c.b16 %v1096, %v1095
        %v1100 = vpack.c.b16 %v1098, %v1097
        %v1102 = vsel %vm908, %v1094, 0
        %v1105 = vsel %vm908, %v1099, 0
        %v1108 = vsel %vm908, %v1100, 0
        %1110 = vmatpush.bf16.xpose.msra.mxu0 0
        %1111 = vmatpush.bf16.xpose.msra.mxu0 0
        %1112 = vmatpush.bf16.xpose.msra.mxu0 0
        %1113 = vmatpush.bf16.xpose.msra.mxu0 0
        %1114 = vmatpush.bf16.xpose.msra.mxu0 0
        %1115 = vmatpush.bf16.xpose.msra.mxu0 0
        %1116 = vmatpush.bf16.xpose.msra.mxu0 %v1108
        %1117 = vmatpush.bf16.xpose.msra.mxu0 %v1105
        %1118 = vmatmul.bf16.gmra.mxu0 %v1102
        %v1119 = vpop.f32.mrf.mxu0
        %v1120 = vadd.f32 0.0, %v1119
        %v1121 = vpop.f32.mrf.mxu0
        %v1122 = vadd.f32 0.0, %v1121
        %1123 = vdwg.mxu0
        %v1124 = vunpack.c.l.b16 %v784
        %v1125 = vunpack.c.l.b16 %v786
        %v1126 = vpack.c.b16 %v1125, %v1124
        %v1127 = vunpack.c.l.b16 %v836
        %v1128 = vunpack.c.l.b16 %v838
        %v1129 = vunpack.c.l.b16 %v840
        %v1130 = vunpack.c.l.b16 %v842
        %v1131 = vpack.c.b16 %v1128, %v1127
        %v1132 = vpack.c.b16 %v1130, %v1129
        %v1134 = vsel %vm908, %v1126, 0
        %v1137 = vsel %vm908, %v1131, 0
        %v1140 = vsel %vm908, %v1132, 0
        %1142 = vmatpush.bf16.xpose.msra.mxu0 0
        %1143 = vmatpush.bf16.xpose.msra.mxu0 0
        %1144 = vmatpush.bf16.xpose.msra.mxu0 0
        %1145 = vmatpush.bf16.xpose.msra.mxu0 0
        %1146 = vmatpush.bf16.xpose.msra.mxu0 0
        %1147 = vmatpush.bf16.xpose.msra.mxu0 0
        %1148 = vmatpush.bf16.xpose.msra.mxu0 %v1140
        %1149 = vmatpush.bf16.xpose.msra.mxu0 %v1137
        %1150 = vmatmul.bf16.gmra.mxu0 %v1134
        %v1151 = vpop.f32.mrf.mxu0
        %v1152 = vadd.f32 0.0, %v1151
        %v1153 = vpop.f32.mrf.mxu0
        %v1154 = vadd.f32 0.0, %v1153
        %1155 = vdwg.mxu0
        %v1156 = vld [vmem:[%s4] sm:$0x1]
        %v1157 = vld [vmem:[%s4 + $0x1] sm:$0x1]
        %v1160 = vperm.slane %v1156, 0
        %v1161 = vperm.slane %v1157, 0
        %v1164 = vadd.f32 %v928, %v1160
        %v1165 = vadd.f32 %v930, %v1160
        %v1166 = vadd.f32 %v960, %v1161
        %v1167 = vadd.f32 %v962, %v1161
        %v1168 = vadd.f32 %v992, %v1160
        %v1169 = vadd.f32 %v994, %v1160
        %v1170 = vadd.f32 %v1024, %v1161
        %v1171 = vadd.f32 %v1026, %v1161
        %v1172 = vadd.f32 %v1056, %v1160
        %v1173 = vadd.f32 %v1058, %v1160
        %v1174 = vadd.f32 %v1088, %v1161
        %v1175 = vadd.f32 %v1090, %v1161
        %v1176 = vadd.f32 %v1120, %v1160
        %v1177 = vadd.f32 %v1122, %v1160
        %v1178 = vadd.f32 %v1152, %v1161
        %v1179 = vadd.f32 %v1154, %v1161
        %v1180 = vsel %vm725, %v1164, -inf
        %1181 = vmax.xlane.f32.xlu0 %v1180
        %v1182 = vpop.xlane.xlu0 %1181
        %v1183 = vsel %vm725, %v1165, -inf
        %1184 = vmax.xlane.f32.xlu0 %v1183
        %v1185 = vpop.xlane.xlu0 %1184
        %v1186 = vsel %vm725, %v1166, -inf
        %1187 = vmax.xlane.f32.xlu0 %v1186
        %v1188 = vpop.xlane.xlu0 %1187
        %v1189 = vsel %vm725, %v1167, -inf
        %1190 = vmax.xlane.f32.xlu0 %v1189
        %v1191 = vpop.xlane.xlu0 %1190
        %v1192 = vsel %vm725, %v1168, -inf
        %1193 = vmax.xlane.f32.xlu0 %v1192
        %v1194 = vpop.xlane.xlu0 %1193
        %v1195 = vsel %vm725, %v1169, -inf
        %1196 = vmax.xlane.f32.xlu0 %v1195
        %v1197 = vpop.xlane.xlu0 %1196
        %v1198 = vsel %vm725, %v1170, -inf
        %1199 = vmax.xlane.f32.xlu0 %v1198
        %v1200 = vpop.xlane.xlu0 %1199
        %v1201 = vsel %vm725, %v1171, -inf
        %1202 = vmax.xlane.f32.xlu0 %v1201
        %v1203 = vpop.xlane.xlu0 %1202
        %v1204 = vsel %vm725, %v1172, -inf
        %1205 = vmax.xlane.f32.xlu0 %v1204
        %v1206 = vpop.xlane.xlu0 %1205
        %v1207 = vsel %vm725, %v1173, -inf
        %1208 = vmax.xlane.f32.xlu0 %v1207
        %v1209 = vpop.xlane.xlu0 %1208
        %v1210 = vsel %vm725, %v1174, -inf
        %1211 = vmax.xlane.f32.xlu0 %v1210
        %v1212 = vpop.xlane.xlu0 %1211
        %v1213 = vsel %vm725, %v1175, -inf
        %1214 = vmax.xlane.f32.xlu0 %v1213
        %v1215 = vpop.xlane.xlu0 %1214
        %v1216 = vsel %vm725, %v1176, -inf
        %1217 = vmax.xlane.f32.xlu0 %v1216
        %v1218 = vpop.xlane.xlu0 %1217
        %v1219 = vsel %vm725, %v1177, -inf
        %1220 = vmax.xlane.f32.xlu0 %v1219
        %v1221 = vpop.xlane.xlu0 %1220
        %v1222 = vsel %vm725, %v1178, -inf
        %1223 = vmax.xlane.f32.xlu0 %v1222
        %v1224 = vpop.xlane.xlu0 %1223
        %v1225 = vsel %vm725, %v1179, -inf
        %1226 = vmax.xlane.f32.xlu0 %v1225
        %v1227 = vpop.xlane.xlu0 %1226
        %v1228 = vsub.f32 %v1164, %v1182
        %v1229 = vsub.f32 %v1165, %v1185
        %v1230 = vsub.f32 %v1166, %v1188
        %v1231 = vsub.f32 %v1167, %v1191
        %v1232 = vsub.f32 %v1168, %v1194
        %v1233 = vsub.f32 %v1169, %v1197
        %v1234 = vsub.f32 %v1170, %v1200
        %v1235 = vsub.f32 %v1171, %v1203
        %v1236 = vsub.f32 %v1172, %v1206
        %v1237 = vsub.f32 %v1173, %v1209
        %v1238 = vsub.f32 %v1174, %v1212
        %v1239 = vsub.f32 %v1175, %v1215
        %v1240 = vsub.f32 %v1176, %v1218
        %v1241 = vsub.f32 %v1177, %v1221
        %v1242 = vsub.f32 %v1178, %v1224
        %v1243 = vsub.f32 %v1179, %v1227
        %v1244 = vmul.f32 %v1228, 1.442695
        %v1245 = vpow.pop %v1244
        %v1246 = vmul.f32 %v1229, 1.442695
        %v1247 = vpow.pop %v1246
        %v1248 = vmul.f32 %v1230, 1.442695
        %v1249 = vpow.pop %v1248
        %v1250 = vmul.f32 %v1231, 1.442695
        %v1251 = vpow.pop %v1250
        %v1252 = vmul.f32 %v1232, 1.442695
        %v1253 = vpow.pop %v1252
        %v1254 = vmul.f32 %v1233, 1.442695
        %v1255 = vpow.pop %v1254
        %v1256 = vmul.f32 %v1234, 1.442695
        %v1257 = vpow.pop %v1256
        %v1258 = vmul.f32 %v1235, 1.442695
        %v1259 = vpow.pop %v1258
        %v1260 = vmul.f32 %v1236, 1.442695
        %v1261 = vpow.pop %v1260
        %v1262 = vmul.f32 %v1237, 1.442695
        %v1263 = vpow.pop %v1262
        %v1264 = vmul.f32 %v1238, 1.442695
        %v1265 = vpow.pop %v1264
        %v1266 = vmul.f32 %v1239, 1.442695
        %v1267 = vpow.pop %v1266
        %v1268 = vmul.f32 %v1240, 1.442695
        %v1269 = vpow.pop %v1268
        %v1270 = vmul.f32 %v1241, 1.442695
        %v1271 = vpow.pop %v1270
        %v1272 = vmul.f32 %v1242, 1.442695
        %v1273 = vpow.pop %v1272
        %v1274 = vmul.f32 %v1243, 1.442695
        %v1275 = vpow.pop %v1274
        %v1276 = vsel %vm725, %v1245, 0.0
        %1277 = vadd.xlane.f32.xlu0 %v1276
        %v1278 = vpop.xlane.xlu0 %1277
        %v1279 = vsel %vm725, %v1247, 0.0
        %1280 = vadd.xlane.f32.xlu0 %v1279
        %v1281 = vpop.xlane.xlu0 %1280
        %v1282 = vsel %vm725, %v1249, 0.0
        %1283 = vadd.xlane.f32.xlu0 %v1282
        %v1284 = vpop.xlane.xlu0 %1283
        %v1285 = vsel %vm725, %v1251, 0.0
        %1286 = vadd.xlane.f32.xlu0 %v1285
        %v1287 = vpop.xlane.xlu0 %1286
        %v1288 = vsel %vm725, %v1253, 0.0
        %1289 = vadd.xlane.f32.xlu0 %v1288
        %v1290 = vpop.xlane.xlu0 %1289
        %v1291 = vsel %vm725, %v1255, 0.0
        %1292 = vadd.xlane.f32.xlu0 %v1291
        %v1293 = vpop.xlane.xlu0 %1292
        %v1294 = vsel %vm725, %v1257, 0.0
        %1295 = vadd.xlane.f32.xlu0 %v1294
        %v1296 = vpop.xlane.xlu0 %1295
        %v1297 = vsel %vm725, %v1259, 0.0
        %1298 = vadd.xlane.f32.xlu0 %v1297
        %v1299 = vpop.xlane.xlu0 %1298
        %v1300 = vsel %vm725, %v1261, 0.0
        %1301 = vadd.xlane.f32.xlu0 %v1300
        %v1302 = vpop.xlane.xlu0 %1301
        %v1303 = vsel %vm725, %v1263, 0.0
        %1304 = vadd.xlane.f32.xlu0 %v1303
        %v1305 = vpop.xlane.xlu0 %1304
        %v1306 = vsel %vm725, %v1265, 0.0
        %1307 = vadd.xlane.f32.xlu0 %v1306
        %v1308 = vpop.xlane.xlu0 %1307
        %v1309 = vsel %vm725, %v1267, 0.0
        %1310 = vadd.xlane.f32.xlu0 %v1309
        %v1311 = vpop.xlane.xlu0 %1310
        %v1312 = vsel %vm725, %v1269, 0.0
        %1313 = vadd.xlane.f32.xlu0 %v1312
        %v1314 = vpop.xlane.xlu0 %1313
        %v1315 = vsel %vm725, %v1271, 0.0
        %1316 = vadd.xlane.f32.xlu0 %v1315
        %v1317 = vpop.xlane.xlu0 %1316
        %v1318 = vsel %vm725, %v1273, 0.0
        %1319 = vadd.xlane.f32.xlu0 %v1318
        %v1320 = vpop.xlane.xlu0 %1319
        %v1321 = vsel %vm725, %v1275, 0.0
        %1322 = vadd.xlane.f32.xlu0 %v1321
        %v1323 = vpop.xlane.xlu0 %1322
        %v1324 = vrcp.pop %v1278
        %v1325 = vrcp.pop %v1281
        %v1326 = vrcp.pop %v1284
        %v1327 = vrcp.pop %v1287
        %v1328 = vrcp.pop %v1290
        %v1329 = vrcp.pop %v1293
        %v1330 = vrcp.pop %v1296
        %v1331 = vrcp.pop %v1299
        %v1332 = vrcp.pop %v1302
        %v1333 = vrcp.pop %v1305
        %v1334 = vrcp.pop %v1308
        %v1335 = vrcp.pop %v1311
        %v1336 = vrcp.pop %v1314
        %v1337 = vrcp.pop %v1317
        %v1338 = vrcp.pop %v1320
        %v1339 = vrcp.pop %v1323
        %v1340 = vmul.f32 %v1245, %v1324
        %v1341 = vmul.f32 %v1247, %v1325
        %v1342 = vmul.f32 %v1249, %v1326
        %v1343 = vmul.f32 %v1251, %v1327
        %v1344 = vmul.f32 %v1253, %v1328
        %v1345 = vmul.f32 %v1255, %v1329
        %v1346 = vmul.f32 %v1257, %v1330
        %v1347 = vmul.f32 %v1259, %v1331
        %v1348 = vmul.f32 %v1261, %v1332
        %v1349 = vmul.f32 %v1263, %v1333
        %v1350 = vmul.f32 %v1265, %v1334
        %v1351 = vmul.f32 %v1267, %v1335
        %v1352 = vmul.f32 %v1269, %v1336
        %v1353 = vmul.f32 %v1271, %v1337
        %v1354 = vmul.f32 %v1273, %v1338
        %v1355 = vmul.f32 %v1275, %v1339
        %v1356 = vpack.c.bf16 %v1340, %v1340
        %v1357 = vpack.c.bf16 %v1341, %v1341
        %v1358 = vpack.c.bf16 %v1342, %v1342
        %v1359 = vpack.c.bf16 %v1343, %v1343
        %v1360 = vpack.c.bf16 %v1344, %v1344
        %v1361 = vpack.c.bf16 %v1345, %v1345
        %v1362 = vpack.c.bf16 %v1346, %v1346
        %v1363 = vpack.c.bf16 %v1347, %v1347
        %v1364 = vpack.c.bf16 %v1348, %v1348
        %v1365 = vpack.c.bf16 %v1349, %v1349
        %v1366 = vpack.c.bf16 %v1350, %v1350
        %v1367 = vpack.c.bf16 %v1351, %v1351
        %v1368 = vpack.c.bf16 %v1352, %v1352
        %v1369 = vpack.c.bf16 %v1353, %v1353
        %v1370 = vpack.c.bf16 %v1354, %v1354
        %v1371 = vpack.c.bf16 %v1355, %v1355
        %v1374 = vunpack.c.l.b16 %v1356
        %v1375 = vunpack.c.l.b16 %v1357
        %v1376 = vpack.c.b16 %v1375, %v1374
        %v1377 = vunpack.c.l.b16 %v691
        %v1378 = vunpack.c.l.b16 %v692
        %v1379 = vunpack.c.l.b16 %v693
        %v1380 = vunpack.c.l.b16 %v694
        %v1381 = vpack.c.b16 %v1378, %v1377
        %v1382 = vpack.c.b16 %v1380, %v1379
        %v1386 = vsel %vm725, %v1376, 0
        %1388 = vmatpush.bf16.msra.mxu0 0
        %1389 = vmatpush.bf16.msra.mxu0 0
        %1390 = vmatpush.bf16.msra.mxu0 0
        %1391 = vmatpush.bf16.msra.mxu0 0
        %1392 = vmatpush.bf16.msra.mxu0 0
        %1393 = vmatpush.bf16.msra.mxu0 0
        %1394 = vmatpush.bf16.msra.mxu0 %v1382
        %1395 = vmatpush.bf16.msra.mxu0 %v1381
        %1396 = vmatmul.bf16.gmra.mxu0 %v1386
        %v1397 = vpop.f32.mrf.mxu0
        %v1398 = vadd.f32 0.0, %v1397
        %v1399 = vpop.f32.mrf.mxu0
        %v1400 = vadd.f32 0.0, %v1399
        %1401 = vdwg.mxu0
        %v1404 = vunpack.c.l.b16 %v1358
        %v1405 = vunpack.c.l.b16 %v1359
        %v1406 = vpack.c.b16 %v1405, %v1404
        %v1407 = vunpack.c.l.b16 %v695
        %v1408 = vunpack.c.l.b16 %v696
        %v1409 = vunpack.c.l.b16 %v697
        %v1410 = vunpack.c.l.b16 %v698
        %v1411 = vpack.c.b16 %v1408, %v1407
        %v1412 = vpack.c.b16 %v1410, %v1409
        %v1416 = vsel %vm725, %v1406, 0
        %1418 = vmatpush.bf16.msra.mxu0 0
        %1419 = vmatpush.bf16.msra.mxu0 0
        %1420 = vmatpush.bf16.msra.mxu0 0
        %1421 = vmatpush.bf16.msra.mxu0 0
        %1422 = vmatpush.bf16.msra.mxu0 0
        %1423 = vmatpush.bf16.msra.mxu0 0
        %1424 = vmatpush.bf16.msra.mxu0 %v1412
        %1425 = vmatpush.bf16.msra.mxu0 %v1411
        %1426 = vmatmul.bf16.gmra.mxu0 %v1416
        %v1427 = vpop.f32.mrf.mxu0
        %v1428 = vadd.f32 0.0, %v1427
        %v1429 = vpop.f32.mrf.mxu0
        %v1430 = vadd.f32 0.0, %v1429
        %1431 = vdwg.mxu0
        %v1434 = vunpack.c.l.b16 %v1360
        %v1435 = vunpack.c.l.b16 %v1361
        %v1436 = vpack.c.b16 %v1435, %v1434
        %v1437 = vunpack.c.l.b16 %v852
        %v1438 = vunpack.c.l.b16 %v854
        %v1439 = vunpack.c.l.b16 %v856
        %v1440 = vunpack.c.l.b16 %v858
        %v1441 = vpack.c.b16 %v1438, %v1437
        %v1442 = vpack.c.b16 %v1440, %v1439
        %v1446 = vsel %vm725, %v1436, 0
        %1448 = vmatpush.bf16.msra.mxu0 0
        %1449 = vmatpush.bf16.msra.mxu0 0
        %1450 = vmatpush.bf16.msra.mxu0 0
        %1451 = vmatpush.bf16.msra.mxu0 0
        %1452 = vmatpush.bf16.msra.mxu0 0
        %1453 = vmatpush.bf16.msra.mxu0 0
        %1454 = vmatpush.bf16.msra.mxu0 %v1442
        %1455 = vmatpush.bf16.msra.mxu0 %v1441
        %1456 = vmatmul.bf16.gmra.mxu0 %v1446
        %v1457 = vpop.f32.mrf.mxu0
        %v1458 = vadd.f32 0.0, %v1457
        %v1459 = vpop.f32.mrf.mxu0
        %v1460 = vadd.f32 0.0, %v1459
        %1461 = vdwg.mxu0
        %v1464 = vunpack.c.l.b16 %v1362
        %v1465 = vunpack.c.l.b16 %v1363
        %v1466 = vpack.c.b16 %v1465, %v1464
        %v1467 = vunpack.c.l.b16 %v860
        %v1468 = vunpack.c.l.b16 %v862
        %v1469 = vunpack.c.l.b16 %v864
        %v1470 = vunpack.c.l.b16 %v866
        %v1471 = vpack.c.b16 %v1468, %v1467
        %v1472 = vpack.c.b16 %v1470, %v1469
        %v1476 = vsel %vm725, %v1466, 0
        %1478 = vmatpush.bf16.msra.mxu0 0
        %1479 = vmatpush.bf16.msra.mxu0 0
        %1480 = vmatpush.bf16.msra.mxu0 0
        %1481 = vmatpush.bf16.msra.mxu0 0
        %1482 = vmatpush.bf16.msra.mxu0 0
        %1483 = vmatpush.bf16.msra.mxu0 0
        %1484 = vmatpush.bf16.msra.mxu0 %v1472
        %1485 = vmatpush.bf16.msra.mxu0 %v1471
        %1486 = vmatmul.bf16.gmra.mxu0 %v1476
        %v1487 = vpop.f32.mrf.mxu0
        %v1488 = vadd.f32 0.0, %v1487
        %v1489 = vpop.f32.mrf.mxu0
        %v1490 = vadd.f32 0.0, %v1489
        %1491 = vdwg.mxu0
        %v1494 = vunpack.c.l.b16 %v1364
        %v1495 = vunpack.c.l.b16 %v1365
        %v1496 = vpack.c.b16 %v1495, %v1494
        %v1497 = vunpack.c.l.b16 %v868
        %v1498 = vunpack.c.l.b16 %v870
        %v1499 = vunpack.c.l.b16 %v872
        %v1500 = vunpack.c.l.b16 %v874
        %v1501 = vpack.c.b16 %v1498, %v1497
        %v1502 = vpack.c.b16 %v1500, %v1499
        %v1506 = vsel %vm725, %v1496, 0
        %1508 = vmatpush.bf16.msra.mxu0 0
        %1509 = vmatpush.bf16.msra.mxu0 0
        %1510 = vmatpush.bf16.msra.mxu0 0
        %1511 = vmatpush.bf16.msra.mxu0 0
        %1512 = vmatpush.bf16.msra.mxu0 0
        %1513 = vmatpush.bf16.msra.mxu0 0
        %1514 = vmatpush.bf16.msra.mxu0 %v1502
        %1515 = vmatpush.bf16.msra.mxu0 %v1501
        %1516 = vmatmul.bf16.gmra.mxu0 %v1506
        %v1517 = vpop.f32.mrf.mxu0
        %v1518 = vadd.f32 0.0, %v1517
        %v1519 = vpop.f32.mrf.mxu0
        %v1520 = vadd.f32 0.0, %v1519
        %1521 = vdwg.mxu0
        %v1524 = vunpack.c.l.b16 %v1366
        %v1525 = vunpack.c.l.b16 %v1367
        %v1526 = vpack.c.b16 %v1525, %v1524
        %v1527 = vunpack.c.l.b16 %v876
        %v1528 = vunpack.c.l.b16 %v878
        %v1529 = vunpack.c.l.b16 %v880
        %v1530 = vunpack.c.l.b16 %v882
        %v1531 = vpack.c.b16 %v1528, %v1527
        %v1532 = vpack.c.b16 %v1530, %v1529
        %v1536 = vsel %vm725, %v1526, 0
        %1538 = vmatpush.bf16.msra.mxu0 0
        %1539 = vmatpush.bf16.msra.mxu0 0
        %1540 = vmatpush.bf16.msra.mxu0 0
        %1541 = vmatpush.bf16.msra.mxu0 0
        %1542 = vmatpush.bf16.msra.mxu0 0
        %1543 = vmatpush.bf16.msra.mxu0 0
        %1544 = vmatpush.bf16.msra.mxu0 %v1532
        %1545 = vmatpush.bf16.msra.mxu0 %v1531
        %1546 = vmatmul.bf16.gmra.mxu0 %v1536
        %v1547 = vpop.f32.mrf.mxu0
        %v1548 = vadd.f32 0.0, %v1547
        %v1549 = vpop.f32.mrf.mxu0
        %v1550 = vadd.f32 0.0, %v1549
        %1551 = vdwg.mxu0
        %v1554 = vunpack.c.l.b16 %v1368
        %v1555 = vunpack.c.l.b16 %v1369
        %v1556 = vpack.c.b16 %v1555, %v1554
        %v1557 = vunpack.c.l.b16 %v884
        %v1558 = vunpack.c.l.b16 %v886
        %v1559 = vunpack.c.l.b16 %v888
        %v1560 = vunpack.c.l.b16 %v890
        %v1561 = vpack.c.b16 %v1558, %v1557
        %v1562 = vpack.c.b16 %v1560, %v1559
        %v1566 = vsel %vm725, %v1556, 0
        %1568 = vmatpush.bf16.msra.mxu0 0
        %1569 = vmatpush.bf16.msra.mxu0 0
        %1570 = vmatpush.bf16.msra.mxu0 0
        %1571 = vmatpush.bf16.msra.mxu0 0
        %1572 = vmatpush.bf16.msra.mxu0 0
        %1573 = vmatpush.bf16.msra.mxu0 0
        %1574 = vmatpush.bf16.msra.mxu0 %v1562
        %1575 = vmatpush.bf16.msra.mxu0 %v1561
        %1576 = vmatmul.bf16.gmra.mxu0 %v1566
        %v1577 = vpop.f32.mrf.mxu0
        %v1578 = vadd.f32 0.0, %v1577
        %v1579 = vpop.f32.mrf.mxu0
        %v1580 = vadd.f32 0.0, %v1579
        %1581 = vdwg.mxu0
        %v1584 = vunpack.c.l.b16 %v1370
        %v1585 = vunpack.c.l.b16 %v1371
        %v1586 = vpack.c.b16 %v1585, %v1584
        %v1587 = vunpack.c.l.b16 %v892
        %v1588 = vunpack.c.l.b16 %v894
        %v1589 = vunpack.c.l.b16 %v896
        %v1590 = vunpack.c.l.b16 %v898
        %v1591 = vpack.c.b16 %v1588, %v1587
        %v1592 = vpack.c.b16 %v1590, %v1589
        %v1596 = vsel %vm725, %v1586, 0
        %1598 = vmatpush.bf16.msra.mxu0 0
        %1599 = vmatpush.bf16.msra.mxu0 0
        %1600 = vmatpush.bf16.msra.mxu0 0
        %1601 = vmatpush.bf16.msra.mxu0 0
        %1602 = vmatpush.bf16.msra.mxu0 0
        %1603 = vmatpush.bf16.msra.mxu0 0
        %1604 = vmatpush.bf16.msra.mxu0 %v1592
        %1605 = vmatpush.bf16.msra.mxu0 %v1591
        %1606 = vmatmul.bf16.gmra.mxu0 %v1596
        %v1607 = vpop.f32.mrf.mxu0
        %v1608 = vadd.f32 0.0, %v1607
        %v1609 = vpop.f32.mrf.mxu0
        %v1610 = vadd.f32 0.0, %v1609
        %1611 = vdwg.mxu0
        %1616 = vrot.lane.b32.xlu0 %v1458, 8
        %v1617 = vpop.permute.xlu0 %1616
        %1618 = vrot.lane.b32.xlu0 %v1460, 8
        %v1619 = vpop.permute.xlu0 %1618
        %1620 = vrot.lane.b32.xlu0 %v1488, 8
        %v1621 = vpop.permute.xlu0 %1620
        %1622 = vrot.lane.b32.xlu0 %v1490, 8
        %v1623 = vpop.permute.xlu0 %1622
        %1632 = vrot.lane.b32.xlu0 %v1518, 16
        %v1633 = vpop.permute.xlu0 %1632
        %1634 = vrot.lane.b32.xlu0 %v1520, 16
        %v1635 = vpop.permute.xlu0 %1634
        %1636 = vrot.lane.b32.xlu0 %v1548, 16
        %v1637 = vpop.permute.xlu0 %1636
        %1638 = vrot.lane.b32.xlu0 %v1550, 16
        %v1639 = vpop.permute.xlu0 %1638
        %1648 = vrot.lane.b32.xlu0 %v1578, 24
        %v1649 = vpop.permute.xlu0 %1648
        %1650 = vrot.lane.b32.xlu0 %v1580, 24
        %v1651 = vpop.permute.xlu0 %1650
        %1652 = vrot.lane.b32.xlu0 %v1608, 24
        %v1653 = vpop.permute.xlu0 %1652
        %1654 = vrot.lane.b32.xlu0 %v1610, 24
        %v1655 = vpop.permute.xlu0 %1654
        %v1660 = vsel %vm908, %v1398, %v1617
        %v1661 = vsel %vm908, %v1400, %v1619
        %v1662 = vsel %vm908, %v1428, %v1621
        %v1663 = vsel %vm908, %v1430, %v1623
        %vm1664 = vcmask 130048
        %v1665 = vsel %vm1664, %v1660, %v1633
        %v1666 = vsel %vm1664, %v1661, %v1635
        %v1667 = vsel %vm1664, %v1662, %v1637
        %v1668 = vsel %vm1664, %v1663, %v1639
        %vm1669 = vcmask 195584
        %v1670 = vsel %vm1669, %v1665, %v1649
        %v1671 = vsel %vm1669, %v1666, %v1651
        %v1672 = vsel %vm1669, %v1667, %v1653
        %v1673 = vsel %vm1669, %v1668, %v1655
        %v1674 = vpack.c.bf16 %v1671, %v1670
        %v1675 = vpack.c.bf16 %v1673, %v1672
        %v1676 = vld [vmem:[%s7] sm:$0xf]
        %v1677 = vld [vmem:[%s7 + $0x4] sm:$0xf]
        %v1678 = vld [vmem:[%s7 + $0x8] sm:$0xf]
        %v1679 = vld [vmem:[%s7 + $0xc] sm:$0xf]
        %v1680 = vld [vmem:[%s8] sm:$0x1]
        %v1682 = vperm.slane %v1680, 0
        %v1688 = vunpack.c.l.b16 %v1676
        %v1689 = vunpack.c.l.b16 %v1677
        %v1690 = vunpack.c.l.b16 %v1678
        %v1691 = vunpack.c.l.b16 %v1679
        %v1692 = vpack.c.b16 %v1689, %v1688
        %v1693 = vpack.c.b16 %v1691, %v1690
        %v1697 = vsel %vm725, %v1674, 0
        %v1700 = vsel %vm725, %v1675, 0
        %1702 = vmatpush.bf16.msra.mxu0 0
        %1703 = vmatpush.bf16.msra.mxu0 0
        %1704 = vmatpush.bf16.msra.mxu0 0
        %1705 = vmatpush.bf16.msra.mxu0 0
        %1706 = vmatpush.bf16.msra.mxu0 0
        %1707 = vmatpush.bf16.msra.mxu0 0
        %1708 = vmatpush.bf16.msra.mxu0 %v1693
        %1709 = vmatpush.bf16.msra.mxu0 %v1692
        %1710 = vmatmul.bf16.gmra.mxu0 %v1697
        %v1711 = vpop.f32.mrf.mxu0
        %v1712 = vadd.f32 %v1682, %v1711
        %v1713 = vpop.f32.mrf.mxu0
        %v1714 = vadd.f32 %v1682, %v1713
        %1715 = vmatmul.bf16.gmra.mxu0 %v1700
        %v1716 = vpop.f32.mrf.mxu0
        %v1717 = vadd.f32 %v1682, %v1716
        %v1718 = vpop.f32.mrf.mxu0
        %v1719 = vadd.f32 %v1682, %v1718
        %1720 = vdwg.mxu0
        %v1721 = vadd.f32 %v671, %v1712
        %v1722 = vadd.f32 %v672, %v1714
        %v1723 = vadd.f32 %v673, %v1717
        %v1724 = vadd.f32 %v674, %v1719
        %v1725 = vld [vmem:[%s13] sm:$0x1]
        %v1726 = vld [vmem:[%s14] sm:$0x1]
        %v1727 = vsel %vm725, %v1721, 0.0
        %1728 = vadd.xlane.f32.xlu0 %v1727
        %v1729 = vpop.xlane.xlu0 %1728
        %v1730 = vsel %vm725, %v1722, 0.0
        %1731 = vadd.xlane.f32.xlu0 %v1730
        %v1732 = vpop.xlane.xlu0 %1731
        %v1733 = vsel %vm725, %v1723, 0.0
        %1734 = vadd.xlane.f32.xlu0 %v1733
        %v1735 = vpop.xlane.xlu0 %1734
        %v1736 = vsel %vm725, %v1724, 0.0
        %1737 = vadd.xlane.f32.xlu0 %v1736
        %v1738 = vpop.xlane.xlu0 %1737
        %v1739 = vrcp.pop 32.0
        %v1740 = vmul.f32 32.0, %v1739
        %v1741 = vsub.f32 1.0, %v1740
        %v1742 = vmul.f32 %v1739, %v1741
        %v1743 = vadd.f32 %v1739, %v1742
        %vm1744 = vweird.f32 %v1739
        %v1745 = vsel %vm1744, %v1739, %v1743
        %v1746 = vmul.f32 %v1729, %v1745
        %v1747 = vmul.f32 %v1732, %v1745
        %v1748 = vmul.f32 %v1735, %v1745
        %v1749 = vmul.f32 %v1738, %v1745
        %v1750 = vsub.f32 %v1721, %v1746
        %v1751 = vsub.f32 %v1722, %v1747
        %v1752 = vsub.f32 %v1723, %v1748
        %v1753 = vsub.f32 %v1724, %v1749
        %v1754 = vmul.f32 %v1750, %v1750
        %v1755 = vmul.f32 %v1751, %v1751
        %v1756 = vmul.f32 %v1752, %v1752
        %v1757 = vmul.f32 %v1753, %v1753
        %v1758 = vsel %vm725, %v1754, 0.0
        %1759 = vadd.xlane.f32.xlu0 %v1758
        %v1760 = vpop.xlane.xlu0 %1759
        %v1761 = vsel %vm725, %v1755, 0.0
        %1762 = vadd.xlane.f32.xlu0 %v1761
        %v1763 = vpop.xlane.xlu0 %1762
        %v1764 = vsel %vm725, %v1756, 0.0
        %1765 = vadd.xlane.f32.xlu0 %v1764
        %v1766 = vpop.xlane.xlu0 %1765
        %v1767 = vsel %vm725, %v1757, 0.0
        %1768 = vadd.xlane.f32.xlu0 %v1767
        %v1769 = vpop.xlane.xlu0 %1768
        %v1770 = vmul.f32 %v1760, %v1745
        %v1771 = vmul.f32 %v1763, %v1745
        %v1772 = vmul.f32 %v1766, %v1745
        %v1773 = vmul.f32 %v1769, %v1745
        %v1774 = vadd.f32 %v1770, 1e-05
        %v1775 = vadd.f32 %v1771, 1e-05
        %v1776 = vadd.f32 %v1772, 1e-05
        %v1777 = vadd.f32 %v1773, 1e-05
        %v1778 = vrsqrt.pop %v1774
        %v1779 = vmul.f32 %v1778, %v1774
        %v1780 = vmul.f32 %v1779, %v1778
        %v1781 = vmul.f32 0.5, %v1780
        %v1782 = vsub.f32 1.5, %v1781
        %v1783 = vmul.f32 %v1778, %v1782
        %vm1784 = vweird.f32 %v1774
        %vm1785 = vweird.f32 %v1778
        %vm1786 = vmor %vm1784, %vm1785
        %v1787 = vsel %vm1786, %v1778, %v1783
        %v1788 = vrsqrt.pop %v1775
        %v1789 = vmul.f32 %v1788, %v1775
        %v1790 = vmul.f32 %v1789, %v1788
        %v1791 = vmul.f32 0.5, %v1790
        %v1792 = vsub.f32 1.5, %v1791
        %v1793 = vmul.f32 %v1788, %v1792
        %vm1794 = vweird.f32 %v1775
        %vm1795 = vweird.f32 %v1788
        %vm1796 = vmor %vm1794, %vm1795
        %v1797 = vsel %vm1796, %v1788, %v1793
        %v1798 = vrsqrt.pop %v1776
        %v1799 = vmul.f32 %v1798, %v1776
        %v1800 = vmul.f32 %v1799, %v1798
        %v1801 = vmul.f32 0.5, %v1800
        %v1802 = vsub.f32 1.5, %v1801
        %v1803 = vmul.f32 %v1798, %v1802
        %vm1804 = vweird.f32 %v1776
        %vm1805 = vweird.f32 %v1798
        %vm1806 = vmor %vm1804, %vm1805
        %v1807 = vsel %vm1806, %v1798, %v1803
        %v1808 = vrsqrt.pop %v1777
        %v1809 = vmul.f32 %v1808, %v1777
        %v1810 = vmul.f32 %v1809, %v1808
        %v1811 = vmul.f32 0.5, %v1810
        %v1812 = vsub.f32 1.5, %v1811
        %v1813 = vmul.f32 %v1808, %v1812
        %vm1814 = vweird.f32 %v1777
        %vm1815 = vweird.f32 %v1808
        %vm1816 = vmor %vm1814, %vm1815
        %v1817 = vsel %vm1816, %v1808, %v1813
        %v1818 = vmul.f32 %v1750, %v1787
        %v1819 = vmul.f32 %v1751, %v1797
        %v1820 = vmul.f32 %v1752, %v1807
        %v1821 = vmul.f32 %v1753, %v1817
        %v1823 = vperm.slane %v1725, 0
        %v1825 = vmul.f32 %v1818, %v1823
        %v1826 = vmul.f32 %v1819, %v1823
        %v1827 = vmul.f32 %v1820, %v1823
        %v1828 = vmul.f32 %v1821, %v1823
        %v1830 = vperm.slane %v1726, 0
        %v1832 = vadd.f32 %v1825, %v1830
        %v1833 = vadd.f32 %v1826, %v1830
        %v1834 = vadd.f32 %v1827, %v1830
        %v1835 = vadd.f32 %v1828, %v1830
        %v1836 = vpack.c.bf16 %v1833, %v1832
        %v1837 = vpack.c.bf16 %v1835, %v1834
        %v1838 = vld [vmem:[%s9] sm:$0xf]
        %v1839 = vld [vmem:[%s9 + $0x4] sm:$0xf]
        %v1840 = vld [vmem:[%s9 + $0x8] sm:$0xf]
        %v1841 = vld [vmem:[%s9 + $0xc] sm:$0xf]
        %v1842 = vld [vmem:[%s10] sm:$0x1]
        %v1844 = vperm.slane %v1842, 0
        %v1850 = vunpack.c.l.b16 %v1838
        %v1851 = vunpack.c.l.b16 %v1839
        %v1852 = vunpack.c.l.b16 %v1840
        %v1853 = vunpack.c.l.b16 %v1841
        %v1854 = vpack.c.b16 %v1851, %v1850
        %v1855 = vpack.c.b16 %v1853, %v1852
        %v1859 = vsel %vm725, %v1836, 0
        %v1862 = vsel %vm725, %v1837, 0
        %1864 = vmatpush.bf16.msra.mxu0 0
        %1865 = vmatpush.bf16.msra.mxu0 0
        %1866 = vmatpush.bf16.msra.mxu0 0
        %1867 = vmatpush.bf16.msra.mxu0 0
        %1868 = vmatpush.bf16.msra.mxu0 0
        %1869 = vmatpush.bf16.msra.mxu0 0
        %1870 = vmatpush.bf16.msra.mxu0 %v1855
        %1871 = vmatpush.bf16.msra.mxu0 %v1854
        %1872 = vmatmul.bf16.gmra.mxu0 %v1859
        %v1873 = vpop.f32.mrf.mxu0
        %v1874 = vadd.f32 %v1844, %v1873
        %v1875 = vpop.f32.mrf.mxu0
        %v1876 = vadd.f32 %v1844, %v1875
        %1877 = vmatmul.bf16.gmra.mxu0 %v1862
        %v1878 = vpop.f32.mrf.mxu0
        %v1879 = vadd.f32 %v1844, %v1878
        %v1880 = vpop.f32.mrf.mxu0
        %v1881 = vadd.f32 %v1844, %v1880
        %1882 = vdwg.mxu0
        %v1883 = vmax.f32 %v1874, 0.0
        %v1884 = vmax.f32 %v1876, 0.0
        %v1885 = vmax.f32 %v1879, 0.0
        %v1886 = vmax.f32 %v1881, 0.0
        %v1887 = vpack.c.bf16 %v1884, %v1883
        %v1888 = vpack.c.bf16 %v1886, %v1885
        %v1889 = vld [vmem:[%s11] sm:$0xf]
        %v1890 = vld [vmem:[%s11 + $0x4] sm:$0xf]
        %v1891 = vld [vmem:[%s11 + $0x8] sm:$0xf]
        %v1892 = vld [vmem:[%s11 + $0xc] sm:$0xf]
        %v1893 = vld [vmem:[%s11 + $0x10] sm:$0xf]
        %v1894 = vld [vmem:[%s11 + $0x14] sm:$0xf]
        %v1895 = vld [vmem:[%s11 + $0x18] sm:$0xf]
        %v1896 = vld [vmem:[%s11 + $0x1c] sm:$0xf]
        %v1897 = vld [vmem:[%s12] sm:$0x1]
        %v1899 = vperm.slane %v1897, 0
        %v1909 = vunpack.c.l.b16 %v1889
        %v1910 = vunpack.c.l.b16 %v1890
        %v1911 = vunpack.c.l.b16 %v1891
        %v1912 = vunpack.c.l.b16 %v1892
        %v1913 = vunpack.c.l.b16 %v1893
        %v1914 = vunpack.c.l.b16 %v1894
        %v1915 = vunpack.c.l.b16 %v1895
        %v1916 = vunpack.c.l.b16 %v1896
        %v1917 = vpack.c.b16 %v1910, %v1909
        %v1918 = vpack.c.b16 %v1912, %v1911
        %v1919 = vpack.c.b16 %v1914, %v1913
        %v1920 = vpack.c.b16 %v1916, %v1915
        %vm1925 = vcmask 523264
        %v1927 = vsel %vm1925, %v1887, 0
        %v1930 = vsel %vm1925, %v1888, 0
        %1932 = vmatpush.bf16.msra.mxu0 0
        %1933 = vmatpush.bf16.msra.mxu0 0
        %1934 = vmatpush.bf16.msra.mxu0 0
        %1935 = vmatpush.bf16.msra.mxu0 0
        %1936 = vmatpush.bf16.msra.mxu0 %v1920
        %1937 = vmatpush.bf16.msra.mxu0 %v1919
        %1938 = vmatpush.bf16.msra.mxu0 %v1918
        %1939 = vmatpush.bf16.msra.mxu0 %v1917
        %1940 = vmatmul.bf16.gmra.mxu0 %v1927
        %v1941 = vpop.f32.mrf.mxu0
        %v1942 = vadd.f32 %v1899, %v1941
        %v1943 = vpop.f32.mrf.mxu0
        %v1944 = vadd.f32 %v1899, %v1943
        %1945 = vmatmul.bf16.gmra.mxu0 %v1930
        %v1946 = vpop.f32.mrf.mxu0
        %v1947 = vadd.f32 %v1899, %v1946
        %v1948 = vpop.f32.mrf.mxu0
        %v1949 = vadd.f32 %v1899, %v1948
        %1950 = vdwg.mxu0
        %v1951 = vadd.f32 %v1832, %v1942
        %v1952 = vadd.f32 %v1833, %v1944
        %v1953 = vadd.f32 %v1834, %v1947
        %v1954 = vadd.f32 %v1835, %v1949
        %v1955 = vld [vmem:[%s15] sm:$0x1]
        %v1956 = vld [vmem:[%s16] sm:$0x1]
        %v1957 = vsel %vm725, %v1951, 0.0
        %1958 = vadd.xlane.f32.xlu0 %v1957
        %v1959 = vpop.xlane.xlu0 %1958
        %v1960 = vsel %vm725, %v1952, 0.0
        %1961 = vadd.xlane.f32.xlu0 %v1960
        %v1962 = vpop.xlane.xlu0 %1961
        %v1963 = vsel %vm725, %v1953, 0.0
        %1964 = vadd.xlane.f32.xlu0 %v1963
        %v1965 = vpop.xlane.xlu0 %1964
        %v1966 = vsel %vm725, %v1954, 0.0
        %1967 = vadd.xlane.f32.xlu0 %v1966
        %v1968 = vpop.xlane.xlu0 %1967
        %v1969 = vmul.f32 %v1959, %v1745
        %v1970 = vmul.f32 %v1962, %v1745
        %v1971 = vmul.f32 %v1965, %v1745
        %v1972 = vmul.f32 %v1968, %v1745
        %v1973 = vsub.f32 %v1951, %v1969
        %v1974 = vsub.f32 %v1952, %v1970
        %v1975 = vsub.f32 %v1953, %v1971
        %v1976 = vsub.f32 %v1954, %v1972
        %v1977 = vmul.f32 %v1973, %v1973
        %v1978 = vmul.f32 %v1974, %v1974
        %v1979 = vmul.f32 %v1975, %v1975
        %v1980 = vmul.f32 %v1976, %v1976
        %v1981 = vsel %vm725, %v1977, 0.0
        %1982 = vadd.xlane.f32.xlu0 %v1981
        %v1983 = vpop.xlane.xlu0 %1982
        %v1984 = vsel %vm725, %v1978, 0.0
        %1985 = vadd.xlane.f32.xlu0 %v1984
        %v1986 = vpop.xlane.xlu0 %1985
        %v1987 = vsel %vm725, %v1979, 0.0
        %1988 = vadd.xlane.f32.xlu0 %v1987
        %v1989 = vpop.xlane.xlu0 %1988
        %v1990 = vsel %vm725, %v1980, 0.0
        %1991 = vadd.xlane.f32.xlu0 %v1990
        %v1992 = vpop.xlane.xlu0 %1991
        %v1993 = vmul.f32 %v1983, %v1745
        %v1994 = vmul.f32 %v1986, %v1745
        %v1995 = vmul.f32 %v1989, %v1745
        %v1996 = vmul.f32 %v1992, %v1745
        %v1997 = vadd.f32 %v1993, 1e-05
        %v1998 = vadd.f32 %v1994, 1e-05
        %v1999 = vadd.f32 %v1995, 1e-05
        %v2000 = vadd.f32 %v1996, 1e-05
        %v2001 = vrsqrt.pop %v1997
        %v2002 = vmul.f32 %v2001, %v1997
        %v2003 = vmul.f32 %v2002, %v2001
        %v2004 = vmul.f32 0.5, %v2003
        %v2005 = vsub.f32 1.5, %v2004
        %v2006 = vmul.f32 %v2001, %v2005
        %vm2007 = vweird.f32 %v1997
        %vm2008 = vweird.f32 %v2001
        %vm2009 = vmor %vm2007, %vm2008
        %v2010 = vsel %vm2009, %v2001, %v2006
        %v2011 = vrsqrt.pop %v1998
        %v2012 = vmul.f32 %v2011, %v1998
        %v2013 = vmul.f32 %v2012, %v2011
        %v2014 = vmul.f32 0.5, %v2013
        %v2015 = vsub.f32 1.5, %v2014
        %v2016 = vmul.f32 %v2011, %v2015
        %vm2017 = vweird.f32 %v1998
        %vm2018 = vweird.f32 %v2011
        %vm2019 = vmor %vm2017, %vm2018
        %v2020 = vsel %vm2019, %v2011, %v2016
        %v2021 = vrsqrt.pop %v1999
        %v2022 = vmul.f32 %v2021, %v1999
        %v2023 = vmul.f32 %v2022, %v2021
        %v2024 = vmul.f32 0.5, %v2023
        %v2025 = vsub.f32 1.5, %v2024
        %v2026 = vmul.f32 %v2021, %v2025
        %vm2027 = vweird.f32 %v1999
        %vm2028 = vweird.f32 %v2021
        %vm2029 = vmor %vm2027, %vm2028
        %v2030 = vsel %vm2029, %v2021, %v2026
        %v2031 = vrsqrt.pop %v2000
        %v2032 = vmul.f32 %v2031, %v2000
        %v2033 = vmul.f32 %v2032, %v2031
        %v2034 = vmul.f32 0.5, %v2033
        %v2035 = vsub.f32 1.5, %v2034
        %v2036 = vmul.f32 %v2031, %v2035
        %vm2037 = vweird.f32 %v2000
        %vm2038 = vweird.f32 %v2031
        %vm2039 = vmor %vm2037, %vm2038
        %v2040 = vsel %vm2039, %v2031, %v2036
        %v2041 = vmul.f32 %v1973, %v2010
        %v2042 = vmul.f32 %v1974, %v2020
        %v2043 = vmul.f32 %v1975, %v2030
        %v2044 = vmul.f32 %v1976, %v2040
        %v2046 = vperm.slane %v1955, 0
        %v2048 = vmul.f32 %v2041, %v2046
        %v2049 = vmul.f32 %v2042, %v2046
        %v2050 = vmul.f32 %v2043, %v2046
        %v2051 = vmul.f32 %v2044, %v2046
        %v2053 = vperm.slane %v1956, 0
        %v2055 = vadd.f32 %v2048, %v2053
        %v2056 = vadd.f32 %v2049, %v2053
        %v2057 = vadd.f32 %v2050, %v2053
        %v2058 = vadd.f32 %v2051, %v2053
        %2059 = vst.msk [vmem:[%s666] sm:$0xff] %vm725, %v2055
        %2060 = vst.msk [vmem:[%s666 + $0x8] sm:$0xff] %vm725, %v2056
        %2061 = vst.msk [vmem:[%s666 + $0x10] sm:$0xff] %vm725, %v2057
        %2062 = vst.msk [vmem:[%s666 + $0x18] sm:$0xff] %vm725, %v2058
        %s2063 = sand.u32 %s403, 1
        %s2064 = sand.u32 %s403, 1
        %s2065 = smul.addr %s2064, 32
        %s2066 = scalar_lea.vmem [#allocation4], %s2065
        // Predicated region
        $region168: #{transformer_encoder_forward.5} parent=158 // pred_check
          %p2067 = pneg %p413
        $region169: #{transformer_encoder_forward.5} parent=158 // pred_check_branch
          %2069 = sbr.rel (%p2067) target = $region171
        $region170: #{transformer_encoder_forward.5} parent=158 // pred_region
          %s2070 = smul.u32 2, %s28
          %s2071 = smul.addr %s2070, 8
          %s2072 = scalar_lea.vmem %s17, %s2071
          // Predicated region
          $region172: #{transformer_encoder_forward.5} parent=170 // pred_check
            _
          $region173: #{transformer_encoder_forward.5} parent=170 // pred_check_branch
            %2074 = sbr.rel (0) target = $region175
          $region174: #{transformer_encoder_forward.5} parent=170 // pred_region
            // Predicated region
            $region176: #{transformer_encoder_forward.5} parent=174 // pred_check
              _
            $region177: #{transformer_encoder_forward.5} parent=174 // pred_check_branch
              %2076 = sbr.rel (0) target = $region179
            $region178: #{transformer_encoder_forward.5} parent=174 // pred_region
              // Predicated region
              $region191: #{transformer_encoder_forward.5} parent=178 // pred_check
                _
              $region192: #{transformer_encoder_forward.5} parent=178 // pred_check_branch
                %2098 = sbr.rel (0) target = $region194
              $region193: #{transformer_encoder_forward.5} parent=178 // pred_region
                loop: start=0, step=1, limit=1
                $region195: #{transformer_encoder_forward.5} parent=193 // loop_pre_header
                  _
                $region196: #{transformer_encoder_forward.5} parent=193 // loop_header
                  %s2100 = sphi 0, %s2104
                  %p2101 = scmp.ge.s32.totalorder %s2100, 1
                  %s2105 = sphi %s2066, %s2066
                  %s2106 = sphi %s2072, %s2072
                $region197: #{transformer_encoder_forward.5} parent=193 // loop_header_branch
                  %2103 = sbr.rel (%p2101) target = $region201
                $region198: #{transformer_encoder_forward.5} parent=193 // loop_body
                  %v2107 = vld [vmem:[%s2105] sm:$0xff]
                  %2108 = vst [vmem:[%s2106] sm:$0xff] %v2107
                  %v2109 = vld [vmem:[%s2105 + $0x8] sm:$0xff]
                  %2110 = vst [vmem:[%s2106 + $0x8] sm:$0xff] %v2109
                  %v2111 = vld [vmem:[%s2105 + $0x10] sm:$0xff]
                  %2112 = vst [vmem:[%s2106 + $0x20] sm:$0xff] %v2111
                  %v2113 = vld [vmem:[%s2105 + $0x18] sm:$0xff]
                  %2114 = vst [vmem:[%s2106 + $0x28] sm:$0xff] %v2113
                $region199: #{transformer_encoder_forward.5} parent=193 // loop_footer
                  %s2104 = sadd.s32 1, %s2100
                $region200: #{transformer_encoder_forward.5} parent=193 // loop_footer_branch
                  %2099 = sbr.rel target = $region196
                $region201: #{transformer_encoder_forward.5} parent=193 // loop_exit
                  _
              $region194: #{transformer_encoder_forward.5} parent=178 // pred_fallthru
                _
              // Predicated region
              $region202: #{transformer_encoder_forward.5} parent=178 // pred_check
                _
              $region203: #{transformer_encoder_forward.5} parent=178 // pred_check_branch
                %2116 = sbr.rel target = $region205
              $region204: #{transformer_encoder_forward.5} parent=178 // pred_region
                _
              $region205: #{transformer_encoder_forward.5} parent=178 // pred_fallthru
                _
            $region179: #{transformer_encoder_forward.5} parent=174 // pred_fallthru
              _
            // Predicated region
            $region180: #{transformer_encoder_forward.5} parent=174 // pred_check
              _
            $region181: #{transformer_encoder_forward.5} parent=174 // pred_check_branch
              %2078 = sbr.rel target = $region183
            $region182: #{transformer_encoder_forward.5} parent=174 // pred_region
              %s2080 = ssub.s32 256, 1
              loop: start=0, step=1, limit=1
              $region184: #{transformer_encoder_forward.5} parent=182 // loop_pre_header
                _
              $region185: #{transformer_encoder_forward.5} parent=182 // loop_header
                %s2082 = sphi 0, %s2086
                %p2083 = scmp.ge.s32.totalorder %s2082, 1
                %s2087 = sphi %s2066, %s2066
                %s2088 = sphi %s2072, %s2072
              $region186: #{transformer_encoder_forward.5} parent=182 // loop_header_branch
                %2085 = sbr.rel (%p2083) target = $region190
              $region187: #{transformer_encoder_forward.5} parent=182 // loop_body
                %v2089 = vld [vmem:[%s2087] sm:%s2080]
                %2090 = vst [vmem:[%s2088] sm:%s2080] %v2089
                %v2091 = vld [vmem:[%s2087 + $0x8] sm:%s2080]
                %2092 = vst [vmem:[%s2088 + $0x8] sm:%s2080] %v2091
                %v2093 = vld [vmem:[%s2087 + $0x10] sm:%s2080]
                %2094 = vst [vmem:[%s2088 + $0x20] sm:%s2080] %v2093
                %v2095 = vld [vmem:[%s2087 + $0x18] sm:%s2080]
                %2096 = vst [vmem:[%s2088 + $0x28] sm:%s2080] %v2095
              $region188: #{transformer_encoder_forward.5} parent=182 // loop_footer
                %s2086 = sadd.s32 1, %s2082
              $region189: #{transformer_encoder_forward.5} parent=182 // loop_footer_branch
                %2081 = sbr.rel target = $region185
              $region190: #{transformer_encoder_forward.5} parent=182 // loop_exit
                _
            $region183: #{transformer_encoder_forward.5} parent=174 // pred_fallthru
              _
          $region175: #{transformer_encoder_forward.5} parent=170 // pred_fallthru
            _
          %2117 = vnop
        $region171: #{transformer_encoder_forward.5} parent=158 // pred_fallthru
          _
      $region159: #{transformer_encoder_forward.5} parent=5 // pred_fallthru
        _
      %p2118 = scmp.le.s32.totalorder 2, %s23
      // Predicated region
      $region206: #{transformer_encoder_forward.5} parent=5 // pred_check
        %p2119 = pneg %p2118
      $region207: #{transformer_encoder_forward.5} parent=5 // pred_check_branch
        %2121 = sbr.rel (%p2119) target = $region209
      $region208: #{transformer_encoder_forward.5} parent=5 // pred_region
        %s2122 = ssub.s32 %s23, 2
        // Predicated region
        $region210: #{transformer_encoder_forward.5} parent=208 // pred_check
          %p2123 = pneg %p419
        $region211: #{transformer_encoder_forward.5} parent=208 // pred_check_branch
          %2125 = sbr.rel (%p2123) target = $region213
        $region212: #{transformer_encoder_forward.5} parent=208 // pred_region
          %s2126 = sand.u32 %s404, 1
          %s2127 = sand.u32 %s404, 1
          %s2128 = smul.addr %s2127, 32
          %s2129 = scalar_lea.vmem [#allocation4], %s2128
        $region213: #{transformer_encoder_forward.5} parent=208 // pred_fallthru
          _
      $region209: #{transformer_encoder_forward.5} parent=5 // pred_fallthru
        _
    $region6: #{transformer_encoder_forward.5} parent=1 // loop_footer
      %s27 = sadd.s32 1, %s23
    $region7: #{transformer_encoder_forward.5} parent=1 // loop_footer_branch
      %22 = sbr.rel target = $region3
    $region8: #{transformer_encoder_forward.5} parent=1 // loop_exit
      _

</llo_original>
